<compile_context>
chip_gen: v7x
topology: tpu7x:2x2x1
jax: 0.10.0
libtpu: 0.0.40
codegen_flags: <defaults>
</compile_context>

<pallas_src>
import jax
import jax.numpy as jnp
from jax.experimental import pallas as pl
from jax.experimental.pallas import tpu as pltpu

IN_DIM = 8 * 8 * 15                           # 960: torch.nn.Flatten of (15, 8, 8)
DIMS = [IN_DIM, 128, 256, 512, 96, 1]         # true PyTorch layer sizes
PAD_DIMS = [IN_DIM, 128, 256, 512, 128, 128]  # lane-aligned widths (96->128, 1->128)


def _round_up(x, m):
    return (x + m - 1) // m * m


def mlp_kernel(x_ref,
               w1_ref, b1_ref, w2_ref, b2_ref, w3_ref, b3_ref,
               w4_ref, b4_ref, w5_ref, b5_ref,
               o_ref):
    """5-layer MLP on one (TB, 960) fp32 batch tile.

    The fp32 -> bf16 cast is fused in-kernel (x makes a single HBM pass).
    Weights/biases stay VMEM-resident across grid steps (constant index_maps);
    bf16 matmuls with fp32 accumulation + fp32 bias add on the MXU.
    """
    h = x_ref[...].astype(jnp.bfloat16)                                  # (TB, 960)
    h = jnp.dot(h, w1_ref[...], preferred_element_type=jnp.float32) + b1_ref[...]
    h = jnp.maximum(h, 0.0).astype(jnp.bfloat16)
    h = jnp.dot(h, w2_ref[...], preferred_element_type=jnp.float32) + b2_ref[...]
    h = jnp.maximum(h, 0.0).astype(jnp.bfloat16)
    h = jnp.dot(h, w3_ref[...], preferred_element_type=jnp.float32) + b3_ref[...]
    h = jnp.maximum(h, 0.0).astype(jnp.bfloat16)
    h = jnp.dot(h, w4_ref[...], preferred_element_type=jnp.float32) + b4_ref[...]
    h = jnp.maximum(h, 0.0).astype(jnp.bfloat16)
    # Final Linear; lane-dense (TB, 128) fp32 store, real result lives in column 0.
    o_ref[...] = jnp.dot(h, w5_ref[...], preferred_element_type=jnp.float32) + b5_ref[...]


def init_params(key):
    """PyTorch-default-like init at the true layer sizes (fp32, W stored (in, out))."""
    params = []
    for i in range(len(DIMS) - 1):
        fan_in, fan_out = DIMS[i], DIMS[i + 1]
        key, kw, kb = jax.random.split(key, 3)
        bound = 1.0 / (fan_in ** 0.5)           # torch.nn.Linear default scale
        w = jax.random.uniform(kw, (fan_in, fan_out), jnp.float32, -bound, bound)
        b = jax.random.uniform(kb, (1, fan_out), jnp.float32, -bound, bound)
        params.append((w, b))
    return params


def pad_params(params):
    """Zero-pad layers to PAD_DIMS; weights cast to bf16, biases stay fp32.

    Zero padding keeps column 0 of the final output mathematically identical
    (padded layer-4 units are relu(0)=0; padded layer-5 columns are discarded).
    """
    padded = []
    for i, (w, b) in enumerate(params):
        din, dout = PAD_DIMS[i], PAD_DIMS[i + 1]
        wp = jnp.zeros((din, dout), jnp.float32).at[:w.shape[0], :w.shape[1]].set(w)
        bp = jnp.zeros((1, dout), jnp.float32).at[:, :b.shape[1]].set(b)
        padded.append((wp.astype(jnp.bfloat16), bp))
    return padded


def _choose_tb(B, tb_req):
    """Batch tile: multiple of 128, <= requested, and >= 2 grid steps whenever
    the batch allows (keeps both v7x TensorCores busy; harmless on v5e/v6e)."""
    b128 = _round_up(B, 128)
    tb = min(_round_up(tb_req, 128), b128)
    if b128 >= 256:
        tb = min(tb, _round_up(b128 // 2, 128))
    return max(tb, 128)


def net_forward(x, padded_params, tb=512):
    """x: (B, 15, 8, 8) fp32.  padded_params: [(W bf16 (din,dout), b fp32 (1,dout))]."""
    B = x.shape[0]
    x_flat = x.reshape(B, IN_DIM)          # torch.nn.Flatten equivalent (glue; no pad/cast pass)
    tb = _choose_tb(B, tb)
    n_tiles = pl.cdiv(B, tb)               # last block may be partial; Pallas clamps it

    flat_params = []
    in_specs = [pl.BlockSpec((tb, IN_DIM), lambda i: (i, 0))]
    for (w, b) in padded_params:
        flat_params.append(w)
        flat_params.append(b)
        in_specs.append(pl.BlockSpec(w.shape, lambda i: (0, 0)))   # weights VMEM-resident
        in_specs.append(pl.BlockSpec(b.shape, lambda i: (0, 0)))

    layer_kn = [(PAD_DIMS[i], PAD_DIMS[i + 1]) for i in range(len(PAD_DIMS) - 1)]
    flops = 2 * n_tiles * tb * sum(k * n for k, n in layer_kn)
    bytes_accessed = (x_flat.size * 4
                      + sum(w.size * 2 + b.size * 4 for (w, b) in padded_params)
                      + B * PAD_DIMS[-1] * 4)

    out = pl.pallas_call(
        mlp_kernel,
        out_shape=jax.ShapeDtypeStruct((B, PAD_DIMS[-1]), jnp.float32),
        grid=(n_tiles,),
        in_specs=in_specs,
        out_specs=pl.BlockSpec((tb, PAD_DIMS[-1]), lambda i: (i, 0)),
        compiler_params=pltpu.CompilerParams(
            dimension_semantics=("parallel",),      # batch tiles across cores (v7x megacore)
            vmem_limit_bytes=32 * 1024 * 1024,      # headroom for tb<=1024 (v5e default is 16 MiB)
        ),
        cost_estimate=pl.CostEstimate(
            flops=flops, transcendentals=0, bytes_accessed=bytes_accessed),
    )(x_flat, *flat_params)

    return out[:, :1]                              # strip lane padding (column 0 is real) (glue)


def net_forward_ref(x, padded_params):
    """Pure-JAX reference with the exact same bf16 rounding points as the kernel."""
    B = x.shape[0]
    h = x.reshape(B, IN_DIM).astype(jnp.bfloat16)
    for i, (w, b) in enumerate(padded_params):
        h = jnp.dot(h, w, preferred_element_type=jnp.float32) + b
        if i < len(padded_params) - 1:
            h = jnp.maximum(h, 0.0).astype(jnp.bfloat16)
    return h[:, :1]


def net_forward_ref_fp32(x, params):
    """True fp32 reference matching the original PyTorch Net forward."""
    B = x.shape[0]
    h = x.reshape(B, IN_DIM)
    for i, (w, b) in enumerate(params):
        h = jnp.dot(h, w, preferred_element_type=jnp.float32,
                    precision=jax.lax.Precision.HIGHEST) + b
        if i < len(params) - 1:
            h = jnp.maximum(h, 0.0)
    return h


if __name__ == "__main__":
    key = jax.random.PRNGKey(0)
    key, kx = jax.random.split(key)

    B = 200                                  # small, but exercises 2 batch tiles + partial last block
    x = jax.random.normal(kx, (B, 15, 8, 8), jnp.float32)
    params = init_params(key)
    padded = pad_params(params)

    out = jax.block_until_ready(net_forward(x, padded))
    ref_bf16 = net_forward_ref(x, padded)
    ref_fp32 = net_forward_ref_fp32(x, params)

    assert out.shape == (B, 1)
    # Exact-rounding reference (same bf16 cast points as the kernel).
    assert jnp.allclose(out, ref_bf16, atol=1e-3, rtol=1e-3), "mismatch vs bf16-matched reference"
    # Loose bound vs the true fp32 forward (bf16 weight/activation deviation).
    max_err = float(jnp.max(jnp.abs(out - ref_fp32)))
    assert max_err < 1e-1, f"bf16 deviation vs fp32 reference too large: {max_err}"

    print("KERNEL_OK")
</pallas_src>

<mosaic_0001>
module attributes {stable_mosaic.version = 11 : i64} {
  func.func @mlp_kernel(%arg0: i32, %arg1: memref<128x960xf32, #tpu.memory_space<vmem>>, %arg2: memref<960x128xbf16, #tpu.memory_space<vmem>>, %arg3: memref<1x128xf32, #tpu.memory_space<vmem>>, %arg4: memref<128x256xbf16, #tpu.memory_space<vmem>>, %arg5: memref<1x256xf32, #tpu.memory_space<vmem>>, %arg6: memref<256x512xbf16, #tpu.memory_space<vmem>>, %arg7: memref<1x512xf32, #tpu.memory_space<vmem>>, %arg8: memref<512x128xbf16, #tpu.memory_space<vmem>>, %arg9: memref<1x128xf32, #tpu.memory_space<vmem>>, %arg10: memref<128x128xbf16, #tpu.memory_space<vmem>>, %arg11: memref<1x128xf32, #tpu.memory_space<vmem>>, %arg12: memref<128x128xf32, #tpu.memory_space<vmem>>) attributes {dimension_semantics = [#tpu.dimension_semantics<parallel>], iteration_bounds = array<i64: 2>, scalar_prefetch = 0 : i64, scratch_operands = 0 : i64, tpu.core_type = #tpu.core_type<tc>, window_params = [{transform_indices = @transform_0, window_bounds = array<i64: 128, 960>}, {pipeline_mode = #tpu.pipeline_mode<synchronous>, transform_indices = @transform_1, window_bounds = array<i64: 960, 128>}, {pipeline_mode = #tpu.pipeline_mode<synchronous>, transform_indices = @transform_2, window_bounds = array<i64: 1, 128>}, {pipeline_mode = #tpu.pipeline_mode<synchronous>, transform_indices = @transform_3, window_bounds = array<i64: 128, 256>}, {pipeline_mode = #tpu.pipeline_mode<synchronous>, transform_indices = @transform_4, window_bounds = array<i64: 1, 256>}, {pipeline_mode = #tpu.pipeline_mode<synchronous>, transform_indices = @transform_5, window_bounds = array<i64: 256, 512>}, {pipeline_mode = #tpu.pipeline_mode<synchronous>, transform_indices = @transform_6, window_bounds = array<i64: 1, 512>}, {pipeline_mode = #tpu.pipeline_mode<synchronous>, transform_indices = @transform_7, window_bounds = array<i64: 512, 128>}, {pipeline_mode = #tpu.pipeline_mode<synchronous>, transform_indices = @transform_8, window_bounds = array<i64: 1, 128>}, {pipeline_mode = #tpu.pipeline_mode<synchronous>, transform_indices = @transform_9, window_bounds = array<i64: 128, 128>}, {pipeline_mode = #tpu.pipeline_mode<synchronous>, transform_indices = @transform_10, window_bounds = array<i64: 1, 128>}, {transform_indices = @transform_11, window_bounds = array<i64: 128, 128>}]} {
    %c0 = arith.constant 0 : index
    %c0_0 = arith.constant 0 : index
    %0 = vector.load %arg1[%c0, %c0_0] : memref<128x960xf32, #tpu.memory_space<vmem>>, vector<128x960xf32>
    %1 = arith.truncf %0 : vector<128x960xf32> to vector<128x960xbf16>
    %c0_1 = arith.constant 0 : index
    %c0_2 = arith.constant 0 : index
    %2 = vector.load %arg2[%c0_1, %c0_2] : memref<960x128xbf16, #tpu.memory_space<vmem>>, vector<960x128xbf16>
    %cst = arith.constant dense<0.000000e+00> : vector<128x128xf32>
    %3 = tpu.matmul %1, %2, %cst {dimension_numbers = #tpu.dot_dimension_numbers<[1], [0], [0], [1], [0, 0, 1, 1], [], []>} : vector<128x960xbf16>, vector<960x128xbf16>, vector<128x128xf32> -> vector<128x128xf32>
    %c0_3 = arith.constant 0 : index
    %c0_4 = arith.constant 0 : index
    %4 = vector.load %arg3[%c0_3, %c0_4] : memref<1x128xf32, #tpu.memory_space<vmem>>, vector<1x128xf32>
    %5 = vector.broadcast %4 : vector<1x128xf32> to vector<128x128xf32>
    %6 = arith.addf %3, %5 : vector<128x128xf32>
    %cst_5 = arith.constant 0.000000e+00 : f32
    %7 = vector.broadcast %cst_5 : f32 to vector<128x128xf32>
    %8 = arith.maximumf %6, %7 : vector<128x128xf32>
    %9 = arith.truncf %8 : vector<128x128xf32> to vector<128x128xbf16>
    %c0_6 = arith.constant 0 : index
    %c0_7 = arith.constant 0 : index
    %10 = vector.load %arg4[%c0_6, %c0_7] : memref<128x256xbf16, #tpu.memory_space<vmem>>, vector<128x256xbf16>
    %cst_8 = arith.constant dense<0.000000e+00> : vector<128x256xf32>
    %11 = tpu.matmul %9, %10, %cst_8 {dimension_numbers = #tpu.dot_dimension_numbers<[1], [0], [0], [1], [0, 0, 1, 1], [], []>} : vector<128x128xbf16>, vector<128x256xbf16>, vector<128x256xf32> -> vector<128x256xf32>
    %c0_9 = arith.constant 0 : index
    %c0_10 = arith.constant 0 : index
    %12 = vector.load %arg5[%c0_9, %c0_10] : memref<1x256xf32, #tpu.memory_space<vmem>>, vector<1x256xf32>
    %13 = vector.broadcast %12 : vector<1x256xf32> to vector<128x256xf32>
    %14 = arith.addf %11, %13 : vector<128x256xf32>
    %cst_11 = arith.constant 0.000000e+00 : f32
    %15 = vector.broadcast %cst_11 : f32 to vector<128x256xf32>
    %16 = arith.maximumf %14, %15 : vector<128x256xf32>
    %17 = arith.truncf %16 : vector<128x256xf32> to vector<128x256xbf16>
    %c0_12 = arith.constant 0 : index
    %c0_13 = arith.constant 0 : index
    %18 = vector.load %arg6[%c0_12, %c0_13] : memref<256x512xbf16, #tpu.memory_space<vmem>>, vector<256x512xbf16>
    %cst_14 = arith.constant dense<0.000000e+00> : vector<128x512xf32>
    %19 = tpu.matmul %17, %18, %cst_14 {dimension_numbers = #tpu.dot_dimension_numbers<[1], [0], [0], [1], [0, 0, 1, 1], [], []>} : vector<128x256xbf16>, vector<256x512xbf16>, vector<128x512xf32> -> vector<128x512xf32>
    %c0_15 = arith.constant 0 : index
    %c0_16 = arith.constant 0 : index
    %20 = vector.load %arg7[%c0_15, %c0_16] : memref<1x512xf32, #tpu.memory_space<vmem>>, vector<1x512xf32>
    %21 = vector.broadcast %20 : vector<1x512xf32> to vector<128x512xf32>
    %22 = arith.addf %19, %21 : vector<128x512xf32>
    %cst_17 = arith.constant 0.000000e+00 : f32
    %23 = vector.broadcast %cst_17 : f32 to vector<128x512xf32>
    %24 = arith.maximumf %22, %23 : vector<128x512xf32>
    %25 = arith.truncf %24 : vector<128x512xf32> to vector<128x512xbf16>
    %c0_18 = arith.constant 0 : index
    %c0_19 = arith.constant 0 : index
    %26 = vector.load %arg8[%c0_18, %c0_19] : memref<512x128xbf16, #tpu.memory_space<vmem>>, vector<512x128xbf16>
    %cst_20 = arith.constant dense<0.000000e+00> : vector<128x128xf32>
    %27 = tpu.matmul %25, %26, %cst_20 {dimension_numbers = #tpu.dot_dimension_numbers<[1], [0], [0], [1], [0, 0, 1, 1], [], []>} : vector<128x512xbf16>, vector<512x128xbf16>, vector<128x128xf32> -> vector<128x128xf32>
    %c0_21 = arith.constant 0 : index
    %c0_22 = arith.constant 0 : index
    %28 = vector.load %arg9[%c0_21, %c0_22] : memref<1x128xf32, #tpu.memory_space<vmem>>, vector<1x128xf32>
    %29 = vector.broadcast %28 : vector<1x128xf32> to vector<128x128xf32>
    %30 = arith.addf %27, %29 : vector<128x128xf32>
    %cst_23 = arith.constant 0.000000e+00 : f32
    %31 = vector.broadcast %cst_23 : f32 to vector<128x128xf32>
    %32 = arith.maximumf %30, %31 : vector<128x128xf32>
    %33 = arith.truncf %32 : vector<128x128xf32> to vector<128x128xbf16>
    %c0_24 = arith.constant 0 : index
    %c0_25 = arith.constant 0 : index
    %34 = vector.load %arg10[%c0_24, %c0_25] : memref<128x128xbf16, #tpu.memory_space<vmem>>, vector<128x128xbf16>
    %cst_26 = arith.constant dense<0.000000e+00> : vector<128x128xf32>
    %35 = tpu.matmul %33, %34, %cst_26 {dimension_numbers = #tpu.dot_dimension_numbers<[1], [0], [0], [1], [0, 0, 1, 1], [], []>} : vector<128x128xbf16>, vector<128x128xbf16>, vector<128x128xf32> -> vector<128x128xf32>
    %c0_27 = arith.constant 0 : index
    %c0_28 = arith.constant 0 : index
    %36 = vector.load %arg11[%c0_27, %c0_28] : memref<1x128xf32, #tpu.memory_space<vmem>>, vector<1x128xf32>
    %37 = vector.broadcast %36 : vector<1x128xf32> to vector<128x128xf32>
    %38 = arith.addf %35, %37 : vector<128x128xf32>
    %c0_29 = arith.constant 0 : index
    %c0_30 = arith.constant 0 : index
    %39 = vector.load %arg12[%c0_29, %c0_30] : memref<128x128xf32, #tpu.memory_space<vmem>>, vector<128x128xf32>
    tpu.vector_store %arg12[%c0_29, %c0_30], %38 {strides = array<i32>} : memref<128x128xf32, #tpu.memory_space<vmem>>, vector<128x128xf32>,
    return
  }
  func.func @transform_0(%arg0: i32) -> (i32, i32) {
    %c0_i32 = arith.constant 0 : i32
    %c0_i32_0 = arith.constant 0 : i32
    return %arg0, %c0_i32 : i32, i32
  }
  func.func @transform_1(%arg0: i32) -> (i32, i32) {
    %c0_i32 = arith.constant 0 : i32
    %c0_i32_0 = arith.constant 0 : i32
    %c0_i32_1 = arith.constant 0 : i32
    return %c0_i32, %c0_i32_0 : i32, i32
  }
  func.func @transform_2(%arg0: i32) -> (i32, i32) {
    %c0_i32 = arith.constant 0 : i32
    %c0_i32_0 = arith.constant 0 : i32
    %c0_i32_1 = arith.constant 0 : i32
    return %c0_i32, %c0_i32_0 : i32, i32
  }
  func.func @transform_3(%arg0: i32) -> (i32, i32) {
    %c0_i32 = arith.constant 0 : i32
    %c0_i32_0 = arith.constant 0 : i32
    %c0_i32_1 = arith.constant 0 : i32
    return %c0_i32, %c0_i32_0 : i32, i32
  }
  func.func @transform_4(%arg0: i32) -> (i32, i32) {
    %c0_i32 = arith.constant 0 : i32
    %c0_i32_0 = arith.constant 0 : i32
    %c0_i32_1 = arith.constant 0 : i32
    return %c0_i32, %c0_i32_0 : i32, i32
  }
  func.func @transform_5(%arg0: i32) -> (i32, i32) {
    %c0_i32 = arith.constant 0 : i32
    %c0_i32_0 = arith.constant 0 : i32
    %c0_i32_1 = arith.constant 0 : i32
    return %c0_i32, %c0_i32_0 : i32, i32
  }
  func.func @transform_6(%arg0: i32) -> (i32, i32) {
    %c0_i32 = arith.constant 0 : i32
    %c0_i32_0 = arith.constant 0 : i32
    %c0_i32_1 = arith.constant 0 : i32
    return %c0_i32, %c0_i32_0 : i32, i32
  }
  func.func @transform_7(%arg0: i32) -> (i32, i32) {
    %c0_i32 = arith.constant 0 : i32
    %c0_i32_0 = arith.constant 0 : i32
    %c0_i32_1 = arith.constant 0 : i32
    return %c0_i32, %c0_i32_0 : i32, i32
  }
  func.func @transform_8(%arg0: i32) -> (i32, i32) {
    %c0_i32 = arith.constant 0 : i32
    %c0_i32_0 = arith.constant 0 : i32
    %c0_i32_1 = arith.constant 0 : i32
    return %c0_i32, %c0_i32_0 : i32, i32
  }
  func.func @transform_9(%arg0: i32) -> (i32, i32) {
    %c0_i32 = arith.constant 0 : i32
    %c0_i32_0 = arith.constant 0 : i32
    %c0_i32_1 = arith.constant 0 : i32
    return %c0_i32, %c0_i32_0 : i32, i32
  }
  func.func @transform_10(%arg0: i32) -> (i32, i32) {
    %c0_i32 = arith.constant 0 : i32
    %c0_i32_0 = arith.constant 0 : i32
    %c0_i32_1 = arith.constant 0 : i32
    return %c0_i32, %c0_i32_0 : i32, i32
  }
  func.func @transform_11(%arg0: i32) -> (i32, i32) {
    %c0_i32 = arith.constant 0 : i32
    %c0_i32_0 = arith.constant 0 : i32
    return %arg0, %c0_i32 : i32, i32
  }
}

</mosaic_0001>

<llo_original>
// kernel: tpu_custom_call.1
$region0: #{tpu_custom_call.1}
  #allocation0 [shape = 'u32[]', space=smem, size = 0x4, offset = 0x4, fixed_abs, tag = 'smem constant byte address 0x4 - core index']
  #allocation1 [shape = 'u32[144,128]{1,0:T(1,128)}', space=vmem, size = 0x12000, scoped, tag = 'internal scratch']
  %s0 = inlined_call_operand.hbm [shape: f32[200,960], index: 0, kind: input, shape index: {}]
  %s1 = inlined_call_operand.hbm [shape: bf16[960,128], index: 1, kind: input, shape index: {}]
  %s2 = inlined_call_operand.vmem [shape: f32[1,128], index: 2, kind: input, shape index: {}]
  %s3 = inlined_call_operand.hbm [shape: bf16[128,256], index: 3, kind: input, shape index: {}]
  %s4 = inlined_call_operand.vmem [shape: f32[1,256], index: 4, kind: input, shape index: {}]
  %s5 = inlined_call_operand.hbm [shape: bf16[256,512], index: 5, kind: input, shape index: {}]
  %s6 = inlined_call_operand.vmem [shape: f32[1,512], index: 6, kind: input, shape index: {}]
  %s7 = inlined_call_operand.hbm [shape: bf16[512,128], index: 7, kind: input, shape index: {}]
  %s8 = inlined_call_operand.vmem [shape: f32[1,128], index: 8, kind: input, shape index: {}]
  %s9 = inlined_call_operand.hbm [shape: bf16[128,128], index: 9, kind: input, shape index: {}]
  %s10 = inlined_call_operand.vmem [shape: f32[1,128], index: 10, kind: input, shape index: {}]
  %s11 = inlined_call_operand.hbm [shape: f32[200,128], index: 11, kind: output, shape index: {}]
  %s12 = sld [smem:[#allocation0]]
  $region101: #{tpu_custom_call.1} parent=0
    _
  %s14 = ssub.s32 1, %s12
  %s15 = scalar_select 0, %s14, %s12
  $region1: #{tpu_custom_call.1} parent=0
    #allocation2 [shape = 'u8[1048576]{0}', space=vmem, size = 0x100000, scoped, tag = 'input window, operand 0']
    #allocation3 [shape = 's32[2]{0}', space=sflag, size = 0x8, scoped, tag = 'scoped memory for tpu_custom_call.1']
    #allocation4 [shape = 's32[2]{0}', space=sflag, size = 0x8, scoped, tag = 'scoped memory for tpu_custom_call.1']
    #allocation5 [shape = 'u8[245760]{0}', space=vmem, size = 0x3c000, scoped, tag = 'input window, operand 1, single buffered']
    #allocation6 [shape = 's32[1]{0}', space=sflag, size = 0x4, scoped, tag = 'scoped memory for tpu_custom_call.1']
    #allocation7 [shape = 'u8[65536]{0}', space=vmem, size = 0x10000, scoped, tag = 'input window, operand 3, single buffered']
    #allocation8 [shape = 'u8[262144]{0}', space=vmem, size = 0x40000, scoped, tag = 'input window, operand 5, single buffered']
    #allocation9 [shape = 's32[1]{0}', space=sflag, size = 0x4, scoped, tag = 'scoped memory for tpu_custom_call.1']
    #allocation10 [shape = 'u8[131072]{0}', space=vmem, size = 0x20000, scoped, tag = 'input window, operand 7, single buffered']
    #allocation11 [shape = 'u8[32768]{0}', space=vmem, size = 0x8000, scoped, tag = 'input window, operand 9, single buffered']
    #allocation12 [shape = 's32[1]{0}', space=sflag, size = 0x4, scoped, tag = 'scoped memory for tpu_custom_call.1']
    #allocation13 [shape = 'u8[131072]{0}', space=vmem, size = 0x20000, scoped, tag = 'output window, operand 0']
    %16 = vsyncpa [#allocation3], 0
    %s17 = scalar_lea.sflag [#allocation3], 1
    %18 = vsyncpa %s17, 0
    %19 = vsyncpa [#allocation6], 0
    %20 = vsyncpa [#allocation9], 0
    %21 = vsyncpa [#allocation12], 0
    %22 = vsyncpa [#allocation4], 0
    %s23 = scalar_lea.sflag [#allocation4], 1
    %24 = vsyncpa %s23, 0
    loop: start=0, step=1, limit=4
    $region2: #{tpu_custom_call.1} parent=1 // loop_pre_header
      _
    $region3: #{tpu_custom_call.1} parent=1 // loop_header
      %s26 = sphi 0, %s30
      %p27 = scmp.ge.s32.totalorder %s26, 4
      %s36 = sphi 0, %s38
      %s39 = sphi 0, %s36
      %s40 = sphi 0, %s39
      %s56 = sphi 0, %s40
      %s60 = sphi 0, %s60
      %s62 = sphi 0, %s60
      %s63 = sphi 0, %s62
      %s77 = sphi 0, %s63
      %s81 = sphi 0, %s81
      %s83 = sphi 0, %s81
      %s84 = sphi 0, %s83
      %s98 = sphi 0, %s84
      %s102 = sphi 0, %s102
      %s104 = sphi 0, %s102
      %s105 = sphi 0, %s104
      %s119 = sphi 0, %s105
      %s123 = sphi 0, %s123
      %s125 = sphi 0, %s123
      %s126 = sphi 0, %s125
      %s140 = sphi 0, %s126
      %s144 = sphi 0, %s144
      %s146 = sphi 0, %s144
      %s147 = sphi 0, %s146
      %s161 = sphi 0, %s147
      %s165 = sphi 0, %s165
      %s167 = sphi 0, %s165
      %s168 = sphi 0, %s167
      %s182 = sphi 0, %s168
      %s186 = sphi 0, %s186
      %s188 = sphi 0, %s186
      %s189 = sphi 0, %s188
      %s203 = sphi 0, %s189
      %s207 = sphi 0, %s207
      %s209 = sphi 0, %s207
      %s210 = sphi 0, %s209
      %s224 = sphi 0, %s210
      %s228 = sphi 0, %s228
      %s230 = sphi 0, %s228
      %s231 = sphi 0, %s230
      %s245 = sphi 0, %s231
      %s249 = sphi 0, %s249
      %s251 = sphi 0, %s249
      %s252 = sphi 0, %s251
      %s266 = sphi 0, %s252
      %s272 = sphi 0, %s274
      %s275 = sphi 0, %s272
      %s276 = sphi 0, %s275
      %s292 = sphi 0, %s276
    $region4: #{tpu_custom_call.1} parent=1 // loop_header_branch
      %29 = sbr.rel (%p27) target = $region8
    $region5: #{tpu_custom_call.1} parent=1 // loop_body
      %s31 = ssub.s32 %s26, 1
      %s32 = ssub.s32 %s26, 2
      %s33 = sadd.s32 %s26, 1
      %s34 = ssub.s32 %s26, %s33
      %p35 = scmp.eq.s32.totalorder %s34, 0
      %s37 = sadd.s32 %s36, 1
      %s38 = scalar_select %p35, %s36, %s37
      %p41 = pneg %p35
      %p42 = scmp.eq.s32.totalorder %s26, 1
      %p43 = por %p41, %p42
      %p44 = scmp.ne.s32.totalorder %s36, %s39
      %p45 = scmp.eq.s32.totalorder %s26, 0
      %p46 = por %p44, %p45
      %p47 = scmp.ne.s32.totalorder %s36, %s39
      %p48 = scmp.eq.s32.totalorder %s31, 1
      %p49 = por %p47, %p48
      %p50 = scmp.ne.s32.totalorder %s39, %s40
      %p51 = scmp.eq.s32.totalorder %s31, 0
      %p52 = por %p50, %p51
      %p53 = scmp.ne.s32.totalorder %s39, %s40
      %p54 = scmp.eq.s32.totalorder %s32, 1
      %p55 = por %p53, %p54
      %p57 = scmp.ne.s32.totalorder %s40, %s56
      %p58 = scmp.eq.s32.totalorder %s32, 0
      %p59 = por %p57, %p58
      %s61 = sadd.s32 %s60, 1
      %p64 = scmp.eq.s32.totalorder %s26, 1
      %p65 = scmp.ne.s32.totalorder %s60, %s62
      %p66 = scmp.eq.s32.totalorder %s26, 0
      %p67 = por %p65, %p66
      %p68 = scmp.ne.s32.totalorder %s60, %s62
      %p69 = scmp.eq.s32.totalorder %s31, 1
      %p70 = por %p68, %p69
      %p71 = scmp.ne.s32.totalorder %s62, %s63
      %p72 = scmp.eq.s32.totalorder %s31, 0
      %p73 = por %p71, %p72
      %p74 = scmp.ne.s32.totalorder %s62, %s63
      %p75 = scmp.eq.s32.totalorder %s32, 1
      %p76 = por %p74, %p75
      %p78 = scmp.ne.s32.totalorder %s63, %s77
      %p79 = scmp.eq.s32.totalorder %s32, 0
      %p80 = por %p78, %p79
      %s82 = sadd.s32 %s81, 1
      %p85 = scmp.eq.s32.totalorder %s26, 1
      %p86 = scmp.ne.s32.totalorder %s81, %s83
      %p87 = scmp.eq.s32.totalorder %s26, 0
      %p88 = por %p86, %p87
      %p89 = scmp.ne.s32.totalorder %s81, %s83
      %p90 = scmp.eq.s32.totalorder %s31, 1
      %p91 = por %p89, %p90
      %p92 = scmp.ne.s32.totalorder %s83, %s84
      %p93 = scmp.eq.s32.totalorder %s31, 0
      %p94 = por %p92, %p93
      %p95 = scmp.ne.s32.totalorder %s83, %s84
      %p96 = scmp.eq.s32.totalorder %s32, 1
      %p97 = por %p95, %p96
      %p99 = scmp.ne.s32.totalorder %s84, %s98
      %p100 = scmp.eq.s32.totalorder %s32, 0
      %p101 = por %p99, %p100
      %s103 = sadd.s32 %s102, 1
      %p106 = scmp.eq.s32.totalorder %s26, 1
      %p107 = scmp.ne.s32.totalorder %s102, %s104
      %p108 = scmp.eq.s32.totalorder %s26, 0
      %p109 = por %p107, %p108
      %p110 = scmp.ne.s32.totalorder %s102, %s104
      %p111 = scmp.eq.s32.totalorder %s31, 1
      %p112 = por %p110, %p111
      %p113 = scmp.ne.s32.totalorder %s104, %s105
      %p114 = scmp.eq.s32.totalorder %s31, 0
      %p115 = por %p113, %p114
      %p116 = scmp.ne.s32.totalorder %s104, %s105
      %p117 = scmp.eq.s32.totalorder %s32, 1
      %p118 = por %p116, %p117
      %p120 = scmp.ne.s32.totalorder %s105, %s119
      %p121 = scmp.eq.s32.totalorder %s32, 0
      %p122 = por %p120, %p121
      %s124 = sadd.s32 %s123, 1
      %p127 = scmp.eq.s32.totalorder %s26, 1
      %p128 = scmp.ne.s32.totalorder %s123, %s125
      %p129 = scmp.eq.s32.totalorder %s26, 0
      %p130 = por %p128, %p129
      %p131 = scmp.ne.s32.totalorder %s123, %s125
      %p132 = scmp.eq.s32.totalorder %s31, 1
      %p133 = por %p131, %p132
      %p134 = scmp.ne.s32.totalorder %s125, %s126
      %p135 = scmp.eq.s32.totalorder %s31, 0
      %p136 = por %p134, %p135
      %p137 = scmp.ne.s32.totalorder %s125, %s126
      %p138 = scmp.eq.s32.totalorder %s32, 1
      %p139 = por %p137, %p138
      %p141 = scmp.ne.s32.totalorder %s126, %s140
      %p142 = scmp.eq.s32.totalorder %s32, 0
      %p143 = por %p141, %p142
      %s145 = sadd.s32 %s144, 1
      %p148 = scmp.eq.s32.totalorder %s26, 1
      %p149 = scmp.ne.s32.totalorder %s144, %s146
      %p150 = scmp.eq.s32.totalorder %s26, 0
      %p151 = por %p149, %p150
      %p152 = scmp.ne.s32.totalorder %s144, %s146
      %p153 = scmp.eq.s32.totalorder %s31, 1
      %p154 = por %p152, %p153
      %p155 = scmp.ne.s32.totalorder %s146, %s147
      %p156 = scmp.eq.s32.totalorder %s31, 0
      %p157 = por %p155, %p156
      %p158 = scmp.ne.s32.totalorder %s146, %s147
      %p159 = scmp.eq.s32.totalorder %s32, 1
      %p160 = por %p158, %p159
      %p162 = scmp.ne.s32.totalorder %s147, %s161
      %p163 = scmp.eq.s32.totalorder %s32, 0
      %p164 = por %p162, %p163
      %s166 = sadd.s32 %s165, 1
      %p169 = scmp.eq.s32.totalorder %s26, 1
      %p170 = scmp.ne.s32.totalorder %s165, %s167
      %p171 = scmp.eq.s32.totalorder %s26, 0
      %p172 = por %p170, %p171
      %p173 = scmp.ne.s32.totalorder %s165, %s167
      %p174 = scmp.eq.s32.totalorder %s31, 1
      %p175 = por %p173, %p174
      %p176 = scmp.ne.s32.totalorder %s167, %s168
      %p177 = scmp.eq.s32.totalorder %s31, 0
      %p178 = por %p176, %p177
      %p179 = scmp.ne.s32.totalorder %s167, %s168
      %p180 = scmp.eq.s32.totalorder %s32, 1
      %p181 = por %p179, %p180
      %p183 = scmp.ne.s32.totalorder %s168, %s182
      %p184 = scmp.eq.s32.totalorder %s32, 0
      %p185 = por %p183, %p184
      %s187 = sadd.s32 %s186, 1
      %p190 = scmp.eq.s32.totalorder %s26, 1
      %p191 = scmp.ne.s32.totalorder %s186, %s188
      %p192 = scmp.eq.s32.totalorder %s26, 0
      %p193 = por %p191, %p192
      %p194 = scmp.ne.s32.totalorder %s186, %s188
      %p195 = scmp.eq.s32.totalorder %s31, 1
      %p196 = por %p194, %p195
      %p197 = scmp.ne.s32.totalorder %s188, %s189
      %p198 = scmp.eq.s32.totalorder %s31, 0
      %p199 = por %p197, %p198
      %p200 = scmp.ne.s32.totalorder %s188, %s189
      %p201 = scmp.eq.s32.totalorder %s32, 1
      %p202 = por %p200, %p201
      %p204 = scmp.ne.s32.totalorder %s189, %s203
      %p205 = scmp.eq.s32.totalorder %s32, 0
      %p206 = por %p204, %p205
      %s208 = sadd.s32 %s207, 1
      %p211 = scmp.eq.s32.totalorder %s26, 1
      %p212 = scmp.ne.s32.totalorder %s207, %s209
      %p213 = scmp.eq.s32.totalorder %s26, 0
      %p214 = por %p212, %p213
      %p215 = scmp.ne.s32.totalorder %s207, %s209
      %p216 = scmp.eq.s32.totalorder %s31, 1
      %p217 = por %p215, %p216
      %p218 = scmp.ne.s32.totalorder %s209, %s210
      %p219 = scmp.eq.s32.totalorder %s31, 0
      %p220 = por %p218, %p219
      %p221 = scmp.ne.s32.totalorder %s209, %s210
      %p222 = scmp.eq.s32.totalorder %s32, 1
      %p223 = por %p221, %p222
      %p225 = scmp.ne.s32.totalorder %s210, %s224
      %p226 = scmp.eq.s32.totalorder %s32, 0
      %p227 = por %p225, %p226
      %s229 = sadd.s32 %s228, 1
      %p232 = scmp.eq.s32.totalorder %s26, 1
      %p233 = scmp.ne.s32.totalorder %s228, %s230
      %p234 = scmp.eq.s32.totalorder %s26, 0
      %p235 = por %p233, %p234
      %p236 = scmp.ne.s32.totalorder %s228, %s230
      %p237 = scmp.eq.s32.totalorder %s31, 1
      %p238 = por %p236, %p237
      %p239 = scmp.ne.s32.totalorder %s230, %s231
      %p240 = scmp.eq.s32.totalorder %s31, 0
      %p241 = por %p239, %p240
      %p242 = scmp.ne.s32.totalorder %s230, %s231
      %p243 = scmp.eq.s32.totalorder %s32, 1
      %p244 = por %p242, %p243
      %p246 = scmp.ne.s32.totalorder %s231, %s245
      %p247 = scmp.eq.s32.totalorder %s32, 0
      %p248 = por %p246, %p247
      %s250 = sadd.s32 %s249, 1
      %p253 = scmp.eq.s32.totalorder %s26, 1
      %p254 = scmp.ne.s32.totalorder %s249, %s251
      %p255 = scmp.eq.s32.totalorder %s26, 0
      %p256 = por %p254, %p255
      %p257 = scmp.ne.s32.totalorder %s249, %s251
      %p258 = scmp.eq.s32.totalorder %s31, 1
      %p259 = por %p257, %p258
      %p260 = scmp.ne.s32.totalorder %s251, %s252
      %p261 = scmp.eq.s32.totalorder %s31, 0
      %p262 = por %p260, %p261
      %p263 = scmp.ne.s32.totalorder %s251, %s252
      %p264 = scmp.eq.s32.totalorder %s32, 1
      %p265 = por %p263, %p264
      %p267 = scmp.ne.s32.totalorder %s252, %s266
      %p268 = scmp.eq.s32.totalorder %s32, 0
      %p269 = por %p267, %p268
      %s270 = ssub.s32 %s26, %s33
      %p271 = scmp.eq.s32.totalorder %s270, 0
      %s273 = sadd.s32 %s272, 1
      %s274 = scalar_select %p271, %s272, %s273
      %p277 = pneg %p271
      %p278 = scmp.eq.s32.totalorder %s26, 1
      %p279 = por %p277, %p278
      %p280 = scmp.ne.s32.totalorder %s272, %s275
      %p281 = scmp.eq.s32.totalorder %s26, 0
      %p282 = por %p280, %p281
      %p283 = scmp.ne.s32.totalorder %s272, %s275
      %p284 = scmp.eq.s32.totalorder %s31, 1
      %p285 = por %p283, %p284
      %p286 = scmp.ne.s32.totalorder %s275, %s276
      %p287 = scmp.eq.s32.totalorder %s31, 0
      %p288 = por %p286, %p287
      %p289 = scmp.ne.s32.totalorder %s275, %s276
      %p290 = scmp.eq.s32.totalorder %s32, 1
      %p291 = por %p289, %p290
      %p293 = scmp.ne.s32.totalorder %s276, %s292
      %p294 = scmp.eq.s32.totalorder %s32, 0
      %p295 = por %p293, %p294
      %p296 = scmp.le.s32.totalorder 1, %s26
      %p297 = scmp.lt.s32.totalorder %s26, 3
      %p298 = pnand %p296, %p297
      %p299 = pneg %p298
      // Predicated region
      $region9: #{tpu_custom_call.1} parent=5 // pred_check
        _
      $region10: #{tpu_custom_call.1} parent=5 // pred_check_branch
        %301 = sbr.rel (%p298) target = $region12
      $region11: #{tpu_custom_call.1} parent=5 // pred_region
        %s302 = ssub.s32 %s26, 1
        // Predicated region
        $region13: #{tpu_custom_call.1} parent=11 // pred_check
          %p303 = pneg %p73
        $region14: #{tpu_custom_call.1} parent=11 // pred_check_branch
          %305 = sbr.rel (%p303) target = $region16
        $region15: #{tpu_custom_call.1} parent=11 // pred_region
          %s307 = ssub.s32 7680, 7680
          %308 = vsyncadd [#allocation6], %s307
          %s309 = sshll.u32 [#allocation5], 4
          %s310 = int_to_ptr.vmem [resolvable:$true] %s309
          %315 = dma.hbm_to_vmem [thread:$0]  %s1, 7680, %s310, [#allocation6], 64, 64, 4
        $region16: #{tpu_custom_call.1} parent=11 // pred_fallthru
          _
        // Predicated region
        $region17: #{tpu_custom_call.1} parent=11 // pred_check
          %p316 = pneg %p94
        $region18: #{tpu_custom_call.1} parent=11 // pred_check_branch
          %318 = sbr.rel (%p316) target = $region20
        $region19: #{tpu_custom_call.1} parent=11 // pred_region
          _
        $region20: #{tpu_custom_call.1} parent=11 // pred_fallthru
          _
        // Predicated region
        $region21: #{tpu_custom_call.1} parent=11 // pred_check
          %p319 = pneg %p115
        $region22: #{tpu_custom_call.1} parent=11 // pred_check_branch
          %321 = sbr.rel (%p319) target = $region24
        $region23: #{tpu_custom_call.1} parent=11 // pred_region
          %s323 = ssub.s32 2048, 2048
          %324 = vsyncadd [#allocation6], %s323
          %s325 = sshll.u32 [#allocation7], 4
          %s326 = int_to_ptr.vmem [resolvable:$true] %s325
          %331 = dma.hbm_to_vmem [thread:$0]  %s3, 2048, %s326, [#allocation6], 128, 128, 8
        $region24: #{tpu_custom_call.1} parent=11 // pred_fallthru
          _
        // Predicated region
        $region25: #{tpu_custom_call.1} parent=11 // pred_check
          %p332 = pneg %p136
        $region26: #{tpu_custom_call.1} parent=11 // pred_check_branch
          %334 = sbr.rel (%p332) target = $region28
        $region27: #{tpu_custom_call.1} parent=11 // pred_region
          _
        $region28: #{tpu_custom_call.1} parent=11 // pred_fallthru
          _
        // Predicated region
        $region29: #{tpu_custom_call.1} parent=11 // pred_check
          %p335 = pneg %p157
        $region30: #{tpu_custom_call.1} parent=11 // pred_check_branch
          %337 = sbr.rel (%p335) target = $region32
        $region31: #{tpu_custom_call.1} parent=11 // pred_region
          %s339 = ssub.s32 8192, 8192
          %340 = vsyncadd [#allocation9], %s339
          %s341 = sshll.u32 [#allocation8], 4
          %s342 = int_to_ptr.vmem [resolvable:$true] %s341
          %347 = dma.hbm_to_vmem [thread:$0]  %s5, 8192, %s342, [#allocation9], 256, 256, 16
        $region32: #{tpu_custom_call.1} parent=11 // pred_fallthru
          _
        // Predicated region
        $region33: #{tpu_custom_call.1} parent=11 // pred_check
          %p348 = pneg %p178
        $region34: #{tpu_custom_call.1} parent=11 // pred_check_branch
          %350 = sbr.rel (%p348) target = $region36
        $region35: #{tpu_custom_call.1} parent=11 // pred_region
          _
        $region36: #{tpu_custom_call.1} parent=11 // pred_fallthru
          _
        // Predicated region
        $region37: #{tpu_custom_call.1} parent=11 // pred_check
          %p351 = pneg %p199
        $region38: #{tpu_custom_call.1} parent=11 // pred_check_branch
          %353 = sbr.rel (%p351) target = $region40
        $region39: #{tpu_custom_call.1} parent=11 // pred_region
          %s355 = ssub.s32 4096, 4096
          %356 = vsyncadd [#allocation9], %s355
          %s357 = sshll.u32 [#allocation10], 4
          %s358 = int_to_ptr.vmem [resolvable:$true] %s357
          %363 = dma.hbm_to_vmem [thread:$0]  %s7, 4096, %s358, [#allocation9], 64, 64, 4
        $region40: #{tpu_custom_call.1} parent=11 // pred_fallthru
          _
        // Predicated region
        $region41: #{tpu_custom_call.1} parent=11 // pred_check
          %p364 = pneg %p220
        $region42: #{tpu_custom_call.1} parent=11 // pred_check_branch
          %366 = sbr.rel (%p364) target = $region44
        $region43: #{tpu_custom_call.1} parent=11 // pred_region
          _
        $region44: #{tpu_custom_call.1} parent=11 // pred_fallthru
          _
        // Predicated region
        $region45: #{tpu_custom_call.1} parent=11 // pred_check
          %p367 = pneg %p241
        $region46: #{tpu_custom_call.1} parent=11 // pred_check_branch
          %369 = sbr.rel (%p367) target = $region48
        $region47: #{tpu_custom_call.1} parent=11 // pred_region
          %s371 = ssub.s32 1024, 1024
          %372 = vsyncadd [#allocation12], %s371
          %s373 = sshll.u32 [#allocation11], 4
          %s374 = int_to_ptr.vmem [resolvable:$true] %s373
          %379 = dma.hbm_to_vmem [thread:$0]  %s9, 1024, %s374, [#allocation12], 64, 64, 4
        $region48: #{tpu_custom_call.1} parent=11 // pred_fallthru
          _
        // Predicated region
        $region49: #{tpu_custom_call.1} parent=11 // pred_check
          %p380 = pneg %p262
        $region50: #{tpu_custom_call.1} parent=11 // pred_check_branch
          %382 = sbr.rel (%p380) target = $region52
        $region51: #{tpu_custom_call.1} parent=11 // pred_region
          _
        $region52: #{tpu_custom_call.1} parent=11 // pred_fallthru
          _
      $region12: #{tpu_custom_call.1} parent=5 // pred_fallthru
        _
      %p383 = scmp.lt.s32.totalorder %s26, 2
      // Predicated region
      $region53: #{tpu_custom_call.1} parent=5 // pred_check
        %p384 = pneg %p383
      $region54: #{tpu_custom_call.1} parent=5 // pred_check_branch
        %386 = sbr.rel (%p384) target = $region56
      $region55: #{tpu_custom_call.1} parent=5 // pred_region
        // Predicated region
        $region57: #{tpu_custom_call.1} parent=55 // pred_check
          %p387 = pneg %p46
        $region58: #{tpu_custom_call.1} parent=55 // pred_check_branch
          %389 = sbr.rel (%p387) target = $region60
        $region59: #{tpu_custom_call.1} parent=55 // pred_region
          %s390 = sand.u32 %s36, 1
          %s391 = scalar_lea.sflag [#allocation3], %s390
          %s392 = sand.u32 %s36, 1
          %s393 = smul.addr %s392, 1024
          %s394 = scalar_lea.vmem [#allocation2], %s393
          %s395 = smul.u32 16, %s26
          %s396 = ssub.s32 25, %s395
          %p397 = scmp.lt.s32.totalorder %s396, 16
          %s398 = scalar_select %p397, %s396, 16
          %s399 = smul.u32 128, %s398
          %s400 = smul.u32 %s399, 8
          %s402 = ssub.s32 16384, %s400
          %403 = vsyncadd %s391, %s402
          %p404 = scmp.ne.s32.totalorder 0, %s400
          %s405 = smul.addr %s395, 8
          %s406 = smul.addr %s405, 128
          %s407 = scalar_lea.hbm %s0, %s406
          %s408 = smul.u32 64, %s398
          %s409 = sshll.u32 %s394, 4
          %s410 = int_to_ptr.vmem [resolvable:$true] %s409
          %s411 = sshll.u32 %s408, 4
          %415 = dma.hbm_to_vmem [thread:$0]  (%p404), %s407, %s411, %s410, %s391, 1024, 1024, 64
        $region60: #{tpu_custom_call.1} parent=55 // pred_fallthru
          _
      $region56: #{tpu_custom_call.1} parent=5 // pred_fallthru
        _
      %p416 = scmp.le.s32.totalorder 1, %s26
      %p417 = scmp.lt.s32.totalorder %s26, 3
      %p418 = pnand %p416, %p417
      %p419 = pneg %p418
      // Predicated region
      $region61: #{tpu_custom_call.1} parent=5 // pred_check
        _
      $region62: #{tpu_custom_call.1} parent=5 // pred_check_branch
        %421 = sbr.rel (%p418) target = $region64
      $region63: #{tpu_custom_call.1} parent=5 // pred_region
        %s422 = ssub.s32 %s26, 1
        %s423 = sand.u32 %s39, 1
        %s424 = scalar_lea.sflag [#allocation3], %s423
        %s425 = sand.u32 %s39, 1
        %s426 = smul.addr %s425, 1024
        %s427 = scalar_lea.vmem [#allocation2], %s426
        // Predicated region
        $region65: #{tpu_custom_call.1} parent=63 // pred_check
          %p428 = pneg %p52
        $region66: #{tpu_custom_call.1} parent=63 // pred_check_branch
          %430 = sbr.rel (%p428) target = $region68
        $region67: #{tpu_custom_call.1} parent=63 // pred_region
          %431 = dma.done %s424, 16384
        $region68: #{tpu_custom_call.1} parent=63 // pred_fallthru
          _
        // Predicated region
        $region69: #{tpu_custom_call.1} parent=63 // pred_check
          %p432 = pneg %p73
        $region70: #{tpu_custom_call.1} parent=63 // pred_check_branch
          %434 = sbr.rel (%p432) target = $region72
        $region71: #{tpu_custom_call.1} parent=63 // pred_region
          %435 = dma.done [#allocation6], 7680
        $region72: #{tpu_custom_call.1} parent=63 // pred_fallthru
          _
        // Predicated region
        $region73: #{tpu_custom_call.1} parent=63 // pred_check
          %p436 = pneg %p115
        $region74: #{tpu_custom_call.1} parent=63 // pred_check_branch
          %438 = sbr.rel (%p436) target = $region76
        $region75: #{tpu_custom_call.1} parent=63 // pred_region
          %439 = dma.done [#allocation6], 2048
        $region76: #{tpu_custom_call.1} parent=63 // pred_fallthru
          _
        // Predicated region
        $region77: #{tpu_custom_call.1} parent=63 // pred_check
          %p440 = pneg %p157
        $region78: #{tpu_custom_call.1} parent=63 // pred_check_branch
          %442 = sbr.rel (%p440) target = $region80
        $region79: #{tpu_custom_call.1} parent=63 // pred_region
          %443 = dma.done [#allocation9], 8192
        $region80: #{tpu_custom_call.1} parent=63 // pred_fallthru
          _
        // Predicated region
        $region81: #{tpu_custom_call.1} parent=63 // pred_check
          %p444 = pneg %p199
        $region82: #{tpu_custom_call.1} parent=63 // pred_check_branch
          %446 = sbr.rel (%p444) target = $region84
        $region83: #{tpu_custom_call.1} parent=63 // pred_region
          %447 = dma.done [#allocation9], 4096
        $region84: #{tpu_custom_call.1} parent=63 // pred_fallthru
          _
        // Predicated region
        $region85: #{tpu_custom_call.1} parent=63 // pred_check
          %p448 = pneg %p241
        $region86: #{tpu_custom_call.1} parent=63 // pred_check_branch
          %450 = sbr.rel (%p448) target = $region88
        $region87: #{tpu_custom_call.1} parent=63 // pred_region
          %451 = dma.done [#allocation12], 1024
        $region88: #{tpu_custom_call.1} parent=63 // pred_fallthru
          _
        %s452 = sand.u32 %s39, 1
        %s453 = scalar_lea.sflag [#allocation3], %s452
        %s454 = sand.u32 %s39, 1
        %s455 = smul.addr %s454, 1024
        %s456 = scalar_lea.vmem [#allocation2], %s455
        %p457 = pneg %p52
        %p458 = pneg %p49
        %p459 = pneg %p73
        %p460 = pneg %p70
        %p461 = pneg %p94
        %p462 = pneg %p91
        %p463 = pneg %p115
        %p464 = pneg %p112
        %p465 = pneg %p136
        %p466 = pneg %p133
        %p467 = pneg %p157
        %p468 = pneg %p154
        %p469 = pneg %p178
        %p470 = pneg %p175
        %p471 = pneg %p199
        %p472 = pneg %p196
        %p473 = pneg %p220
        %p474 = pneg %p217
        %p475 = pneg %p241
        %p476 = pneg %p238
        %p477 = pneg %p262
        %p478 = pneg %p259
        %p479 = pneg %p288
        %p480 = pneg %p285
        %s481 = sand.u32 %s275, 1
        %s482 = scalar_lea.sflag [#allocation4], %s481
        %s483 = sand.u32 %s275, 1
        %s484 = smul.addr %s483, 128
        %s485 = scalar_lea.vmem [#allocation13], %s484
        %s486 = smul.u32 16, %s31
        %s487 = ssub.s32 25, %s486
        %p488 = scmp.lt.s32.totalorder %s487, 16
        %s489 = scalar_select %p488, %s487, 16
        %s490 = smul.u32 128, %s489
        %s491 = smul.u32 %s490, 8
        %s492 = smul.u32 16, %s31
        %s493 = ssub.s32 25, %s492
        %p494 = scmp.lt.s32.totalorder %s493, 16
        %s495 = scalar_select %p494, %s493, 16
        %s496 = smul.u32 128, %s495
        %v498 = vld [vmem:[%s427] sm:$0xff]
        %v499 = vld [vmem:[%s427 + $0x8] sm:$0xff]
        %v500 = vld [vmem:[%s427 + $0x10] sm:$0xff]
        %v501 = vld [vmem:[%s427 + $0x18] sm:$0xff]
        %v502 = vld [vmem:[%s427 + $0x20] sm:$0xff]
        %v503 = vld [vmem:[%s427 + $0x28] sm:$0xff]
        %v504 = vld [vmem:[%s427 + $0x30] sm:$0xff]
        %v505 = vld [vmem:[%s427 + $0x38] sm:$0xff]
        %v506 = vld [vmem:[%s427 + $0x40] sm:$0xff]
        %v507 = vld [vmem:[%s427 + $0x48] sm:$0xff]
        %v508 = vld [vmem:[%s427 + $0x50] sm:$0xff]
        %v509 = vld [vmem:[%s427 + $0x58] sm:$0xff]
        %v510 = vld [vmem:[%s427 + $0x60] sm:$0xff]
        %v511 = vld [vmem:[%s427 + $0x68] sm:$0xff]
        %v512 = vld [vmem:[%s427 + $0x70] sm:$0xff]
        %v513 = vld [vmem:[%s427 + $0x78] sm:$0xff]
        %v514 = vld [vmem:[%s427 + $0x80] sm:$0xff]
        %v515 = vld [vmem:[%s427 + $0x88] sm:$0xff]
        %v516 = vld [vmem:[%s427 + $0x90] sm:$0xff]
        %v517 = vld [vmem:[%s427 + $0x98] sm:$0xff]
        %v518 = vld [vmem:[%s427 + $0xa0] sm:$0xff]
        %v519 = vld [vmem:[%s427 + $0xa8] sm:$0xff]
        %v520 = vld [vmem:[%s427 + $0xb0] sm:$0xff]
        %v521 = vld [vmem:[%s427 + $0xb8] sm:$0xff]
        %v522 = vld [vmem:[%s427 + $0xc0] sm:$0xff]
        %v523 = vld [vmem:[%s427 + $0xc8] sm:$0xff]
        %v524 = vld [vmem:[%s427 + $0xd0] sm:$0xff]
        %v525 = vld [vmem:[%s427 + $0xd8] sm:$0xff]
        %v526 = vld [vmem:[%s427 + $0xe0] sm:$0xff]
        %v527 = vld [vmem:[%s427 + $0xe8] sm:$0xff]
        %v528 = vld [vmem:[%s427 + $0xf0] sm:$0xff]
        %v529 = vld [vmem:[%s427 + $0xf8] sm:$0xff]
        %v530 = vld [vmem:[%s427 + $0x100] sm:$0xff]
        %v531 = vld [vmem:[%s427 + $0x108] sm:$0xff]
        %v532 = vld [vmem:[%s427 + $0x110] sm:$0xff]
        %v533 = vld [vmem:[%s427 + $0x118] sm:$0xff]
        %v534 = vld [vmem:[%s427 + $0x120] sm:$0xff]
        %v535 = vld [vmem:[%s427 + $0x128] sm:$0xff]
        %v536 = vld [vmem:[%s427 + $0x130] sm:$0xff]
        %v537 = vld [vmem:[%s427 + $0x138] sm:$0xff]
        %v538 = vld [vmem:[%s427 + $0x140] sm:$0xff]
        %v539 = vld [vmem:[%s427 + $0x148] sm:$0xff]
        %v540 = vld [vmem:[%s427 + $0x150] sm:$0xff]
        %v541 = vld [vmem:[%s427 + $0x158] sm:$0xff]
        %v542 = vld [vmem:[%s427 + $0x160] sm:$0xff]
        %v543 = vld [vmem:[%s427 + $0x168] sm:$0xff]
        %v544 = vld [vmem:[%s427 + $0x170] sm:$0xff]
        %v545 = vld [vmem:[%s427 + $0x178] sm:$0xff]
        %v546 = vld [vmem:[%s427 + $0x180] sm:$0xff]
        %v547 = vld [vmem:[%s427 + $0x188] sm:$0xff]
        %v548 = vld [vmem:[%s427 + $0x190] sm:$0xff]
        %v549 = vld [vmem:[%s427 + $0x198] sm:$0xff]
        %v550 = vld [vmem:[%s427 + $0x1a0] sm:$0xff]
        %v551 = vld [vmem:[%s427 + $0x1a8] sm:$0xff]
        %v552 = vld [vmem:[%s427 + $0x1b0] sm:$0xff]
        %v553 = vld [vmem:[%s427 + $0x1b8] sm:$0xff]
        %v554 = vld [vmem:[%s427 + $0x1c0] sm:$0xff]
        %v555 = vld [vmem:[%s427 + $0x1c8] sm:$0xff]
        %v556 = vld [vmem:[%s427 + $0x1d0] sm:$0xff]
        %v557 = vld [vmem:[%s427 + $0x1d8] sm:$0xff]
        %v558 = vld [vmem:[%s427 + $0x1e0] sm:$0xff]
        %v559 = vld [vmem:[%s427 + $0x1e8] sm:$0xff]
        %v560 = vld [vmem:[%s427 + $0x1f0] sm:$0xff]
        %v561 = vld [vmem:[%s427 + $0x1f8] sm:$0xff]
        %v562 = vld [vmem:[%s427 + $0x200] sm:$0xff]
        %v563 = vld [vmem:[%s427 + $0x208] sm:$0xff]
        %v564 = vld [vmem:[%s427 + $0x210] sm:$0xff]
        %v565 = vld [vmem:[%s427 + $0x218] sm:$0xff]
        %v566 = vld [vmem:[%s427 + $0x220] sm:$0xff]
        %v567 = vld [vmem:[%s427 + $0x228] sm:$0xff]
        %v568 = vld [vmem:[%s427 + $0x230] sm:$0xff]
        %v569 = vld [vmem:[%s427 + $0x238] sm:$0xff]
        %v570 = vld [vmem:[%s427 + $0x240] sm:$0xff]
        %v571 = vld [vmem:[%s427 + $0x248] sm:$0xff]
        %v572 = vld [vmem:[%s427 + $0x250] sm:$0xff]
        %v573 = vld [vmem:[%s427 + $0x258] sm:$0xff]
        %v574 = vld [vmem:[%s427 + $0x260] sm:$0xff]
        %v575 = vld [vmem:[%s427 + $0x268] sm:$0xff]
        %v576 = vld [vmem:[%s427 + $0x270] sm:$0xff]
        %v577 = vld [vmem:[%s427 + $0x278] sm:$0xff]
        %v578 = vld [vmem:[%s427 + $0x280] sm:$0xff]
        %v579 = vld [vmem:[%s427 + $0x288] sm:$0xff]
        %v580 = vld [vmem:[%s427 + $0x290] sm:$0xff]
        %v581 = vld [vmem:[%s427 + $0x298] sm:$0xff]
        %v582 = vld [vmem:[%s427 + $0x2a0] sm:$0xff]
        %v583 = vld [vmem:[%s427 + $0x2a8] sm:$0xff]
        %v584 = vld [vmem:[%s427 + $0x2b0] sm:$0xff]
        %v585 = vld [vmem:[%s427 + $0x2b8] sm:$0xff]
        %v586 = vld [vmem:[%s427 + $0x2c0] sm:$0xff]
        %v587 = vld [vmem:[%s427 + $0x2c8] sm:$0xff]
        %v588 = vld [vmem:[%s427 + $0x2d0] sm:$0xff]
        %v589 = vld [vmem:[%s427 + $0x2d8] sm:$0xff]
        %v590 = vld [vmem:[%s427 + $0x2e0] sm:$0xff]
        %v591 = vld [vmem:[%s427 + $0x2e8] sm:$0xff]
        %v592 = vld [vmem:[%s427 + $0x2f0] sm:$0xff]
        %v593 = vld [vmem:[%s427 + $0x2f8] sm:$0xff]
        %v594 = vld [vmem:[%s427 + $0x300] sm:$0xff]
        %v595 = vld [vmem:[%s427 + $0x308] sm:$0xff]
        %v596 = vld [vmem:[%s427 + $0x310] sm:$0xff]
        %v597 = vld [vmem:[%s427 + $0x318] sm:$0xff]
        %v598 = vld [vmem:[%s427 + $0x320] sm:$0xff]
        %v599 = vld [vmem:[%s427 + $0x328] sm:$0xff]
        %v600 = vld [vmem:[%s427 + $0x330] sm:$0xff]
        %v601 = vld [vmem:[%s427 + $0x338] sm:$0xff]
        %v602 = vld [vmem:[%s427 + $0x340] sm:$0xff]
        %v603 = vld [vmem:[%s427 + $0x348] sm:$0xff]
        %v604 = vld [vmem:[%s427 + $0x350] sm:$0xff]
        %v605 = vld [vmem:[%s427 + $0x358] sm:$0xff]
        %v606 = vld [vmem:[%s427 + $0x360] sm:$0xff]
        %v607 = vld [vmem:[%s427 + $0x368] sm:$0xff]
        %v608 = vld [vmem:[%s427 + $0x370] sm:$0xff]
        %v609 = vld [vmem:[%s427 + $0x378] sm:$0xff]
        %v610 = vld [vmem:[%s427 + $0x380] sm:$0xff]
        %v611 = vld [vmem:[%s427 + $0x388] sm:$0xff]
        %v612 = vld [vmem:[%s427 + $0x390] sm:$0xff]
        %v613 = vld [vmem:[%s427 + $0x398] sm:$0xff]
        %v614 = vld [vmem:[%s427 + $0x3a0] sm:$0xff]
        %v615 = vld [vmem:[%s427 + $0x3a8] sm:$0xff]
        %v616 = vld [vmem:[%s427 + $0x3b0] sm:$0xff]
        %v617 = vld [vmem:[%s427 + $0x3b8] sm:$0xff]
        %v618 = vld [vmem:[%s427 + $0x3c0] sm:$0xff]
        %v619 = vld [vmem:[%s427 + $0x3c8] sm:$0xff]
        %v620 = vld [vmem:[%s427 + $0x3d0] sm:$0xff]
        %v621 = vld [vmem:[%s427 + $0x3d8] sm:$0xff]
        %v622 = vld [vmem:[%s427 + $0x3e0] sm:$0xff]
        %v623 = vld [vmem:[%s427 + $0x3e8] sm:$0xff]
        %v624 = vld [vmem:[%s427 + $0x3f0] sm:$0xff]
        %v625 = vld [vmem:[%s427 + $0x3f8] sm:$0xff]
        %v626 = vpack.c.bf16 %v506, %v498
        %v627 = vpack.c.bf16 %v507, %v499
        %v628 = vpack.c.bf16 %v508, %v500
        %v629 = vpack.c.bf16 %v509, %v501
        %v630 = vpack.c.bf16 %v510, %v502
        %v631 = vpack.c.bf16 %v511, %v503
        %v632 = vpack.c.bf16 %v512, %v504
        %v633 = vpack.c.bf16 %v513, %v505
        %v634 = vpack.c.bf16 %v522, %v514
        %v635 = vpack.c.bf16 %v523, %v515
        %v636 = vpack.c.bf16 %v524, %v516
        %v637 = vpack.c.bf16 %v525, %v517
        %v638 = vpack.c.bf16 %v526, %v518
        %v639 = vpack.c.bf16 %v527, %v519
        %v640 = vpack.c.bf16 %v528, %v520
        %v641 = vpack.c.bf16 %v529, %v521
        %v642 = vpack.c.bf16 %v538, %v530
        %v643 = vpack.c.bf16 %v539, %v531
        %v644 = vpack.c.bf16 %v540, %v532
        %v645 = vpack.c.bf16 %v541, %v533
        %v646 = vpack.c.bf16 %v542, %v534
        %v647 = vpack.c.bf16 %v543, %v535
        %v648 = vpack.c.bf16 %v544, %v536
        %v649 = vpack.c.bf16 %v545, %v537
        %v650 = vpack.c.bf16 %v554, %v546
        %v651 = vpack.c.bf16 %v555, %v547
        %v652 = vpack.c.bf16 %v556, %v548
        %v653 = vpack.c.bf16 %v557, %v549
        %v654 = vpack.c.bf16 %v558, %v550
        %v655 = vpack.c.bf16 %v559, %v551
        %v656 = vpack.c.bf16 %v560, %v552
        %v657 = vpack.c.bf16 %v561, %v553
        %v658 = vpack.c.bf16 %v570, %v562
        %v659 = vpack.c.bf16 %v571, %v563
        %v660 = vpack.c.bf16 %v572, %v564
        %v661 = vpack.c.bf16 %v573, %v565
        %v662 = vpack.c.bf16 %v574, %v566
        %v663 = vpack.c.bf16 %v575, %v567
        %v664 = vpack.c.bf16 %v576, %v568
        %v665 = vpack.c.bf16 %v577, %v569
        %v666 = vpack.c.bf16 %v586, %v578
        %v667 = vpack.c.bf16 %v587, %v579
        %v668 = vpack.c.bf16 %v588, %v580
        %v669 = vpack.c.bf16 %v589, %v581
        %v670 = vpack.c.bf16 %v590, %v582
        %v671 = vpack.c.bf16 %v591, %v583
        %v672 = vpack.c.bf16 %v592, %v584
        %v673 = vpack.c.bf16 %v593, %v585
        %v674 = vpack.c.bf16 %v602, %v594
        %v675 = vpack.c.bf16 %v603, %v595
        %v676 = vpack.c.bf16 %v604, %v596
        %v677 = vpack.c.bf16 %v605, %v597
        %v678 = vpack.c.bf16 %v606, %v598
        %v679 = vpack.c.bf16 %v607, %v599
        %v680 = vpack.c.bf16 %v608, %v600
        %v681 = vpack.c.bf16 %v609, %v601
        %v682 = vpack.c.bf16 %v618, %v610
        %v683 = vpack.c.bf16 %v619, %v611
        %v684 = vpack.c.bf16 %v620, %v612
        %v685 = vpack.c.bf16 %v621, %v613
        %v686 = vpack.c.bf16 %v622, %v614
        %v687 = vpack.c.bf16 %v623, %v615
        %v688 = vpack.c.bf16 %v624, %v616
        %v689 = vpack.c.bf16 %v625, %v617
        %v690 = vld [vmem:[#allocation5] sm:$0xf]
        %v691 = vld [vmem:[#allocation5 + $0x4] sm:$0xf]
        %v692 = vld [vmem:[#allocation5 + $0x8] sm:$0xf]
        %v693 = vld [vmem:[#allocation5 + $0xc] sm:$0xf]
        %v694 = vld [vmem:[#allocation5 + $0x10] sm:$0xf]
        %v695 = vld [vmem:[#allocation5 + $0x14] sm:$0xf]
        %v696 = vld [vmem:[#allocation5 + $0x18] sm:$0xf]
        %v697 = vld [vmem:[#allocation5 + $0x1c] sm:$0xf]
        %v698 = vld [vmem:[#allocation5 + $0x20] sm:$0xf]
        %v699 = vld [vmem:[#allocation5 + $0x24] sm:$0xf]
        %v700 = vld [vmem:[#allocation5 + $0x28] sm:$0xf]
        %v701 = vld [vmem:[#allocation5 + $0x2c] sm:$0xf]
        %v702 = vld [vmem:[#allocation5 + $0x30] sm:$0xf]
        %v703 = vld [vmem:[#allocation5 + $0x34] sm:$0xf]
        %v704 = vld [vmem:[#allocation5 + $0x38] sm:$0xf]
        %v705 = vld [vmem:[#allocation5 + $0x3c] sm:$0xf]
        %v706 = vld [vmem:[#allocation5 + $0x40] sm:$0xf]
        %v707 = vld [vmem:[#allocation5 + $0x44] sm:$0xf]
        %v708 = vld [vmem:[#allocation5 + $0x48] sm:$0xf]
        %v709 = vld [vmem:[#allocation5 + $0x4c] sm:$0xf]
        %v710 = vld [vmem:[#allocation5 + $0x50] sm:$0xf]
        %v711 = vld [vmem:[#allocation5 + $0x54] sm:$0xf]
        %v712 = vld [vmem:[#allocation5 + $0x58] sm:$0xf]
        %v713 = vld [vmem:[#allocation5 + $0x5c] sm:$0xf]
        %v714 = vld [vmem:[#allocation5 + $0x60] sm:$0xf]
        %v715 = vld [vmem:[#allocation5 + $0x64] sm:$0xf]
        %v716 = vld [vmem:[#allocation5 + $0x68] sm:$0xf]
        %v717 = vld [vmem:[#allocation5 + $0x6c] sm:$0xf]
        %v718 = vld [vmem:[#allocation5 + $0x70] sm:$0xf]
        %v719 = vld [vmem:[#allocation5 + $0x74] sm:$0xf]
        %v720 = vld [vmem:[#allocation5 + $0x78] sm:$0xf]
        %v721 = vld [vmem:[#allocation5 + $0x7c] sm:$0xf]
        %v722 = vld [vmem:[#allocation5 + $0x80] sm:$0xf]
        %v723 = vld [vmem:[#allocation5 + $0x84] sm:$0xf]
        %v724 = vld [vmem:[#allocation5 + $0x88] sm:$0xf]
        %v725 = vld [vmem:[#allocation5 + $0x8c] sm:$0xf]
        %v726 = vld [vmem:[#allocation5 + $0x90] sm:$0xf]
        %v727 = vld [vmem:[#allocation5 + $0x94] sm:$0xf]
        %v728 = vld [vmem:[#allocation5 + $0x98] sm:$0xf]
        %v729 = vld [vmem:[#allocation5 + $0x9c] sm:$0xf]
        %v730 = vld [vmem:[#allocation5 + $0xa0] sm:$0xf]
        %v731 = vld [vmem:[#allocation5 + $0xa4] sm:$0xf]
        %v732 = vld [vmem:[#allocation5 + $0xa8] sm:$0xf]
        %v733 = vld [vmem:[#allocation5 + $0xac] sm:$0xf]
        %v734 = vld [vmem:[#allocation5 + $0xb0] sm:$0xf]
        %v735 = vld [vmem:[#allocation5 + $0xb4] sm:$0xf]
        %v736 = vld [vmem:[#allocation5 + $0xb8] sm:$0xf]
        %v737 = vld [vmem:[#allocation5 + $0xbc] sm:$0xf]
        %v738 = vld [vmem:[#allocation5 + $0xc0] sm:$0xf]
        %v739 = vld [vmem:[#allocation5 + $0xc4] sm:$0xf]
        %v740 = vld [vmem:[#allocation5 + $0xc8] sm:$0xf]
        %v741 = vld [vmem:[#allocation5 + $0xcc] sm:$0xf]
        %v742 = vld [vmem:[#allocation5 + $0xd0] sm:$0xf]
        %v743 = vld [vmem:[#allocation5 + $0xd4] sm:$0xf]
        %v744 = vld [vmem:[#allocation5 + $0xd8] sm:$0xf]
        %v745 = vld [vmem:[#allocation5 + $0xdc] sm:$0xf]
        %v746 = vld [vmem:[#allocation5 + $0xe0] sm:$0xf]
        %v747 = vld [vmem:[#allocation5 + $0xe4] sm:$0xf]
        %v748 = vld [vmem:[#allocation5 + $0xe8] sm:$0xf]
        %v749 = vld [vmem:[#allocation5 + $0xec] sm:$0xf]
        %v750 = vld [vmem:[#allocation5 + $0xf0] sm:$0xf]
        %v751 = vld [vmem:[#allocation5 + $0xf4] sm:$0xf]
        %v752 = vld [vmem:[#allocation5 + $0xf8] sm:$0xf]
        %v753 = vld [vmem:[#allocation5 + $0xfc] sm:$0xf]
        %v754 = vld [vmem:[#allocation5 + $0x100] sm:$0xf]
        %v755 = vld [vmem:[#allocation5 + $0x104] sm:$0xf]
        %v756 = vld [vmem:[#allocation5 + $0x108] sm:$0xf]
        %v757 = vld [vmem:[#allocation5 + $0x10c] sm:$0xf]
        %v758 = vld [vmem:[#allocation5 + $0x110] sm:$0xf]
        %v759 = vld [vmem:[#allocation5 + $0x114] sm:$0xf]
        %v760 = vld [vmem:[#allocation5 + $0x118] sm:$0xf]
        %v761 = vld [vmem:[#allocation5 + $0x11c] sm:$0xf]
        %v762 = vld [vmem:[#allocation5 + $0x120] sm:$0xf]
        %v763 = vld [vmem:[#allocation5 + $0x124] sm:$0xf]
        %v764 = vld [vmem:[#allocation5 + $0x128] sm:$0xf]
        %v765 = vld [vmem:[#allocation5 + $0x12c] sm:$0xf]
        %v766 = vld [vmem:[#allocation5 + $0x130] sm:$0xf]
        %v767 = vld [vmem:[#allocation5 + $0x134] sm:$0xf]
        %v768 = vld [vmem:[#allocation5 + $0x138] sm:$0xf]
        %v769 = vld [vmem:[#allocation5 + $0x13c] sm:$0xf]
        %v770 = vld [vmem:[#allocation5 + $0x140] sm:$0xf]
        %v771 = vld [vmem:[#allocation5 + $0x144] sm:$0xf]
        %v772 = vld [vmem:[#allocation5 + $0x148] sm:$0xf]
        %v773 = vld [vmem:[#allocation5 + $0x14c] sm:$0xf]
        %v774 = vld [vmem:[#allocation5 + $0x150] sm:$0xf]
        %v775 = vld [vmem:[#allocation5 + $0x154] sm:$0xf]
        %v776 = vld [vmem:[#allocation5 + $0x158] sm:$0xf]
        %v777 = vld [vmem:[#allocation5 + $0x15c] sm:$0xf]
        %v778 = vld [vmem:[#allocation5 + $0x160] sm:$0xf]
        %v779 = vld [vmem:[#allocation5 + $0x164] sm:$0xf]
        %v780 = vld [vmem:[#allocation5 + $0x168] sm:$0xf]
        %v781 = vld [vmem:[#allocation5 + $0x16c] sm:$0xf]
        %v782 = vld [vmem:[#allocation5 + $0x170] sm:$0xf]
        %v783 = vld [vmem:[#allocation5 + $0x174] sm:$0xf]
        %v784 = vld [vmem:[#allocation5 + $0x178] sm:$0xf]
        %v785 = vld [vmem:[#allocation5 + $0x17c] sm:$0xf]
        %v786 = vld [vmem:[#allocation5 + $0x180] sm:$0xf]
        %v787 = vld [vmem:[#allocation5 + $0x184] sm:$0xf]
        %v788 = vld [vmem:[#allocation5 + $0x188] sm:$0xf]
        %v789 = vld [vmem:[#allocation5 + $0x18c] sm:$0xf]
        %v790 = vld [vmem:[#allocation5 + $0x190] sm:$0xf]
        %v791 = vld [vmem:[#allocation5 + $0x194] sm:$0xf]
        %v792 = vld [vmem:[#allocation5 + $0x198] sm:$0xf]
        %v793 = vld [vmem:[#allocation5 + $0x19c] sm:$0xf]
        %v794 = vld [vmem:[#allocation5 + $0x1a0] sm:$0xf]
        %v795 = vld [vmem:[#allocation5 + $0x1a4] sm:$0xf]
        %v796 = vld [vmem:[#allocation5 + $0x1a8] sm:$0xf]
        %v797 = vld [vmem:[#allocation5 + $0x1ac] sm:$0xf]
        %v798 = vld [vmem:[#allocation5 + $0x1b0] sm:$0xf]
        %v799 = vld [vmem:[#allocation5 + $0x1b4] sm:$0xf]
        %v800 = vld [vmem:[#allocation5 + $0x1b8] sm:$0xf]
        %v801 = vld [vmem:[#allocation5 + $0x1bc] sm:$0xf]
        %v802 = vld [vmem:[#allocation5 + $0x1c0] sm:$0xf]
        %v803 = vld [vmem:[#allocation5 + $0x1c4] sm:$0xf]
        %v804 = vld [vmem:[#allocation5 + $0x1c8] sm:$0xf]
        %v805 = vld [vmem:[#allocation5 + $0x1cc] sm:$0xf]
        %v806 = vld [vmem:[#allocation5 + $0x1d0] sm:$0xf]
        %v807 = vld [vmem:[#allocation5 + $0x1d4] sm:$0xf]
        %v808 = vld [vmem:[#allocation5 + $0x1d8] sm:$0xf]
        %v809 = vld [vmem:[#allocation5 + $0x1dc] sm:$0xf]
        %v810 = vld [vmem:[%s2] sm:$0x1]
        %v812 = vlaneseq
        %v813 = vshrl.u32 %v812, 7
        %v814 = vsub.s32 0, %v813
        %v815 = vrot.slane %v810, %v814
        %v937 = vunpack.c.l.b16 %v690
        %v938 = vunpack.c.l.b16 %v691
        %v939 = vunpack.c.l.b16 %v692
        %v940 = vunpack.c.l.b16 %v693
        %v941 = vunpack.c.l.b16 %v694
        %v942 = vunpack.c.l.b16 %v695
        %v943 = vunpack.c.l.b16 %v696
        %v944 = vunpack.c.l.b16 %v697
        %v945 = vunpack.c.l.b16 %v698
        %v946 = vunpack.c.l.b16 %v699
        %v947 = vunpack.c.l.b16 %v700
        %v948 = vunpack.c.l.b16 %v701
        %v949 = vunpack.c.l.b16 %v702
        %v950 = vunpack.c.l.b16 %v703
        %v951 = vunpack.c.l.b16 %v704
        %v952 = vunpack.c.l.b16 %v705
        %v953 = vunpack.c.l.b16 %v706
        %v954 = vunpack.c.l.b16 %v707
        %v955 = vunpack.c.l.b16 %v708
        %v956 = vunpack.c.l.b16 %v709
        %v957 = vunpack.c.l.b16 %v710
        %v958 = vunpack.c.l.b16 %v711
        %v959 = vunpack.c.l.b16 %v712
        %v960 = vunpack.c.l.b16 %v713
        %v961 = vunpack.c.l.b16 %v714
        %v962 = vunpack.c.l.b16 %v715
        %v963 = vunpack.c.l.b16 %v716
        %v964 = vunpack.c.l.b16 %v717
        %v965 = vunpack.c.l.b16 %v718
        %v966 = vunpack.c.l.b16 %v719
        %v967 = vunpack.c.l.b16 %v720
        %v968 = vunpack.c.l.b16 %v721
        %v969 = vunpack.c.l.b16 %v722
        %v970 = vunpack.c.l.b16 %v723
        %v971 = vunpack.c.l.b16 %v724
        %v972 = vunpack.c.l.b16 %v725
        %v973 = vunpack.c.l.b16 %v726
        %v974 = vunpack.c.l.b16 %v727
        %v975 = vunpack.c.l.b16 %v728
        %v976 = vunpack.c.l.b16 %v729
        %v977 = vunpack.c.l.b16 %v730
        %v978 = vunpack.c.l.b16 %v731
        %v979 = vunpack.c.l.b16 %v732
        %v980 = vunpack.c.l.b16 %v733
        %v981 = vunpack.c.l.b16 %v734
        %v982 = vunpack.c.l.b16 %v735
        %v983 = vunpack.c.l.b16 %v736
        %v984 = vunpack.c.l.b16 %v737
        %v985 = vunpack.c.l.b16 %v738
        %v986 = vunpack.c.l.b16 %v739
        %v987 = vunpack.c.l.b16 %v740
        %v988 = vunpack.c.l.b16 %v741
        %v989 = vunpack.c.l.b16 %v742
        %v990 = vunpack.c.l.b16 %v743
        %v991 = vunpack.c.l.b16 %v744
        %v992 = vunpack.c.l.b16 %v745
        %v993 = vunpack.c.l.b16 %v746
        %v994 = vunpack.c.l.b16 %v747
        %v995 = vunpack.c.l.b16 %v748
        %v996 = vunpack.c.l.b16 %v749
        %v997 = vunpack.c.l.b16 %v750
        %v998 = vunpack.c.l.b16 %v751
        %v999 = vunpack.c.l.b16 %v752
        %v1000 = vunpack.c.l.b16 %v753
        %v1001 = vunpack.c.l.b16 %v754
        %v1002 = vunpack.c.l.b16 %v755
        %v1003 = vunpack.c.l.b16 %v756
        %v1004 = vunpack.c.l.b16 %v757
        %v1005 = vunpack.c.l.b16 %v758
        %v1006 = vunpack.c.l.b16 %v759
        %v1007 = vunpack.c.l.b16 %v760
        %v1008 = vunpack.c.l.b16 %v761
        %v1009 = vunpack.c.l.b16 %v762
        %v1010 = vunpack.c.l.b16 %v763
        %v1011 = vunpack.c.l.b16 %v764
        %v1012 = vunpack.c.l.b16 %v765
        %v1013 = vunpack.c.l.b16 %v766
        %v1014 = vunpack.c.l.b16 %v767
        %v1015 = vunpack.c.l.b16 %v768
        %v1016 = vunpack.c.l.b16 %v769
        %v1017 = vunpack.c.l.b16 %v770
        %v1018 = vunpack.c.l.b16 %v771
        %v1019 = vunpack.c.l.b16 %v772
        %v1020 = vunpack.c.l.b16 %v773
        %v1021 = vunpack.c.l.b16 %v774
        %v1022 = vunpack.c.l.b16 %v775
        %v1023 = vunpack.c.l.b16 %v776
        %v1024 = vunpack.c.l.b16 %v777
        %v1025 = vunpack.c.l.b16 %v778
        %v1026 = vunpack.c.l.b16 %v779
        %v1027 = vunpack.c.l.b16 %v780
        %v1028 = vunpack.c.l.b16 %v781
        %v1029 = vunpack.c.l.b16 %v782
        %v1030 = vunpack.c.l.b16 %v783
        %v1031 = vunpack.c.l.b16 %v784
        %v1032 = vunpack.c.l.b16 %v785
        %v1033 = vunpack.c.l.b16 %v786
        %v1034 = vunpack.c.l.b16 %v787
        %v1035 = vunpack.c.l.b16 %v788
        %v1036 = vunpack.c.l.b16 %v789
        %v1037 = vunpack.c.l.b16 %v790
        %v1038 = vunpack.c.l.b16 %v791
        %v1039 = vunpack.c.l.b16 %v792
        %v1040 = vunpack.c.l.b16 %v793
        %v1041 = vunpack.c.l.b16 %v794
        %v1042 = vunpack.c.l.b16 %v795
        %v1043 = vunpack.c.l.b16 %v796
        %v1044 = vunpack.c.l.b16 %v797
        %v1045 = vunpack.c.l.b16 %v798
        %v1046 = vunpack.c.l.b16 %v799
        %v1047 = vunpack.c.l.b16 %v800
        %v1048 = vunpack.c.l.b16 %v801
        %v1049 = vunpack.c.l.b16 %v802
        %v1050 = vunpack.c.l.b16 %v803
        %v1051 = vunpack.c.l.b16 %v804
        %v1052 = vunpack.c.l.b16 %v805
        %v1053 = vunpack.c.l.b16 %v806
        %v1054 = vunpack.c.l.b16 %v807
        %v1055 = vunpack.c.l.b16 %v808
        %v1056 = vunpack.c.l.b16 %v809
        %v1057 = vpack.c.b16 %v938, %v937
        %v1058 = vpack.c.b16 %v940, %v939
        %v1059 = vpack.c.b16 %v942, %v941
        %v1060 = vpack.c.b16 %v944, %v943
        %v1061 = vpack.c.b16 %v946, %v945
        %v1062 = vpack.c.b16 %v948, %v947
        %v1063 = vpack.c.b16 %v950, %v949
        %v1064 = vpack.c.b16 %v952, %v951
        %v1065 = vpack.c.b16 %v954, %v953
        %v1066 = vpack.c.b16 %v956, %v955
        %v1067 = vpack.c.b16 %v958, %v957
        %v1068 = vpack.c.b16 %v960, %v959
        %v1069 = vpack.c.b16 %v962, %v961
        %v1070 = vpack.c.b16 %v964, %v963
        %v1071 = vpack.c.b16 %v966, %v965
        %v1072 = vpack.c.b16 %v968, %v967
        %v1073 = vpack.c.b16 %v970, %v969
        %v1074 = vpack.c.b16 %v972, %v971
        %v1075 = vpack.c.b16 %v974, %v973
        %v1076 = vpack.c.b16 %v976, %v975
        %v1077 = vpack.c.b16 %v978, %v977
        %v1078 = vpack.c.b16 %v980, %v979
        %v1079 = vpack.c.b16 %v982, %v981
        %v1080 = vpack.c.b16 %v984, %v983
        %v1081 = vpack.c.b16 %v986, %v985
        %v1082 = vpack.c.b16 %v988, %v987
        %v1083 = vpack.c.b16 %v990, %v989
        %v1084 = vpack.c.b16 %v992, %v991
        %v1085 = vpack.c.b16 %v994, %v993
        %v1086 = vpack.c.b16 %v996, %v995
        %v1087 = vpack.c.b16 %v998, %v997
        %v1088 = vpack.c.b16 %v1000, %v999
        %v1089 = vpack.c.b16 %v1002, %v1001
        %v1090 = vpack.c.b16 %v1004, %v1003
        %v1091 = vpack.c.b16 %v1006, %v1005
        %v1092 = vpack.c.b16 %v1008, %v1007
        %v1093 = vpack.c.b16 %v1010, %v1009
        %v1094 = vpack.c.b16 %v1012, %v1011
        %v1095 = vpack.c.b16 %v1014, %v1013
        %v1096 = vpack.c.b16 %v1016, %v1015
        %v1097 = vpack.c.b16 %v1018, %v1017
        %v1098 = vpack.c.b16 %v1020, %v1019
        %v1099 = vpack.c.b16 %v1022, %v1021
        %v1100 = vpack.c.b16 %v1024, %v1023
        %v1101 = vpack.c.b16 %v1026, %v1025
        %v1102 = vpack.c.b16 %v1028, %v1027
        %v1103 = vpack.c.b16 %v1030, %v1029
        %v1104 = vpack.c.b16 %v1032, %v1031
        %v1105 = vpack.c.b16 %v1034, %v1033
        %v1106 = vpack.c.b16 %v1036, %v1035
        %v1107 = vpack.c.b16 %v1038, %v1037
        %v1108 = vpack.c.b16 %v1040, %v1039
        %v1109 = vpack.c.b16 %v1042, %v1041
        %v1110 = vpack.c.b16 %v1044, %v1043
        %v1111 = vpack.c.b16 %v1046, %v1045
        %v1112 = vpack.c.b16 %v1048, %v1047
        %v1113 = vpack.c.b16 %v1050, %v1049
        %v1114 = vpack.c.b16 %v1052, %v1051
        %v1115 = vpack.c.b16 %v1054, %v1053
        %v1116 = vpack.c.b16 %v1056, %v1055
        %vm1177 = vcmask 523264
        %v1179 = vsel %vm1177, %v633, 0
        %v1182 = vsel %vm1177, %v641, 0
        %v1185 = vsel %vm1177, %v649, 0
        %v1188 = vsel %vm1177, %v657, 0
        %v1191 = vsel %vm1177, %v665, 0
        %v1194 = vsel %vm1177, %v673, 0
        %v1197 = vsel %vm1177, %v681, 0
        %v1200 = vsel %vm1177, %v689, 0
        %1202 = vmatprep.subr.bf16.mxu0 0
        %1203 = vmatpush1.bf16.msra.mxu0 %v1057
        %1204 = vmatprep.subr.bf16.mxu0 0
        %1205 = vmatpush1.bf16.msra.mxu0 %v1058
        %1206 = vmatprep.subr.bf16.mxu0 0
        %1207 = vmatpush1.bf16.msra.mxu0 %v1059
        %1208 = vmatprep.subr.bf16.mxu0 0
        %1209 = vmatpush1.bf16.msra.mxu0 %v1060
        %1210 = vmatprep.subr.bf16.mxu0 0
        %1211 = vmatpush1.bf16.msra.mxu0 %v1061
        %1212 = vmatprep.subr.bf16.mxu0 0
        %1213 = vmatpush1.bf16.msra.mxu0 %v1062
        %1214 = vmatprep.subr.bf16.mxu0 0
        %1215 = vmatpush1.bf16.msra.mxu0 %v1063
        %1216 = vmatprep.subr.bf16.mxu0 0
        %1217 = vmatpush1.bf16.msra.mxu0 %v1064
        %1218 = vmatprep.subr.bf16.mxu0 0
        %1219 = vmatpush1.bf16.msra.mxu0 %v1065
        %1220 = vmatprep.subr.bf16.mxu0 0
        %1221 = vmatpush1.bf16.msra.mxu0 %v1066
        %1222 = vmatprep.subr.bf16.mxu0 0
        %1223 = vmatpush1.bf16.msra.mxu0 %v1067
        %1224 = vmatprep.subr.bf16.mxu0 0
        %1225 = vmatpush1.bf16.msra.mxu0 %v1068
        %1226 = vmatprep.subr.bf16.mxu0 0
        %1227 = vmatpush1.bf16.msra.mxu0 %v1069
        %1228 = vmatprep.subr.bf16.mxu0 0
        %1229 = vmatpush1.bf16.msra.mxu0 %v1070
        %1230 = vmatprep.subr.bf16.mxu0 0
        %1231 = vmatpush1.bf16.msra.mxu0 %v1071
        %1232 = vmatprep.subr.bf16.mxu0 0
        %1233 = vmatpush1.bf16.msra.mxu0 %v1072
        %1234 = vmatprep.mubr.bf16.mxu0 %v627
        %1235 = vmatmul.mubr.bf16.gmra.mrb[0].mxu0 %v626
        %v1236 = vpop.f32.mrb[0].mxu0
        %v1237 = vadd.f32 %v815, %v1236
        %v1238 = vpop.f32.mrb[0].mxu0
        %v1239 = vpop.f32.mrb[0].mxu0
        %v1240 = vadd.f32 %v815, %v1239
        %v1241 = vpop.f32.mrb[0].mxu0
        %1242 = vmatprep.mubr.bf16.mxu0 %v635
        %1243 = vmatmul.mubr.bf16.gmra.mrb[0].mxu0 %v634
        %v1244 = vpop.f32.mrb[0].mxu0
        %v1245 = vadd.f32 %v815, %v1244
        %v1246 = vpop.f32.mrb[0].mxu0
        %v1247 = vpop.f32.mrb[0].mxu0
        %v1248 = vadd.f32 %v815, %v1247
        %v1249 = vpop.f32.mrb[0].mxu0
        %1250 = vmatprep.mubr.bf16.mxu0 %v643
        %1251 = vmatmul.mubr.bf16.gmra.mrb[0].mxu0 %v642
        %v1252 = vpop.f32.mrb[0].mxu0
        %v1253 = vadd.f32 %v815, %v1252
        %v1254 = vpop.f32.mrb[0].mxu0
        %v1255 = vpop.f32.mrb[0].mxu0
        %v1256 = vadd.f32 %v815, %v1255
        %v1257 = vpop.f32.mrb[0].mxu0
        %1258 = vmatprep.mubr.bf16.mxu0 %v651
        %1259 = vmatmul.mubr.bf16.gmra.mrb[0].mxu0 %v650
        %v1260 = vpop.f32.mrb[0].mxu0
        %v1261 = vadd.f32 %v815, %v1260
        %v1262 = vpop.f32.mrb[0].mxu0
        %v1263 = vpop.f32.mrb[0].mxu0
        %v1264 = vadd.f32 %v815, %v1263
        %v1265 = vpop.f32.mrb[0].mxu0
        %1266 = vmatprep.mubr.bf16.mxu0 %v659
        %1267 = vmatmul.mubr.bf16.gmra.mrb[0].mxu0 %v658
        %v1268 = vpop.f32.mrb[0].mxu0
        %v1269 = vadd.f32 %v815, %v1268
        %v1270 = vpop.f32.mrb[0].mxu0
        %v1271 = vpop.f32.mrb[0].mxu0
        %v1272 = vadd.f32 %v815, %v1271
        %v1273 = vpop.f32.mrb[0].mxu0
        %1274 = vmatprep.mubr.bf16.mxu0 %v667
        %1275 = vmatmul.mubr.bf16.gmra.mrb[0].mxu0 %v666
        %v1276 = vpop.f32.mrb[0].mxu0
        %v1277 = vadd.f32 %v815, %v1276
        %v1278 = vpop.f32.mrb[0].mxu0
        %v1279 = vpop.f32.mrb[0].mxu0
        %v1280 = vadd.f32 %v815, %v1279
        %v1281 = vpop.f32.mrb[0].mxu0
        %1282 = vmatprep.mubr.bf16.mxu0 %v675
        %1283 = vmatmul.mubr.bf16.gmra.mrb[0].mxu0 %v674
        %v1284 = vpop.f32.mrb[0].mxu0
        %v1285 = vadd.f32 %v815, %v1284
        %v1286 = vpop.f32.mrb[0].mxu0
        %v1287 = vpop.f32.mrb[0].mxu0
        %v1288 = vadd.f32 %v815, %v1287
        %v1289 = vpop.f32.mrb[0].mxu0
        %1290 = vmatprep.mubr.bf16.mxu0 %v683
        %1291 = vmatmul.mubr.bf16.gmra.mrb[0].mxu0 %v682
        %v1292 = vpop.f32.mrb[0].mxu0
        %v1293 = vadd.f32 %v815, %v1292
        %v1294 = vpop.f32.mrb[0].mxu0
        %v1295 = vpop.f32.mrb[0].mxu0
        %v1296 = vadd.f32 %v815, %v1295
        %v1297 = vpop.f32.mrb[0].mxu0
        %1298 = vdwg.mxu0
        %1299 = vmatprep.subr.bf16.mxu0 0
        %1300 = vmatpush1.bf16.msra.mxu0 %v1073
        %1301 = vmatprep.subr.bf16.mxu0 0
        %1302 = vmatpush1.bf16.msra.mxu0 %v1074
        %1303 = vmatprep.subr.bf16.mxu0 0
        %1304 = vmatpush1.bf16.msra.mxu0 %v1075
        %1305 = vmatprep.subr.bf16.mxu0 0
        %1306 = vmatpush1.bf16.msra.mxu0 %v1076
        %1307 = vmatprep.subr.bf16.mxu0 0
        %1308 = vmatpush1.bf16.msra.mxu0 %v1077
        %1309 = vmatprep.subr.bf16.mxu0 0
        %1310 = vmatpush1.bf16.msra.mxu0 %v1078
        %1311 = vmatprep.subr.bf16.mxu0 0
        %1312 = vmatpush1.bf16.msra.mxu0 %v1079
        %1313 = vmatprep.subr.bf16.mxu0 0
        %1314 = vmatpush1.bf16.msra.mxu0 %v1080
        %1315 = vmatprep.subr.bf16.mxu0 0
        %1316 = vmatpush1.bf16.msra.mxu0 %v1081
        %1317 = vmatprep.subr.bf16.mxu0 0
        %1318 = vmatpush1.bf16.msra.mxu0 %v1082
        %1319 = vmatprep.subr.bf16.mxu0 0
        %1320 = vmatpush1.bf16.msra.mxu0 %v1083
        %1321 = vmatprep.subr.bf16.mxu0 0
        %1322 = vmatpush1.bf16.msra.mxu0 %v1084
        %1323 = vmatprep.subr.bf16.mxu0 0
        %1324 = vmatpush1.bf16.msra.mxu0 %v1085
        %1325 = vmatprep.subr.bf16.mxu0 0
        %1326 = vmatpush1.bf16.msra.mxu0 %v1086
        %1327 = vmatprep.subr.bf16.mxu0 0
        %1328 = vmatpush1.bf16.msra.mxu0 %v1087
        %1329 = vmatprep.subr.bf16.mxu0 0
        %1330 = vmatpush1.bf16.msra.mxu0 %v1088
        %1331 = vmatprep.mubr.bf16.mxu0 %v629
        %1332 = vmatmul.mubr.bf16.gmra.mrb[0].mxu0 %v628
        %v1333 = vpop.f32.mrb[0].mxu0
        %v1334 = vadd.f32 %v1237, %v1333
        %v1335 = vpop.f32.mrb[0].mxu0
        %v1336 = vpop.f32.mrb[0].mxu0
        %v1337 = vadd.f32 %v1240, %v1336
        %v1338 = vpop.f32.mrb[0].mxu0
        %1339 = vmatprep.mubr.bf16.mxu0 %v637
        %1340 = vmatmul.mubr.bf16.gmra.mrb[0].mxu0 %v636
        %v1341 = vpop.f32.mrb[0].mxu0
        %v1342 = vadd.f32 %v1245, %v1341
        %v1343 = vpop.f32.mrb[0].mxu0
        %v1344 = vpop.f32.mrb[0].mxu0
        %v1345 = vadd.f32 %v1248, %v1344
        %v1346 = vpop.f32.mrb[0].mxu0
        %1347 = vmatprep.mubr.bf16.mxu0 %v645
        %1348 = vmatmul.mubr.bf16.gmra.mrb[0].mxu0 %v644
        %v1349 = vpop.f32.mrb[0].mxu0
        %v1350 = vadd.f32 %v1253, %v1349
        %v1351 = vpop.f32.mrb[0].mxu0
        %v1352 = vpop.f32.mrb[0].mxu0
        %v1353 = vadd.f32 %v1256, %v1352
        %v1354 = vpop.f32.mrb[0].mxu0
        %1355 = vmatprep.mubr.bf16.mxu0 %v653
        %1356 = vmatmul.mubr.bf16.gmra.mrb[0].mxu0 %v652
        %v1357 = vpop.f32.mrb[0].mxu0
        %v1358 = vadd.f32 %v1261, %v1357
        %v1359 = vpop.f32.mrb[0].mxu0
        %v1360 = vpop.f32.mrb[0].mxu0
        %v1361 = vadd.f32 %v1264, %v1360
        %v1362 = vpop.f32.mrb[0].mxu0
        %1363 = vmatprep.mubr.bf16.mxu0 %v661
        %1364 = vmatmul.mubr.bf16.gmra.mrb[0].mxu0 %v660
        %v1365 = vpop.f32.mrb[0].mxu0
        %v1366 = vadd.f32 %v1269, %v1365
        %v1367 = vpop.f32.mrb[0].mxu0
        %v1368 = vpop.f32.mrb[0].mxu0
        %v1369 = vadd.f32 %v1272, %v1368
        %v1370 = vpop.f32.mrb[0].mxu0
        %1371 = vmatprep.mubr.bf16.mxu0 %v669
        %1372 = vmatmul.mubr.bf16.gmra.mrb[0].mxu0 %v668
        %v1373 = vpop.f32.mrb[0].mxu0
        %v1374 = vadd.f32 %v1277, %v1373
        %v1375 = vpop.f32.mrb[0].mxu0
        %v1376 = vpop.f32.mrb[0].mxu0
        %v1377 = vadd.f32 %v1280, %v1376
        %v1378 = vpop.f32.mrb[0].mxu0
        %1379 = vmatprep.mubr.bf16.mxu0 %v677
        %1380 = vmatmul.mubr.bf16.gmra.mrb[0].mxu0 %v676
        %v1381 = vpop.f32.mrb[0].mxu0
        %v1382 = vadd.f32 %v1285, %v1381
        %v1383 = vpop.f32.mrb[0].mxu0
        %v1384 = vpop.f32.mrb[0].mxu0
        %v1385 = vadd.f32 %v1288, %v1384
        %v1386 = vpop.f32.mrb[0].mxu0
        %1387 = vmatprep.mubr.bf16.mxu0 %v685
        %1388 = vmatmul.mubr.bf16.gmra.mrb[0].mxu0 %v684
        %v1389 = vpop.f32.mrb[0].mxu0
        %v1390 = vadd.f32 %v1293, %v1389
        %v1391 = vpop.f32.mrb[0].mxu0
        %v1392 = vpop.f32.mrb[0].mxu0
        %v1393 = vadd.f32 %v1296, %v1392
        %v1394 = vpop.f32.mrb[0].mxu0
        %1395 = vdwg.mxu0
        %1396 = vmatprep.subr.bf16.mxu0 0
        %1397 = vmatpush1.bf16.msra.mxu0 %v1089
        %1398 = vmatprep.subr.bf16.mxu0 0
        %1399 = vmatpush1.bf16.msra.mxu0 %v1090
        %1400 = vmatprep.subr.bf16.mxu0 0
        %1401 = vmatpush1.bf16.msra.mxu0 %v1091
        %1402 = vmatprep.subr.bf16.mxu0 0
        %1403 = vmatpush1.bf16.msra.mxu0 %v1092
        %1404 = vmatprep.subr.bf16.mxu0 0
        %1405 = vmatpush1.bf16.msra.mxu0 %v1093
        %1406 = vmatprep.subr.bf16.mxu0 0
        %1407 = vmatpush1.bf16.msra.mxu0 %v1094
        %1408 = vmatprep.subr.bf16.mxu0 0
        %1409 = vmatpush1.bf16.msra.mxu0 %v1095
        %1410 = vmatprep.subr.bf16.mxu0 0
        %1411 = vmatpush1.bf16.msra.mxu0 %v1096
        %1412 = vmatprep.subr.bf16.mxu0 0
        %1413 = vmatpush1.bf16.msra.mxu0 %v1097
        %1414 = vmatprep.subr.bf16.mxu0 0
        %1415 = vmatpush1.bf16.msra.mxu0 %v1098
        %1416 = vmatprep.subr.bf16.mxu0 0
        %1417 = vmatpush1.bf16.msra.mxu0 %v1099
        %1418 = vmatprep.subr.bf16.mxu0 0
        %1419 = vmatpush1.bf16.msra.mxu0 %v1100
        %1420 = vmatprep.subr.bf16.mxu0 0
        %1421 = vmatpush1.bf16.msra.mxu0 %v1101
        %1422 = vmatprep.subr.bf16.mxu0 0
        %1423 = vmatpush1.bf16.msra.mxu0 %v1102
        %1424 = vmatprep.subr.bf16.mxu0 0
        %1425 = vmatpush1.bf16.msra.mxu0 %v1103
        %1426 = vmatprep.subr.bf16.mxu0 0
        %1427 = vmatpush1.bf16.msra.mxu0 %v1104
        %1428 = vmatprep.mubr.bf16.mxu0 %v631
        %1429 = vmatmul.mubr.bf16.gmra.mrb[0].mxu0 %v630
        %v1430 = vpop.f32.mrb[0].mxu0
        %v1431 = vadd.f32 %v1334, %v1430
        %v1432 = vpop.f32.mrb[0].mxu0
        %v1433 = vpop.f32.mrb[0].mxu0
        %v1434 = vadd.f32 %v1337, %v1433
        %v1435 = vpop.f32.mrb[0].mxu0
        %1436 = vmatprep.mubr.bf16.mxu0 %v639
        %1437 = vmatmul.mubr.bf16.gmra.mrb[0].mxu0 %v638
        %v1438 = vpop.f32.mrb[0].mxu0
        %v1439 = vadd.f32 %v1342, %v1438
        %v1440 = vpop.f32.mrb[0].mxu0
        %v1441 = vpop.f32.mrb[0].mxu0
        %v1442 = vadd.f32 %v1345, %v1441
        %v1443 = vpop.f32.mrb[0].mxu0
        %1444 = vmatprep.mubr.bf16.mxu0 %v647
        %1445 = vmatmul.mubr.bf16.gmra.mrb[0].mxu0 %v646
        %v1446 = vpop.f32.mrb[0].mxu0
        %v1447 = vadd.f32 %v1350, %v1446
        %v1448 = vpop.f32.mrb[0].mxu0
        %v1449 = vpop.f32.mrb[0].mxu0
        %v1450 = vadd.f32 %v1353, %v1449
        %v1451 = vpop.f32.mrb[0].mxu0
        %1452 = vmatprep.mubr.bf16.mxu0 %v655
        %1453 = vmatmul.mubr.bf16.gmra.mrb[0].mxu0 %v654
        %v1454 = vpop.f32.mrb[0].mxu0
        %v1455 = vadd.f32 %v1358, %v1454
        %v1456 = vpop.f32.mrb[0].mxu0
        %v1457 = vpop.f32.mrb[0].mxu0
        %v1458 = vadd.f32 %v1361, %v1457
        %v1459 = vpop.f32.mrb[0].mxu0
        %1460 = vmatprep.mubr.bf16.mxu0 %v663
        %1461 = vmatmul.mubr.bf16.gmra.mrb[0].mxu0 %v662
        %v1462 = vpop.f32.mrb[0].mxu0
        %v1463 = vadd.f32 %v1366, %v1462
        %v1464 = vpop.f32.mrb[0].mxu0
        %v1465 = vpop.f32.mrb[0].mxu0
        %v1466 = vadd.f32 %v1369, %v1465
        %v1467 = vpop.f32.mrb[0].mxu0
        %1468 = vmatprep.mubr.bf16.mxu0 %v671
        %1469 = vmatmul.mubr.bf16.gmra.mrb[0].mxu0 %v670
        %v1470 = vpop.f32.mrb[0].mxu0
        %v1471 = vadd.f32 %v1374, %v1470
        %v1472 = vpop.f32.mrb[0].mxu0
        %v1473 = vpop.f32.mrb[0].mxu0
        %v1474 = vadd.f32 %v1377, %v1473
        %v1475 = vpop.f32.mrb[0].mxu0
        %1476 = vmatprep.mubr.bf16.mxu0 %v679
        %1477 = vmatmul.mubr.bf16.gmra.mrb[0].mxu0 %v678
        %v1478 = vpop.f32.mrb[0].mxu0
        %v1479 = vadd.f32 %v1382, %v1478
        %v1480 = vpop.f32.mrb[0].mxu0
        %v1481 = vpop.f32.mrb[0].mxu0
        %v1482 = vadd.f32 %v1385, %v1481
        %v1483 = vpop.f32.mrb[0].mxu0
        %1484 = vmatprep.mubr.bf16.mxu0 %v687
        %1485 = vmatmul.mubr.bf16.gmra.mrb[0].mxu0 %v686
        %v1486 = vpop.f32.mrb[0].mxu0
        %v1487 = vadd.f32 %v1390, %v1486
        %v1488 = vpop.f32.mrb[0].mxu0
        %v1489 = vpop.f32.mrb[0].mxu0
        %v1490 = vadd.f32 %v1393, %v1489
        %v1491 = vpop.f32.mrb[0].mxu0
        %1492 = vdwg.mxu0
        %1493 = vmatprep.subr.bf16.mxu0 0
        %1494 = vmatpush1.bf16.msra.mxu0 %v1105
        %1495 = vmatprep.subr.bf16.mxu0 0
        %1496 = vmatpush1.bf16.msra.mxu0 %v1106
        %1497 = vmatprep.subr.bf16.mxu0 0
        %1498 = vmatpush1.bf16.msra.mxu0 %v1107
        %1499 = vmatprep.subr.bf16.mxu0 0
        %1500 = vmatpush1.bf16.msra.mxu0 %v1108
        %1501 = vmatprep.subr.bf16.mxu0 0
        %1502 = vmatpush1.bf16.msra.mxu0 %v1109
        %1503 = vmatprep.subr.bf16.mxu0 0
        %1504 = vmatpush1.bf16.msra.mxu0 %v1110
        %1505 = vmatprep.subr.bf16.mxu0 0
        %1506 = vmatpush1.bf16.msra.mxu0 %v1111
        %1507 = vmatprep.subr.bf16.mxu0 0
        %1508 = vmatpush1.bf16.msra.mxu0 %v1112
        %1509 = vmatprep.subr.bf16.mxu0 0
        %1510 = vmatpush1.bf16.msra.mxu0 %v1113
        %1511 = vmatprep.subr.bf16.mxu0 0
        %1512 = vmatpush1.bf16.msra.mxu0 %v1114
        %1513 = vmatprep.subr.bf16.mxu0 0
        %1514 = vmatpush1.bf16.msra.mxu0 %v1115
        %1515 = vmatprep.subr.bf16.mxu0 0
        %1516 = vmatpush1.bf16.msra.mxu0 %v1116
        %1517 = vmatprep.subr.bf16.mxu0 0
        %1518 = vmatpush1.bf16.msra.mxu0 0
        %1519 = vmatprep.subr.bf16.mxu0 0
        %1520 = vmatpush1.bf16.msra.mxu0 0
        %1521 = vmatprep.subr.bf16.mxu0 0
        %1522 = vmatpush1.bf16.msra.mxu0 0
        %1523 = vmatprep.subr.bf16.mxu0 0
        %1524 = vmatpush1.bf16.msra.mxu0 0
        %1525 = vmatprep.mubr.bf16.mxu0 %v1179
        %1526 = vmatmul.mubr.bf16.gmra.mrb[0].mxu0 %v632
        %v1527 = vpop.f32.mrb[0].mxu0
        %v1528 = vadd.f32 %v1431, %v1527
        %v1529 = vpop.f32.mrb[0].mxu0
        %v1530 = vpop.f32.mrb[0].mxu0
        %v1531 = vadd.f32 %v1434, %v1530
        %v1532 = vpop.f32.mrb[0].mxu0
        %1533 = vmatprep.mubr.bf16.mxu0 %v1182
        %1534 = vmatmul.mubr.bf16.gmra.mrb[0].mxu0 %v640
        %v1535 = vpop.f32.mrb[0].mxu0
        %v1536 = vadd.f32 %v1439, %v1535
        %v1537 = vpop.f32.mrb[0].mxu0
        %v1538 = vpop.f32.mrb[0].mxu0
        %v1539 = vadd.f32 %v1442, %v1538
        %v1540 = vpop.f32.mrb[0].mxu0
        %1541 = vmatprep.mubr.bf16.mxu0 %v1185
        %1542 = vmatmul.mubr.bf16.gmra.mrb[0].mxu0 %v648
        %v1543 = vpop.f32.mrb[0].mxu0
        %v1544 = vadd.f32 %v1447, %v1543
        %v1545 = vpop.f32.mrb[0].mxu0
        %v1546 = vpop.f32.mrb[0].mxu0
        %v1547 = vadd.f32 %v1450, %v1546
        %v1548 = vpop.f32.mrb[0].mxu0
        %1549 = vmatprep.mubr.bf16.mxu0 %v1188
        %1550 = vmatmul.mubr.bf16.gmra.mrb[0].mxu0 %v656
        %v1551 = vpop.f32.mrb[0].mxu0
        %v1552 = vadd.f32 %v1455, %v1551
        %v1553 = vpop.f32.mrb[0].mxu0
        %v1554 = vpop.f32.mrb[0].mxu0
        %v1555 = vadd.f32 %v1458, %v1554
        %v1556 = vpop.f32.mrb[0].mxu0
        %1557 = vmatprep.mubr.bf16.mxu0 %v1191
        %1558 = vmatmul.mubr.bf16.gmra.mrb[0].mxu0 %v664
        %v1559 = vpop.f32.mrb[0].mxu0
        %v1560 = vadd.f32 %v1463, %v1559
        %v1561 = vpop.f32.mrb[0].mxu0
        %v1562 = vpop.f32.mrb[0].mxu0
        %v1563 = vadd.f32 %v1466, %v1562
        %v1564 = vpop.f32.mrb[0].mxu0
        %1565 = vmatprep.mubr.bf16.mxu0 %v1194
        %1566 = vmatmul.mubr.bf16.gmra.mrb[0].mxu0 %v672
        %v1567 = vpop.f32.mrb[0].mxu0
        %v1568 = vadd.f32 %v1471, %v1567
        %v1569 = vpop.f32.mrb[0].mxu0
        %v1570 = vpop.f32.mrb[0].mxu0
        %v1571 = vadd.f32 %v1474, %v1570
        %v1572 = vpop.f32.mrb[0].mxu0
        %1573 = vmatprep.mubr.bf16.mxu0 %v1197
        %1574 = vmatmul.mubr.bf16.gmra.mrb[0].mxu0 %v680
        %v1575 = vpop.f32.mrb[0].mxu0
        %v1576 = vadd.f32 %v1479, %v1575
        %v1577 = vpop.f32.mrb[0].mxu0
        %v1578 = vpop.f32.mrb[0].mxu0
        %v1579 = vadd.f32 %v1482, %v1578
        %v1580 = vpop.f32.mrb[0].mxu0
        %1581 = vmatprep.mubr.bf16.mxu0 %v1200
        %1582 = vmatmul.mubr.bf16.gmra.mrb[0].mxu0 %v688
        %v1583 = vpop.f32.mrb[0].mxu0
        %v1584 = vadd.f32 %v1487, %v1583
        %v1585 = vpop.f32.mrb[0].mxu0
        %v1586 = vpop.f32.mrb[0].mxu0
        %v1587 = vadd.f32 %v1490, %v1586
        %v1588 = vpop.f32.mrb[0].mxu0
        %1589 = vdwg.mxu0
        %v1590 = vmax.f32 %v1528, 0.0
        %v1591 = vmax.f32 %v1531, 0.0
        %v1592 = vmax.f32 %v1536, 0.0
        %v1593 = vmax.f32 %v1539, 0.0
        %v1594 = vmax.f32 %v1544, 0.0
        %v1595 = vmax.f32 %v1547, 0.0
        %v1596 = vmax.f32 %v1552, 0.0
        %v1597 = vmax.f32 %v1555, 0.0
        %v1598 = vmax.f32 %v1560, 0.0
        %v1599 = vmax.f32 %v1563, 0.0
        %v1600 = vmax.f32 %v1568, 0.0
        %v1601 = vmax.f32 %v1571, 0.0
        %v1602 = vmax.f32 %v1576, 0.0
        %v1603 = vmax.f32 %v1579, 0.0
        %v1604 = vmax.f32 %v1584, 0.0
        %v1605 = vmax.f32 %v1587, 0.0
        %v1606 = vpack.c.bf16 %v1591, %v1590
        %v1607 = vpack.c.bf16 %v1593, %v1592
        %v1608 = vpack.c.bf16 %v1595, %v1594
        %v1609 = vpack.c.bf16 %v1597, %v1596
        %v1610 = vpack.c.bf16 %v1599, %v1598
        %v1611 = vpack.c.bf16 %v1601, %v1600
        %v1612 = vpack.c.bf16 %v1603, %v1602
        %v1613 = vpack.c.bf16 %v1605, %v1604
        %v1614 = vld [vmem:[#allocation7] sm:$0xff]
        %v1615 = vld [vmem:[#allocation7 + $0x8] sm:$0xff]
        %v1616 = vld [vmem:[#allocation7 + $0x10] sm:$0xff]
        %v1617 = vld [vmem:[#allocation7 + $0x18] sm:$0xff]
        %v1618 = vld [vmem:[#allocation7 + $0x20] sm:$0xff]
        %v1619 = vld [vmem:[#allocation7 + $0x28] sm:$0xff]
        %v1620 = vld [vmem:[#allocation7 + $0x30] sm:$0xff]
        %v1621 = vld [vmem:[#allocation7 + $0x38] sm:$0xff]
        %v1622 = vld [vmem:[#allocation7 + $0x40] sm:$0xff]
        %v1623 = vld [vmem:[#allocation7 + $0x48] sm:$0xff]
        %v1624 = vld [vmem:[#allocation7 + $0x50] sm:$0xff]
        %v1625 = vld [vmem:[#allocation7 + $0x58] sm:$0xff]
        %v1626 = vld [vmem:[#allocation7 + $0x60] sm:$0xff]
        %v1627 = vld [vmem:[#allocation7 + $0x68] sm:$0xff]
        %v1628 = vld [vmem:[#allocation7 + $0x70] sm:$0xff]
        %v1629 = vld [vmem:[#allocation7 + $0x78] sm:$0xff]
        %v1630 = vld [vmem:[%s4] sm:$0x3]
        %v1632 = vlaneseq
        %v1633 = vshrl.u32 %v1632, 7
        %v1634 = vsub.s32 0, %v1633
        %v1635 = vrot.slane %v1630, %v1634
        %v1636 = vlaneseq
        %v1637 = vshrl.u32 %v1636, 7
        %v1638 = vsub.s32 1, %v1637
        %v1639 = vrot.slane %v1630, %v1638
        %v1658 = vunpack.c.l.b16 %v1614
        %v1659 = vunpack.c.h.b16 %v1614
        %v1660 = vunpack.c.l.b16 %v1615
        %v1661 = vunpack.c.h.b16 %v1615
        %v1662 = vunpack.c.l.b16 %v1616
        %v1663 = vunpack.c.h.b16 %v1616
        %v1664 = vunpack.c.l.b16 %v1617
        %v1665 = vunpack.c.h.b16 %v1617
        %v1666 = vunpack.c.l.b16 %v1618
        %v1667 = vunpack.c.h.b16 %v1618
        %v1668 = vunpack.c.l.b16 %v1619
        %v1669 = vunpack.c.h.b16 %v1619
        %v1670 = vunpack.c.l.b16 %v1620
        %v1671 = vunpack.c.h.b16 %v1620
        %v1672 = vunpack.c.l.b16 %v1621
        %v1673 = vunpack.c.h.b16 %v1621
        %v1674 = vunpack.c.l.b16 %v1622
        %v1675 = vunpack.c.h.b16 %v1622
        %v1676 = vunpack.c.l.b16 %v1623
        %v1677 = vunpack.c.h.b16 %v1623
        %v1678 = vunpack.c.l.b16 %v1624
        %v1679 = vunpack.c.h.b16 %v1624
        %v1680 = vunpack.c.l.b16 %v1625
        %v1681 = vunpack.c.h.b16 %v1625
        %v1682 = vunpack.c.l.b16 %v1626
        %v1683 = vunpack.c.h.b16 %v1626
        %v1684 = vunpack.c.l.b16 %v1627
        %v1685 = vunpack.c.h.b16 %v1627
        %v1686 = vunpack.c.l.b16 %v1628
        %v1687 = vunpack.c.h.b16 %v1628
        %v1688 = vunpack.c.l.b16 %v1629
        %v1689 = vunpack.c.h.b16 %v1629
        %v1690 = vpack.c.b16 %v1660, %v1658
        %v1691 = vpack.c.b16 %v1661, %v1659
        %v1692 = vpack.c.b16 %v1664, %v1662
        %v1693 = vpack.c.b16 %v1665, %v1663
        %v1694 = vpack.c.b16 %v1668, %v1666
        %v1695 = vpack.c.b16 %v1669, %v1667
        %v1696 = vpack.c.b16 %v1672, %v1670
        %v1697 = vpack.c.b16 %v1673, %v1671
        %v1698 = vpack.c.b16 %v1676, %v1674
        %v1699 = vpack.c.b16 %v1677, %v1675
        %v1700 = vpack.c.b16 %v1680, %v1678
        %v1701 = vpack.c.b16 %v1681, %v1679
        %v1702 = vpack.c.b16 %v1684, %v1682
        %v1703 = vpack.c.b16 %v1685, %v1683
        %v1704 = vpack.c.b16 %v1688, %v1686
        %v1705 = vpack.c.b16 %v1689, %v1687
        %1722 = vmatprep.subr.bf16.mxu0 %v1691
        %1723 = vmatpush1.bf16.msra.mxu0 %v1690
        %1724 = vmatprep.subr.bf16.mxu0 %v1693
        %1725 = vmatpush1.bf16.msra.mxu0 %v1692
        %1726 = vmatprep.subr.bf16.mxu0 %v1695
        %1727 = vmatpush1.bf16.msra.mxu0 %v1694
        %1728 = vmatprep.subr.bf16.mxu0 %v1697
        %1729 = vmatpush1.bf16.msra.mxu0 %v1696
        %1730 = vmatprep.subr.bf16.mxu0 %v1699
        %1731 = vmatpush1.bf16.msra.mxu0 %v1698
        %1732 = vmatprep.subr.bf16.mxu0 %v1701
        %1733 = vmatpush1.bf16.msra.mxu0 %v1700
        %1734 = vmatprep.subr.bf16.mxu0 %v1703
        %1735 = vmatpush1.bf16.msra.mxu0 %v1702
        %1736 = vmatprep.subr.bf16.mxu0 %v1705
        %1737 = vmatpush1.bf16.msra.mxu0 %v1704
        %1738 = vmatprep.subr.bf16.mxu0 0
        %1739 = vmatpush1.bf16.msra.mxu0 0
        %1740 = vmatprep.subr.bf16.mxu0 0
        %1741 = vmatpush1.bf16.msra.mxu0 0
        %1742 = vmatprep.subr.bf16.mxu0 0
        %1743 = vmatpush1.bf16.msra.mxu0 0
        %1744 = vmatprep.subr.bf16.mxu0 0
        %1745 = vmatpush1.bf16.msra.mxu0 0
        %1746 = vmatprep.subr.bf16.mxu0 0
        %1747 = vmatpush1.bf16.msra.mxu0 0
        %1748 = vmatprep.subr.bf16.mxu0 0
        %1749 = vmatpush1.bf16.msra.mxu0 0
        %1750 = vmatprep.subr.bf16.mxu0 0
        %1751 = vmatpush1.bf16.msra.mxu0 0
        %1752 = vmatprep.subr.bf16.mxu0 0
        %1753 = vmatpush1.bf16.msra.mxu0 0
        %1754 = vmatprep.mubr.bf16.mxu0 0
        %1755 = vmatmul.mubr.bf16.gmra.mrb[0].mxu0 %v1606
        %v1756 = vpop.f32.mrb[0].mxu0
        %v1757 = vadd.f32 %v1635, %v1756
        %v1758 = vpop.f32.mrb[0].mxu0
        %v1759 = vadd.f32 %v1639, %v1758
        %v1760 = vpop.f32.mrb[0].mxu0
        %v1761 = vadd.f32 %v1635, %v1760
        %v1762 = vpop.f32.mrb[0].mxu0
        %v1763 = vadd.f32 %v1639, %v1762
        %1764 = vmatprep.mubr.bf16.mxu0 0
        %1765 = vmatmul.mubr.bf16.gmra.mrb[0].mxu0 %v1607
        %v1766 = vpop.f32.mrb[0].mxu0
        %v1767 = vadd.f32 %v1635, %v1766
        %v1768 = vpop.f32.mrb[0].mxu0
        %v1769 = vadd.f32 %v1639, %v1768
        %v1770 = vpop.f32.mrb[0].mxu0
        %v1771 = vadd.f32 %v1635, %v1770
        %v1772 = vpop.f32.mrb[0].mxu0
        %v1773 = vadd.f32 %v1639, %v1772
        %1774 = vmatprep.mubr.bf16.mxu0 0
        %1775 = vmatmul.mubr.bf16.gmra.mrb[0].mxu0 %v1608
        %v1776 = vpop.f32.mrb[0].mxu0
        %v1777 = vadd.f32 %v1635, %v1776
        %v1778 = vpop.f32.mrb[0].mxu0
        %v1779 = vadd.f32 %v1639, %v1778
        %v1780 = vpop.f32.mrb[0].mxu0
        %v1781 = vadd.f32 %v1635, %v1780
        %v1782 = vpop.f32.mrb[0].mxu0
        %v1783 = vadd.f32 %v1639, %v1782
        %1784 = vmatprep.mubr.bf16.mxu0 0
        %1785 = vmatmul.mubr.bf16.gmra.mrb[0].mxu0 %v1609
        %v1786 = vpop.f32.mrb[0].mxu0
        %v1787 = vadd.f32 %v1635, %v1786
        %v1788 = vpop.f32.mrb[0].mxu0
        %v1789 = vadd.f32 %v1639, %v1788
        %v1790 = vpop.f32.mrb[0].mxu0
        %v1791 = vadd.f32 %v1635, %v1790
        %v1792 = vpop.f32.mrb[0].mxu0
        %v1793 = vadd.f32 %v1639, %v1792
        %1794 = vmatprep.mubr.bf16.mxu0 0
        %1795 = vmatmul.mubr.bf16.gmra.mrb[0].mxu0 %v1610
        %v1796 = vpop.f32.mrb[0].mxu0
        %v1797 = vadd.f32 %v1635, %v1796
        %v1798 = vpop.f32.mrb[0].mxu0
        %v1799 = vadd.f32 %v1639, %v1798
        %v1800 = vpop.f32.mrb[0].mxu0
        %v1801 = vadd.f32 %v1635, %v1800
        %v1802 = vpop.f32.mrb[0].mxu0
        %v1803 = vadd.f32 %v1639, %v1802
        %1804 = vmatprep.mubr.bf16.mxu0 0
        %1805 = vmatmul.mubr.bf16.gmra.mrb[0].mxu0 %v1611
        %v1806 = vpop.f32.mrb[0].mxu0
        %v1807 = vadd.f32 %v1635, %v1806
        %v1808 = vpop.f32.mrb[0].mxu0
        %v1809 = vadd.f32 %v1639, %v1808
        %v1810 = vpop.f32.mrb[0].mxu0
        %v1811 = vadd.f32 %v1635, %v1810
        %v1812 = vpop.f32.mrb[0].mxu0
        %v1813 = vadd.f32 %v1639, %v1812
        %1814 = vmatprep.mubr.bf16.mxu0 0
        %1815 = vmatmul.mubr.bf16.gmra.mrb[0].mxu0 %v1612
        %v1816 = vpop.f32.mrb[0].mxu0
        %v1817 = vadd.f32 %v1635, %v1816
        %v1818 = vpop.f32.mrb[0].mxu0
        %v1819 = vadd.f32 %v1639, %v1818
        %v1820 = vpop.f32.mrb[0].mxu0
        %v1821 = vadd.f32 %v1635, %v1820
        %v1822 = vpop.f32.mrb[0].mxu0
        %v1823 = vadd.f32 %v1639, %v1822
        %1824 = vmatprep.mubr.bf16.mxu0 0
        %1825 = vmatmul.mubr.bf16.gmra.mrb[0].mxu0 %v1613
        %v1826 = vpop.f32.mrb[0].mxu0
        %v1827 = vadd.f32 %v1635, %v1826
        %v1828 = vpop.f32.mrb[0].mxu0
        %v1829 = vadd.f32 %v1639, %v1828
        %v1830 = vpop.f32.mrb[0].mxu0
        %v1831 = vadd.f32 %v1635, %v1830
        %v1832 = vpop.f32.mrb[0].mxu0
        %v1833 = vadd.f32 %v1639, %v1832
        %1834 = vdwg.mxu0
        %v1835 = vmax.f32 %v1757, 0.0
        %v1836 = vmax.f32 %v1759, 0.0
        %v1837 = vmax.f32 %v1761, 0.0
        %v1838 = vmax.f32 %v1763, 0.0
        %v1839 = vmax.f32 %v1767, 0.0
        %v1840 = vmax.f32 %v1769, 0.0
        %v1841 = vmax.f32 %v1771, 0.0
        %v1842 = vmax.f32 %v1773, 0.0
        %v1843 = vmax.f32 %v1777, 0.0
        %v1844 = vmax.f32 %v1779, 0.0
        %v1845 = vmax.f32 %v1781, 0.0
        %v1846 = vmax.f32 %v1783, 0.0
        %v1847 = vmax.f32 %v1787, 0.0
        %v1848 = vmax.f32 %v1789, 0.0
        %v1849 = vmax.f32 %v1791, 0.0
        %v1850 = vmax.f32 %v1793, 0.0
        %v1851 = vmax.f32 %v1797, 0.0
        %v1852 = vmax.f32 %v1799, 0.0
        %v1853 = vmax.f32 %v1801, 0.0
        %v1854 = vmax.f32 %v1803, 0.0
        %v1855 = vmax.f32 %v1807, 0.0
        %v1856 = vmax.f32 %v1809, 0.0
        %v1857 = vmax.f32 %v1811, 0.0
        %v1858 = vmax.f32 %v1813, 0.0
        %v1859 = vmax.f32 %v1817, 0.0
        %v1860 = vmax.f32 %v1819, 0.0
        %v1861 = vmax.f32 %v1821, 0.0
        %v1862 = vmax.f32 %v1823, 0.0
        %v1863 = vmax.f32 %v1827, 0.0
        %v1864 = vmax.f32 %v1829, 0.0
        %v1865 = vmax.f32 %v1831, 0.0
        %v1866 = vmax.f32 %v1833, 0.0
        %v1867 = vpack.c.bf16 %v1837, %v1835
        %v1868 = vpack.c.bf16 %v1838, %v1836
        %v1869 = vpack.c.bf16 %v1841, %v1839
        %v1870 = vpack.c.bf16 %v1842, %v1840
        %v1871 = vpack.c.bf16 %v1845, %v1843
        %v1872 = vpack.c.bf16 %v1846, %v1844
        %v1873 = vpack.c.bf16 %v1849, %v1847
        %v1874 = vpack.c.bf16 %v1850, %v1848
        %v1875 = vpack.c.bf16 %v1853, %v1851
        %v1876 = vpack.c.bf16 %v1854, %v1852
        %v1877 = vpack.c.bf16 %v1857, %v1855
        %v1878 = vpack.c.bf16 %v1858, %v1856
        %v1879 = vpack.c.bf16 %v1861, %v1859
        %v1880 = vpack.c.bf16 %v1862, %v1860
        %v1881 = vpack.c.bf16 %v1865, %v1863
        %v1882 = vpack.c.bf16 %v1866, %v1864
        %v1883 = vld [vmem:[#allocation8] sm:$0xff]
        %v1884 = vld [vmem:[#allocation8 + $0x8] sm:$0xff]
        %v1885 = vld [vmem:[#allocation8 + $0x10] sm:$0xff]
        %v1886 = vld [vmem:[#allocation8 + $0x18] sm:$0xff]
        %v1887 = vld [vmem:[#allocation8 + $0x20] sm:$0xff]
        %v1888 = vld [vmem:[#allocation8 + $0x28] sm:$0xff]
        %v1889 = vld [vmem:[#allocation8 + $0x30] sm:$0xff]
        %v1890 = vld [vmem:[#allocation8 + $0x38] sm:$0xff]
        %v1891 = vld [vmem:[#allocation8 + $0x40] sm:$0xff]
        %v1892 = vld [vmem:[#allocation8 + $0x48] sm:$0xff]
        %v1893 = vld [vmem:[#allocation8 + $0x50] sm:$0xff]
        %v1894 = vld [vmem:[#allocation8 + $0x58] sm:$0xff]
        %v1895 = vld [vmem:[#allocation8 + $0x60] sm:$0xff]
        %v1896 = vld [vmem:[#allocation8 + $0x68] sm:$0xff]
        %v1897 = vld [vmem:[#allocation8 + $0x70] sm:$0xff]
        %v1898 = vld [vmem:[#allocation8 + $0x78] sm:$0xff]
        %v1899 = vld [vmem:[#allocation8 + $0x80] sm:$0xff]
        %v1900 = vld [vmem:[#allocation8 + $0x88] sm:$0xff]
        %v1901 = vld [vmem:[#allocation8 + $0x90] sm:$0xff]
        %v1902 = vld [vmem:[#allocation8 + $0x98] sm:$0xff]
        %v1903 = vld [vmem:[#allocation8 + $0xa0] sm:$0xff]
        %v1904 = vld [vmem:[#allocation8 + $0xa8] sm:$0xff]
        %v1905 = vld [vmem:[#allocation8 + $0xb0] sm:$0xff]
        %v1906 = vld [vmem:[#allocation8 + $0xb8] sm:$0xff]
        %v1907 = vld [vmem:[#allocation8 + $0xc0] sm:$0xff]
        %v1908 = vld [vmem:[#allocation8 + $0xc8] sm:$0xff]
        %v1909 = vld [vmem:[#allocation8 + $0xd0] sm:$0xff]
        %v1910 = vld [vmem:[#allocation8 + $0xd8] sm:$0xff]
        %v1911 = vld [vmem:[#allocation8 + $0xe0] sm:$0xff]
        %v1912 = vld [vmem:[#allocation8 + $0xe8] sm:$0xff]
        %v1913 = vld [vmem:[#allocation8 + $0xf0] sm:$0xff]
        %v1914 = vld [vmem:[#allocation8 + $0xf8] sm:$0xff]
        %v1915 = vld [vmem:[#allocation8 + $0x100] sm:$0xff]
        %v1916 = vld [vmem:[#allocation8 + $0x108] sm:$0xff]
        %v1917 = vld [vmem:[#allocation8 + $0x110] sm:$0xff]
        %v1918 = vld [vmem:[#allocation8 + $0x118] sm:$0xff]
        %v1919 = vld [vmem:[#allocation8 + $0x120] sm:$0xff]
        %v1920 = vld [vmem:[#allocation8 + $0x128] sm:$0xff]
        %v1921 = vld [vmem:[#allocation8 + $0x130] sm:$0xff]
        %v1922 = vld [vmem:[#allocation8 + $0x138] sm:$0xff]
        %v1923 = vld [vmem:[#allocation8 + $0x140] sm:$0xff]
        %v1924 = vld [vmem:[#allocation8 + $0x148] sm:$0xff]
        %v1925 = vld [vmem:[#allocation8 + $0x150] sm:$0xff]
        %v1926 = vld [vmem:[#allocation8 + $0x158] sm:$0xff]
        %v1927 = vld [vmem:[#allocation8 + $0x160] sm:$0xff]
        %v1928 = vld [vmem:[#allocation8 + $0x168] sm:$0xff]
        %v1929 = vld [vmem:[#allocation8 + $0x170] sm:$0xff]
        %v1930 = vld [vmem:[#allocation8 + $0x178] sm:$0xff]
        %v1931 = vld [vmem:[#allocation8 + $0x180] sm:$0xff]
        %v1932 = vld [vmem:[#allocation8 + $0x188] sm:$0xff]
        %v1933 = vld [vmem:[#allocation8 + $0x190] sm:$0xff]
        %v1934 = vld [vmem:[#allocation8 + $0x198] sm:$0xff]
        %v1935 = vld [vmem:[#allocation8 + $0x1a0] sm:$0xff]
        %v1936 = vld [vmem:[#allocation8 + $0x1a8] sm:$0xff]
        %v1937 = vld [vmem:[#allocation8 + $0x1b0] sm:$0xff]
        %v1938 = vld [vmem:[#allocation8 + $0x1b8] sm:$0xff]
        %v1939 = vld [vmem:[#allocation8 + $0x1c0] sm:$0xff]
        %v1940 = vld [vmem:[#allocation8 + $0x1c8] sm:$0xff]
        %v1941 = vld [vmem:[#allocation8 + $0x1d0] sm:$0xff]
        %v1942 = vld [vmem:[#allocation8 + $0x1d8] sm:$0xff]
        %v1943 = vld [vmem:[#allocation8 + $0x1e0] sm:$0xff]
        %v1944 = vld [vmem:[#allocation8 + $0x1e8] sm:$0xff]
        %v1945 = vld [vmem:[#allocation8 + $0x1f0] sm:$0xff]
        %v1946 = vld [vmem:[#allocation8 + $0x1f8] sm:$0xff]
        %v1947 = vld [vmem:[%s6] sm:$0xf]
        %v1949 = vlaneseq
        %v1950 = vshrl.u32 %v1949, 7
        %v1951 = vsub.s32 0, %v1950
        %v1952 = vrot.slane %v1947, %v1951
        %v1953 = vlaneseq
        %v1954 = vshrl.u32 %v1953, 7
        %v1955 = vsub.s32 1, %v1954
        %v1956 = vrot.slane %v1947, %v1955
        %v1957 = vlaneseq
        %v1958 = vshrl.u32 %v1957, 7
        %v1959 = vsub.s32 2, %v1958
        %v1960 = vrot.slane %v1947, %v1959
        %v1961 = vlaneseq
        %v1962 = vshrl.u32 %v1961, 7
        %v1963 = vsub.s32 3, %v1962
        %v1964 = vrot.slane %v1947, %v1963
        %v2033 = vunpack.c.l.b16 %v1883
        %v2034 = vunpack.c.h.b16 %v1883
        %v2035 = vunpack.c.l.b16 %v1884
        %v2036 = vunpack.c.h.b16 %v1884
        %v2037 = vunpack.c.l.b16 %v1885
        %v2038 = vunpack.c.h.b16 %v1885
        %v2039 = vunpack.c.l.b16 %v1886
        %v2040 = vunpack.c.h.b16 %v1886
        %v2041 = vunpack.c.l.b16 %v1887
        %v2042 = vunpack.c.h.b16 %v1887
        %v2043 = vunpack.c.l.b16 %v1888
        %v2044 = vunpack.c.h.b16 %v1888
        %v2045 = vunpack.c.l.b16 %v1889
        %v2046 = vunpack.c.h.b16 %v1889
        %v2047 = vunpack.c.l.b16 %v1890
        %v2048 = vunpack.c.h.b16 %v1890
        %v2049 = vunpack.c.l.b16 %v1891
        %v2050 = vunpack.c.h.b16 %v1891
        %v2051 = vunpack.c.l.b16 %v1892
        %v2052 = vunpack.c.h.b16 %v1892
        %v2053 = vunpack.c.l.b16 %v1893
        %v2054 = vunpack.c.h.b16 %v1893
        %v2055 = vunpack.c.l.b16 %v1894
        %v2056 = vunpack.c.h.b16 %v1894
        %v2057 = vunpack.c.l.b16 %v1895
        %v2058 = vunpack.c.h.b16 %v1895
        %v2059 = vunpack.c.l.b16 %v1896
        %v2060 = vunpack.c.h.b16 %v1896
        %v2061 = vunpack.c.l.b16 %v1897
        %v2062 = vunpack.c.h.b16 %v1897
        %v2063 = vunpack.c.l.b16 %v1898
        %v2064 = vunpack.c.h.b16 %v1898
        %v2065 = vunpack.c.l.b16 %v1899
        %v2066 = vunpack.c.h.b16 %v1899
        %v2067 = vunpack.c.l.b16 %v1900
        %v2068 = vunpack.c.h.b16 %v1900
        %v2069 = vunpack.c.l.b16 %v1901
        %v2070 = vunpack.c.h.b16 %v1901
        %v2071 = vunpack.c.l.b16 %v1902
        %v2072 = vunpack.c.h.b16 %v1902
        %v2073 = vunpack.c.l.b16 %v1903
        %v2074 = vunpack.c.h.b16 %v1903
        %v2075 = vunpack.c.l.b16 %v1904
        %v2076 = vunpack.c.h.b16 %v1904
        %v2077 = vunpack.c.l.b16 %v1905
        %v2078 = vunpack.c.h.b16 %v1905
        %v2079 = vunpack.c.l.b16 %v1906
        %v2080 = vunpack.c.h.b16 %v1906
        %v2081 = vunpack.c.l.b16 %v1907
        %v2082 = vunpack.c.h.b16 %v1907
        %v2083 = vunpack.c.l.b16 %v1908
        %v2084 = vunpack.c.h.b16 %v1908
        %v2085 = vunpack.c.l.b16 %v1909
        %v2086 = vunpack.c.h.b16 %v1909
        %v2087 = vunpack.c.l.b16 %v1910
        %v2088 = vunpack.c.h.b16 %v1910
        %v2089 = vunpack.c.l.b16 %v1911
        %v2090 = vunpack.c.h.b16 %v1911
        %v2091 = vunpack.c.l.b16 %v1912
        %v2092 = vunpack.c.h.b16 %v1912
        %v2093 = vunpack.c.l.b16 %v1913
        %v2094 = vunpack.c.h.b16 %v1913
        %v2095 = vunpack.c.l.b16 %v1914
        %v2096 = vunpack.c.h.b16 %v1914
        %v2097 = vunpack.c.l.b16 %v1915
        %v2098 = vunpack.c.h.b16 %v1915
        %v2099 = vunpack.c.l.b16 %v1916
        %v2100 = vunpack.c.h.b16 %v1916
        %v2101 = vunpack.c.l.b16 %v1917
        %v2102 = vunpack.c.h.b16 %v1917
        %v2103 = vunpack.c.l.b16 %v1918
        %v2104 = vunpack.c.h.b16 %v1918
        %v2105 = vunpack.c.l.b16 %v1919
        %v2106 = vunpack.c.h.b16 %v1919
        %v2107 = vunpack.c.l.b16 %v1920
        %v2108 = vunpack.c.h.b16 %v1920
        %v2109 = vunpack.c.l.b16 %v1921
        %v2110 = vunpack.c.h.b16 %v1921
        %v2111 = vunpack.c.l.b16 %v1922
        %v2112 = vunpack.c.h.b16 %v1922
        %v2113 = vunpack.c.l.b16 %v1923
        %v2114 = vunpack.c.h.b16 %v1923
        %v2115 = vunpack.c.l.b16 %v1924
        %v2116 = vunpack.c.h.b16 %v1924
        %v2117 = vunpack.c.l.b16 %v1925
        %v2118 = vunpack.c.h.b16 %v1925
        %v2119 = vunpack.c.l.b16 %v1926
        %v2120 = vunpack.c.h.b16 %v1926
        %v2121 = vunpack.c.l.b16 %v1927
        %v2122 = vunpack.c.h.b16 %v1927
        %v2123 = vunpack.c.l.b16 %v1928
        %v2124 = vunpack.c.h.b16 %v1928
        %v2125 = vunpack.c.l.b16 %v1929
        %v2126 = vunpack.c.h.b16 %v1929
        %v2127 = vunpack.c.l.b16 %v1930
        %v2128 = vunpack.c.h.b16 %v1930
        %v2129 = vunpack.c.l.b16 %v1931
        %v2130 = vunpack.c.h.b16 %v1931
        %v2131 = vunpack.c.l.b16 %v1932
        %v2132 = vunpack.c.h.b16 %v1932
        %v2133 = vunpack.c.l.b16 %v1933
        %v2134 = vunpack.c.h.b16 %v1933
        %v2135 = vunpack.c.l.b16 %v1934
        %v2136 = vunpack.c.h.b16 %v1934
        %v2137 = vunpack.c.l.b16 %v1935
        %v2138 = vunpack.c.h.b16 %v1935
        %v2139 = vunpack.c.l.b16 %v1936
        %v2140 = vunpack.c.h.b16 %v1936
        %v2141 = vunpack.c.l.b16 %v1937
        %v2142 = vunpack.c.h.b16 %v1937
        %v2143 = vunpack.c.l.b16 %v1938
        %v2144 = vunpack.c.h.b16 %v1938
        %v2145 = vunpack.c.l.b16 %v1939
        %v2146 = vunpack.c.h.b16 %v1939
        %v2147 = vunpack.c.l.b16 %v1940
        %v2148 = vunpack.c.h.b16 %v1940
        %v2149 = vunpack.c.l.b16 %v1941
        %v2150 = vunpack.c.h.b16 %v1941
        %v2151 = vunpack.c.l.b16 %v1942
        %v2152 = vunpack.c.h.b16 %v1942
        %v2153 = vunpack.c.l.b16 %v1943
        %v2154 = vunpack.c.h.b16 %v1943
        %v2155 = vunpack.c.l.b16 %v1944
        %v2156 = vunpack.c.h.b16 %v1944
        %v2157 = vunpack.c.l.b16 %v1945
        %v2158 = vunpack.c.h.b16 %v1945
        %v2159 = vunpack.c.l.b16 %v1946
        %v2160 = vunpack.c.h.b16 %v1946
        %v2161 = vpack.c.b16 %v2037, %v2033
        %v2162 = vpack.c.b16 %v2038, %v2034
        %v2163 = vpack.c.b16 %v2039, %v2035
        %v2164 = vpack.c.b16 %v2040, %v2036
        %v2165 = vpack.c.b16 %v2045, %v2041
        %v2166 = vpack.c.b16 %v2046, %v2042
        %v2167 = vpack.c.b16 %v2047, %v2043
        %v2168 = vpack.c.b16 %v2048, %v2044
        %v2169 = vpack.c.b16 %v2053, %v2049
        %v2170 = vpack.c.b16 %v2054, %v2050
        %v2171 = vpack.c.b16 %v2055, %v2051
        %v2172 = vpack.c.b16 %v2056, %v2052
        %v2173 = vpack.c.b16 %v2061, %v2057
        %v2174 = vpack.c.b16 %v2062, %v2058
        %v2175 = vpack.c.b16 %v2063, %v2059
        %v2176 = vpack.c.b16 %v2064, %v2060
        %v2177 = vpack.c.b16 %v2069, %v2065
        %v2178 = vpack.c.b16 %v2070, %v2066
        %v2179 = vpack.c.b16 %v2071, %v2067
        %v2180 = vpack.c.b16 %v2072, %v2068
        %v2181 = vpack.c.b16 %v2077, %v2073
        %v2182 = vpack.c.b16 %v2078, %v2074
        %v2183 = vpack.c.b16 %v2079, %v2075
        %v2184 = vpack.c.b16 %v2080, %v2076
        %v2185 = vpack.c.b16 %v2085, %v2081
        %v2186 = vpack.c.b16 %v2086, %v2082
        %v2187 = vpack.c.b16 %v2087, %v2083
        %v2188 = vpack.c.b16 %v2088, %v2084
        %v2189 = vpack.c.b16 %v2093, %v2089
        %v2190 = vpack.c.b16 %v2094, %v2090
        %v2191 = vpack.c.b16 %v2095, %v2091
        %v2192 = vpack.c.b16 %v2096, %v2092
        %v2193 = vpack.c.b16 %v2101, %v2097
        %v2194 = vpack.c.b16 %v2102, %v2098
        %v2195 = vpack.c.b16 %v2103, %v2099
        %v2196 = vpack.c.b16 %v2104, %v2100
        %v2197 = vpack.c.b16 %v2109, %v2105
        %v2198 = vpack.c.b16 %v2110, %v2106
        %v2199 = vpack.c.b16 %v2111, %v2107
        %v2200 = vpack.c.b16 %v2112, %v2108
        %v2201 = vpack.c.b16 %v2117, %v2113
        %v2202 = vpack.c.b16 %v2118, %v2114
        %v2203 = vpack.c.b16 %v2119, %v2115
        %v2204 = vpack.c.b16 %v2120, %v2116
        %v2205 = vpack.c.b16 %v2125, %v2121
        %v2206 = vpack.c.b16 %v2126, %v2122
        %v2207 = vpack.c.b16 %v2127, %v2123
        %v2208 = vpack.c.b16 %v2128, %v2124
        %v2209 = vpack.c.b16 %v2133, %v2129
        %v2210 = vpack.c.b16 %v2134, %v2130
        %v2211 = vpack.c.b16 %v2135, %v2131
        %v2212 = vpack.c.b16 %v2136, %v2132
        %v2213 = vpack.c.b16 %v2141, %v2137
        %v2214 = vpack.c.b16 %v2142, %v2138
        %v2215 = vpack.c.b16 %v2143, %v2139
        %v2216 = vpack.c.b16 %v2144, %v2140
        %v2217 = vpack.c.b16 %v2149, %v2145
        %v2218 = vpack.c.b16 %v2150, %v2146
        %v2219 = vpack.c.b16 %v2151, %v2147
        %v2220 = vpack.c.b16 %v2152, %v2148
        %v2221 = vpack.c.b16 %v2157, %v2153
        %v2222 = vpack.c.b16 %v2158, %v2154
        %v2223 = vpack.c.b16 %v2159, %v2155
        %v2224 = vpack.c.b16 %v2160, %v2156
        %2289 = vmatprep.subr.bf16.mxu0 %v2162
        %2290 = vmatpush1.bf16.msra.mxu0 %v2161
        %2291 = vmatprep.subr.bf16.mxu0 %v2166
        %2292 = vmatpush1.bf16.msra.mxu0 %v2165
        %2293 = vmatprep.subr.bf16.mxu0 %v2170
        %2294 = vmatpush1.bf16.msra.mxu0 %v2169
        %2295 = vmatprep.subr.bf16.mxu0 %v2174
        %2296 = vmatpush1.bf16.msra.mxu0 %v2173
        %2297 = vmatprep.subr.bf16.mxu0 %v2178
        %2298 = vmatpush1.bf16.msra.mxu0 %v2177
        %2299 = vmatprep.subr.bf16.mxu0 %v2182
        %2300 = vmatpush1.bf16.msra.mxu0 %v2181
        %2301 = vmatprep.subr.bf16.mxu0 %v2186
        %2302 = vmatpush1.bf16.msra.mxu0 %v2185
        %2303 = vmatprep.subr.bf16.mxu0 %v2190
        %2304 = vmatpush1.bf16.msra.mxu0 %v2189
        %2305 = vmatprep.subr.bf16.mxu0 %v2194
        %2306 = vmatpush1.bf16.msra.mxu0 %v2193
        %2307 = vmatprep.subr.bf16.mxu0 %v2198
        %2308 = vmatpush1.bf16.msra.mxu0 %v2197
        %2309 = vmatprep.subr.bf16.mxu0 %v2202
        %2310 = vmatpush1.bf16.msra.mxu0 %v2201
        %2311 = vmatprep.subr.bf16.mxu0 %v2206
        %2312 = vmatpush1.bf16.msra.mxu0 %v2205
        %2313 = vmatprep.subr.bf16.mxu0 %v2210
        %2314 = vmatpush1.bf16.msra.mxu0 %v2209
        %2315 = vmatprep.subr.bf16.mxu0 %v2214
        %2316 = vmatpush1.bf16.msra.mxu0 %v2213
        %2317 = vmatprep.subr.bf16.mxu0 %v2218
        %2318 = vmatpush1.bf16.msra.mxu0 %v2217
        %2319 = vmatprep.subr.bf16.mxu0 %v2222
        %2320 = vmatpush1.bf16.msra.mxu0 %v2221
        %2321 = vmatprep.mubr.bf16.mxu0 %v1868
        %2322 = vmatmul.mubr.bf16.gmra.mrb[0].mxu0 %v1867
        %v2323 = vpop.f32.mrb[0].mxu0
        %v2324 = vadd.f32 %v1952, %v2323
        %v2325 = vpop.f32.mrb[0].mxu0
        %v2326 = vadd.f32 %v1956, %v2325
        %v2327 = vpop.f32.mrb[0].mxu0
        %v2328 = vadd.f32 %v1952, %v2327
        %v2329 = vpop.f32.mrb[0].mxu0
        %v2330 = vadd.f32 %v1956, %v2329
        %2331 = vmatprep.mubr.bf16.mxu0 %v1870
        %2332 = vmatmul.mubr.bf16.gmra.mrb[0].mxu0 %v1869
        %v2333 = vpop.f32.mrb[0].mxu0
        %v2334 = vadd.f32 %v1952, %v2333
        %v2335 = vpop.f32.mrb[0].mxu0
        %v2336 = vadd.f32 %v1956, %v2335
        %v2337 = vpop.f32.mrb[0].mxu0
        %v2338 = vadd.f32 %v1952, %v2337
        %v2339 = vpop.f32.mrb[0].mxu0
        %v2340 = vadd.f32 %v1956, %v2339
        %2341 = vmatprep.mubr.bf16.mxu0 %v1872
        %2342 = vmatmul.mubr.bf16.gmra.mrb[0].mxu0 %v1871
        %v2343 = vpop.f32.mrb[0].mxu0
        %v2344 = vadd.f32 %v1952, %v2343
        %v2345 = vpop.f32.mrb[0].mxu0
        %v2346 = vadd.f32 %v1956, %v2345
        %v2347 = vpop.f32.mrb[0].mxu0
        %v2348 = vadd.f32 %v1952, %v2347
        %v2349 = vpop.f32.mrb[0].mxu0
        %v2350 = vadd.f32 %v1956, %v2349
        %2351 = vmatprep.mubr.bf16.mxu0 %v1874
        %2352 = vmatmul.mubr.bf16.gmra.mrb[0].mxu0 %v1873
        %v2353 = vpop.f32.mrb[0].mxu0
        %v2354 = vadd.f32 %v1952, %v2353
        %v2355 = vpop.f32.mrb[0].mxu0
        %v2356 = vadd.f32 %v1956, %v2355
        %v2357 = vpop.f32.mrb[0].mxu0
        %v2358 = vadd.f32 %v1952, %v2357
        %v2359 = vpop.f32.mrb[0].mxu0
        %v2360 = vadd.f32 %v1956, %v2359
        %2361 = vmatprep.mubr.bf16.mxu0 %v1876
        %2362 = vmatmul.mubr.bf16.gmra.mrb[0].mxu0 %v1875
        %v2363 = vpop.f32.mrb[0].mxu0
        %v2364 = vadd.f32 %v1952, %v2363
        %v2365 = vpop.f32.mrb[0].mxu0
        %v2366 = vadd.f32 %v1956, %v2365
        %v2367 = vpop.f32.mrb[0].mxu0
        %v2368 = vadd.f32 %v1952, %v2367
        %v2369 = vpop.f32.mrb[0].mxu0
        %v2370 = vadd.f32 %v1956, %v2369
        %2371 = vmatprep.mubr.bf16.mxu0 %v1878
        %2372 = vmatmul.mubr.bf16.gmra.mrb[0].mxu0 %v1877
        %v2373 = vpop.f32.mrb[0].mxu0
        %v2374 = vadd.f32 %v1952, %v2373
        %v2375 = vpop.f32.mrb[0].mxu0
        %v2376 = vadd.f32 %v1956, %v2375
        %v2377 = vpop.f32.mrb[0].mxu0
        %v2378 = vadd.f32 %v1952, %v2377
        %v2379 = vpop.f32.mrb[0].mxu0
        %v2380 = vadd.f32 %v1956, %v2379
        %2381 = vmatprep.mubr.bf16.mxu0 %v1880
        %2382 = vmatmul.mubr.bf16.gmra.mrb[0].mxu0 %v1879
        %v2383 = vpop.f32.mrb[0].mxu0
        %v2384 = vadd.f32 %v1952, %v2383
        %v2385 = vpop.f32.mrb[0].mxu0
        %v2386 = vadd.f32 %v1956, %v2385
        %v2387 = vpop.f32.mrb[0].mxu0
        %v2388 = vadd.f32 %v1952, %v2387
        %v2389 = vpop.f32.mrb[0].mxu0
        %v2390 = vadd.f32 %v1956, %v2389
        %2391 = vmatprep.mubr.bf16.mxu0 %v1882
        %2392 = vmatmul.mubr.bf16.gmra.mrb[0].mxu0 %v1881
        %v2393 = vpop.f32.mrb[0].mxu0
        %v2394 = vadd.f32 %v1952, %v2393
        %v2395 = vpop.f32.mrb[0].mxu0
        %v2396 = vadd.f32 %v1956, %v2395
        %v2397 = vpop.f32.mrb[0].mxu0
        %v2398 = vadd.f32 %v1952, %v2397
        %v2399 = vpop.f32.mrb[0].mxu0
        %v2400 = vadd.f32 %v1956, %v2399
        %2401 = vdwg.mxu0
        %2402 = vmatprep.subr.bf16.mxu0 %v2164
        %2403 = vmatpush1.bf16.msra.mxu0 %v2163
        %2404 = vmatprep.subr.bf16.mxu0 %v2168
        %2405 = vmatpush1.bf16.msra.mxu0 %v2167
        %2406 = vmatprep.subr.bf16.mxu0 %v2172
        %2407 = vmatpush1.bf16.msra.mxu0 %v2171
        %2408 = vmatprep.subr.bf16.mxu0 %v2176
        %2409 = vmatpush1.bf16.msra.mxu0 %v2175
        %2410 = vmatprep.subr.bf16.mxu0 %v2180
        %2411 = vmatpush1.bf16.msra.mxu0 %v2179
        %2412 = vmatprep.subr.bf16.mxu0 %v2184
        %2413 = vmatpush1.bf16.msra.mxu0 %v2183
        %2414 = vmatprep.subr.bf16.mxu0 %v2188
        %2415 = vmatpush1.bf16.msra.mxu0 %v2187
        %2416 = vmatprep.subr.bf16.mxu0 %v2192
        %2417 = vmatpush1.bf16.msra.mxu0 %v2191
        %2418 = vmatprep.subr.bf16.mxu0 %v2196
        %2419 = vmatpush1.bf16.msra.mxu0 %v2195
        %2420 = vmatprep.subr.bf16.mxu0 %v2200
        %2421 = vmatpush1.bf16.msra.mxu0 %v2199
        %2422 = vmatprep.subr.bf16.mxu0 %v2204
        %2423 = vmatpush1.bf16.msra.mxu0 %v2203
        %2424 = vmatprep.subr.bf16.mxu0 %v2208
        %2425 = vmatpush1.bf16.msra.mxu0 %v2207
        %2426 = vmatprep.subr.bf16.mxu0 %v2212
        %2427 = vmatpush1.bf16.msra.mxu0 %v2211
        %2428 = vmatprep.subr.bf16.mxu0 %v2216
        %2429 = vmatpush1.bf16.msra.mxu0 %v2215
        %2430 = vmatprep.subr.bf16.mxu0 %v2220
        %2431 = vmatpush1.bf16.msra.mxu0 %v2219
        %2432 = vmatprep.subr.bf16.mxu0 %v2224
        %2433 = vmatpush1.bf16.msra.mxu0 %v2223
        %2434 = vmatprep.mubr.bf16.mxu0 %v1868
        %2435 = vmatmul.mubr.bf16.gmra.mrb[0].mxu0 %v1867
        %v2436 = vpop.f32.mrb[0].mxu0
        %v2437 = vadd.f32 %v1960, %v2436
        %v2438 = vpop.f32.mrb[0].mxu0
        %v2439 = vadd.f32 %v1964, %v2438
        %v2440 = vpop.f32.mrb[0].mxu0
        %v2441 = vadd.f32 %v1960, %v2440
        %v2442 = vpop.f32.mrb[0].mxu0
        %v2443 = vadd.f32 %v1964, %v2442
        %2444 = vmatprep.mubr.bf16.mxu0 %v1870
        %2445 = vmatmul.mubr.bf16.gmra.mrb[0].mxu0 %v1869
        %v2446 = vpop.f32.mrb[0].mxu0
        %v2447 = vadd.f32 %v1960, %v2446
        %v2448 = vpop.f32.mrb[0].mxu0
        %v2449 = vadd.f32 %v1964, %v2448
        %v2450 = vpop.f32.mrb[0].mxu0
        %v2451 = vadd.f32 %v1960, %v2450
        %v2452 = vpop.f32.mrb[0].mxu0
        %v2453 = vadd.f32 %v1964, %v2452
        %2454 = vmatprep.mubr.bf16.mxu0 %v1872
        %2455 = vmatmul.mubr.bf16.gmra.mrb[0].mxu0 %v1871
        %v2456 = vpop.f32.mrb[0].mxu0
        %v2457 = vadd.f32 %v1960, %v2456
        %v2458 = vpop.f32.mrb[0].mxu0
        %v2459 = vadd.f32 %v1964, %v2458
        %v2460 = vpop.f32.mrb[0].mxu0
        %v2461 = vadd.f32 %v1960, %v2460
        %v2462 = vpop.f32.mrb[0].mxu0
        %v2463 = vadd.f32 %v1964, %v2462
        %2464 = vmatprep.mubr.bf16.mxu0 %v1874
        %2465 = vmatmul.mubr.bf16.gmra.mrb[0].mxu0 %v1873
        %v2466 = vpop.f32.mrb[0].mxu0
        %v2467 = vadd.f32 %v1960, %v2466
        %v2468 = vpop.f32.mrb[0].mxu0
        %v2469 = vadd.f32 %v1964, %v2468
        %v2470 = vpop.f32.mrb[0].mxu0
        %v2471 = vadd.f32 %v1960, %v2470
        %v2472 = vpop.f32.mrb[0].mxu0
        %v2473 = vadd.f32 %v1964, %v2472
        %2474 = vmatprep.mubr.bf16.mxu0 %v1876
        %2475 = vmatmul.mubr.bf16.gmra.mrb[0].mxu0 %v1875
        %v2476 = vpop.f32.mrb[0].mxu0
        %v2477 = vadd.f32 %v1960, %v2476
        %v2478 = vpop.f32.mrb[0].mxu0
        %v2479 = vadd.f32 %v1964, %v2478
        %v2480 = vpop.f32.mrb[0].mxu0
        %v2481 = vadd.f32 %v1960, %v2480
        %v2482 = vpop.f32.mrb[0].mxu0
        %v2483 = vadd.f32 %v1964, %v2482
        %2484 = vmatprep.mubr.bf16.mxu0 %v1878
        %2485 = vmatmul.mubr.bf16.gmra.mrb[0].mxu0 %v1877
        %v2486 = vpop.f32.mrb[0].mxu0
        %v2487 = vadd.f32 %v1960, %v2486
        %v2488 = vpop.f32.mrb[0].mxu0
        %v2489 = vadd.f32 %v1964, %v2488
        %v2490 = vpop.f32.mrb[0].mxu0
        %v2491 = vadd.f32 %v1960, %v2490
        %v2492 = vpop.f32.mrb[0].mxu0
        %v2493 = vadd.f32 %v1964, %v2492
        %2494 = vmatprep.mubr.bf16.mxu0 %v1880
        %2495 = vmatmul.mubr.bf16.gmra.mrb[0].mxu0 %v1879
        %v2496 = vpop.f32.mrb[0].mxu0
        %v2497 = vadd.f32 %v1960, %v2496
        %v2498 = vpop.f32.mrb[0].mxu0
        %v2499 = vadd.f32 %v1964, %v2498
        %v2500 = vpop.f32.mrb[0].mxu0
        %v2501 = vadd.f32 %v1960, %v2500
        %v2502 = vpop.f32.mrb[0].mxu0
        %v2503 = vadd.f32 %v1964, %v2502
        %2504 = vmatprep.mubr.bf16.mxu0 %v1882
        %2505 = vmatmul.mubr.bf16.gmra.mrb[0].mxu0 %v1881
        %v2506 = vpop.f32.mrb[0].mxu0
        %v2507 = vadd.f32 %v1960, %v2506
        %v2508 = vpop.f32.mrb[0].mxu0
        %v2509 = vadd.f32 %v1964, %v2508
        %v2510 = vpop.f32.mrb[0].mxu0
        %v2511 = vadd.f32 %v1960, %v2510
        %v2512 = vpop.f32.mrb[0].mxu0
        %v2513 = vadd.f32 %v1964, %v2512
        %2514 = vdwg.mxu0
        %v2515 = vmax.f32 %v2324, 0.0
        %v2516 = vmax.f32 %v2326, 0.0
        %v2517 = vmax.f32 %v2437, 0.0
        %v2518 = vmax.f32 %v2439, 0.0
        %v2519 = vmax.f32 %v2328, 0.0
        %v2520 = vmax.f32 %v2330, 0.0
        %v2521 = vmax.f32 %v2441, 0.0
        %v2522 = vmax.f32 %v2443, 0.0
        %v2523 = vmax.f32 %v2334, 0.0
        %v2524 = vmax.f32 %v2336, 0.0
        %v2525 = vmax.f32 %v2447, 0.0
        %v2526 = vmax.f32 %v2449, 0.0
        %v2527 = vmax.f32 %v2338, 0.0
        %v2528 = vmax.f32 %v2340, 0.0
        %v2529 = vmax.f32 %v2451, 0.0
        %v2530 = vmax.f32 %v2453, 0.0
        %v2531 = vmax.f32 %v2344, 0.0
        %v2532 = vmax.f32 %v2346, 0.0
        %v2533 = vmax.f32 %v2457, 0.0
        %v2534 = vmax.f32 %v2459, 0.0
        %v2535 = vmax.f32 %v2348, 0.0
        %v2536 = vmax.f32 %v2350, 0.0
        %v2537 = vmax.f32 %v2461, 0.0
        %v2538 = vmax.f32 %v2463, 0.0
        %v2539 = vmax.f32 %v2354, 0.0
        %v2540 = vmax.f32 %v2356, 0.0
        %v2541 = vmax.f32 %v2467, 0.0
        %v2542 = vmax.f32 %v2469, 0.0
        %v2543 = vmax.f32 %v2358, 0.0
        %v2544 = vmax.f32 %v2360, 0.0
        %v2545 = vmax.f32 %v2471, 0.0
        %v2546 = vmax.f32 %v2473, 0.0
        %v2547 = vmax.f32 %v2364, 0.0
        %v2548 = vmax.f32 %v2366, 0.0
        %v2549 = vmax.f32 %v2477, 0.0
        %v2550 = vmax.f32 %v2479, 0.0
        %v2551 = vmax.f32 %v2368, 0.0
        %v2552 = vmax.f32 %v2370, 0.0
        %v2553 = vmax.f32 %v2481, 0.0
        %v2554 = vmax.f32 %v2483, 0.0
        %v2555 = vmax.f32 %v2374, 0.0
        %v2556 = vmax.f32 %v2376, 0.0
        %v2557 = vmax.f32 %v2487, 0.0
        %v2558 = vmax.f32 %v2489, 0.0
        %v2559 = vmax.f32 %v2378, 0.0
        %v2560 = vmax.f32 %v2380, 0.0
        %v2561 = vmax.f32 %v2491, 0.0
        %v2562 = vmax.f32 %v2493, 0.0
        %v2563 = vmax.f32 %v2384, 0.0
        %v2564 = vmax.f32 %v2386, 0.0
        %v2565 = vmax.f32 %v2497, 0.0
        %v2566 = vmax.f32 %v2499, 0.0
        %v2567 = vmax.f32 %v2388, 0.0
        %v2568 = vmax.f32 %v2390, 0.0
        %v2569 = vmax.f32 %v2501, 0.0
        %v2570 = vmax.f32 %v2503, 0.0
        %v2571 = vmax.f32 %v2394, 0.0
        %v2572 = vmax.f32 %v2396, 0.0
        %v2573 = vmax.f32 %v2507, 0.0
        %v2574 = vmax.f32 %v2509, 0.0
        %v2575 = vmax.f32 %v2398, 0.0
        %v2576 = vmax.f32 %v2400, 0.0
        %v2577 = vmax.f32 %v2511, 0.0
        %v2578 = vmax.f32 %v2513, 0.0
        %v2579 = vpack.c.bf16 %v2519, %v2515
        %v2580 = vpack.c.bf16 %v2520, %v2516
        %v2581 = vpack.c.bf16 %v2521, %v2517
        %v2582 = vpack.c.bf16 %v2522, %v2518
        %v2583 = vpack.c.bf16 %v2527, %v2523
        %v2584 = vpack.c.bf16 %v2528, %v2524
        %v2585 = vpack.c.bf16 %v2529, %v2525
        %v2586 = vpack.c.bf16 %v2530, %v2526
        %v2587 = vpack.c.bf16 %v2535, %v2531
        %v2588 = vpack.c.bf16 %v2536, %v2532
        %v2589 = vpack.c.bf16 %v2537, %v2533
        %v2590 = vpack.c.bf16 %v2538, %v2534
        %v2591 = vpack.c.bf16 %v2543, %v2539
        %v2592 = vpack.c.bf16 %v2544, %v2540
        %v2593 = vpack.c.bf16 %v2545, %v2541
        %v2594 = vpack.c.bf16 %v2546, %v2542
        %v2595 = vpack.c.bf16 %v2551, %v2547
        %v2596 = vpack.c.bf16 %v2552, %v2548
        %v2597 = vpack.c.bf16 %v2553, %v2549
        %v2598 = vpack.c.bf16 %v2554, %v2550
        %v2599 = vpack.c.bf16 %v2559, %v2555
        %v2600 = vpack.c.bf16 %v2560, %v2556
        %v2601 = vpack.c.bf16 %v2561, %v2557
        %v2602 = vpack.c.bf16 %v2562, %v2558
        %v2603 = vpack.c.bf16 %v2567, %v2563
        %v2604 = vpack.c.bf16 %v2568, %v2564
        %v2605 = vpack.c.bf16 %v2569, %v2565
        %v2606 = vpack.c.bf16 %v2570, %v2566
        %v2607 = vpack.c.bf16 %v2575, %v2571
        %v2608 = vpack.c.bf16 %v2576, %v2572
        %v2609 = vpack.c.bf16 %v2577, %v2573
        %v2610 = vpack.c.bf16 %v2578, %v2574
        %v2611 = vld [vmem:[#allocation10] sm:$0xf]
        %v2612 = vld [vmem:[#allocation10 + $0x4] sm:$0xf]
        %v2613 = vld [vmem:[#allocation10 + $0x8] sm:$0xf]
        %v2614 = vld [vmem:[#allocation10 + $0xc] sm:$0xf]
        %v2615 = vld [vmem:[#allocation10 + $0x10] sm:$0xf]
        %v2616 = vld [vmem:[#allocation10 + $0x14] sm:$0xf]
        %v2617 = vld [vmem:[#allocation10 + $0x18] sm:$0xf]
        %v2618 = vld [vmem:[#allocation10 + $0x1c] sm:$0xf]
        %v2619 = vld [vmem:[#allocation10 + $0x20] sm:$0xf]
        %v2620 = vld [vmem:[#allocation10 + $0x24] sm:$0xf]
        %v2621 = vld [vmem:[#allocation10 + $0x28] sm:$0xf]
        %v2622 = vld [vmem:[#allocation10 + $0x2c] sm:$0xf]
        %v2623 = vld [vmem:[#allocation10 + $0x30] sm:$0xf]
        %v2624 = vld [vmem:[#allocation10 + $0x34] sm:$0xf]
        %v2625 = vld [vmem:[#allocation10 + $0x38] sm:$0xf]
        %v2626 = vld [vmem:[#allocation10 + $0x3c] sm:$0xf]
        %v2627 = vld [vmem:[#allocation10 + $0x40] sm:$0xf]
        %v2628 = vld [vmem:[#allocation10 + $0x44] sm:$0xf]
        %v2629 = vld [vmem:[#allocation10 + $0x48] sm:$0xf]
        %v2630 = vld [vmem:[#allocation10 + $0x4c] sm:$0xf]
        %v2631 = vld [vmem:[#allocation10 + $0x50] sm:$0xf]
        %v2632 = vld [vmem:[#allocation10 + $0x54] sm:$0xf]
        %v2633 = vld [vmem:[#allocation10 + $0x58] sm:$0xf]
        %v2634 = vld [vmem:[#allocation10 + $0x5c] sm:$0xf]
        %v2635 = vld [vmem:[#allocation10 + $0x60] sm:$0xf]
        %v2636 = vld [vmem:[#allocation10 + $0x64] sm:$0xf]
        %v2637 = vld [vmem:[#allocation10 + $0x68] sm:$0xf]
        %v2638 = vld [vmem:[#allocation10 + $0x6c] sm:$0xf]
        %v2639 = vld [vmem:[#allocation10 + $0x70] sm:$0xf]
        %v2640 = vld [vmem:[#allocation10 + $0x74] sm:$0xf]
        %v2641 = vld [vmem:[#allocation10 + $0x78] sm:$0xf]
        %v2642 = vld [vmem:[#allocation10 + $0x7c] sm:$0xf]
        %v2643 = vld [vmem:[#allocation10 + $0x80] sm:$0xf]
        %v2644 = vld [vmem:[#allocation10 + $0x84] sm:$0xf]
        %v2645 = vld [vmem:[#allocation10 + $0x88] sm:$0xf]
        %v2646 = vld [vmem:[#allocation10 + $0x8c] sm:$0xf]
        %v2647 = vld [vmem:[#allocation10 + $0x90] sm:$0xf]
        %v2648 = vld [vmem:[#allocation10 + $0x94] sm:$0xf]
        %v2649 = vld [vmem:[#allocation10 + $0x98] sm:$0xf]
        %v2650 = vld [vmem:[#allocation10 + $0x9c] sm:$0xf]
        %v2651 = vld [vmem:[#allocation10 + $0xa0] sm:$0xf]
        %v2652 = vld [vmem:[#allocation10 + $0xa4] sm:$0xf]
        %v2653 = vld [vmem:[#allocation10 + $0xa8] sm:$0xf]
        %v2654 = vld [vmem:[#allocation10 + $0xac] sm:$0xf]
        %v2655 = vld [vmem:[#allocation10 + $0xb0] sm:$0xf]
        %v2656 = vld [vmem:[#allocation10 + $0xb4] sm:$0xf]
        %v2657 = vld [vmem:[#allocation10 + $0xb8] sm:$0xf]
        %v2658 = vld [vmem:[#allocation10 + $0xbc] sm:$0xf]
        %v2659 = vld [vmem:[#allocation10 + $0xc0] sm:$0xf]
        %v2660 = vld [vmem:[#allocation10 + $0xc4] sm:$0xf]
        %v2661 = vld [vmem:[#allocation10 + $0xc8] sm:$0xf]
        %v2662 = vld [vmem:[#allocation10 + $0xcc] sm:$0xf]
        %v2663 = vld [vmem:[#allocation10 + $0xd0] sm:$0xf]
        %v2664 = vld [vmem:[#allocation10 + $0xd4] sm:$0xf]
        %v2665 = vld [vmem:[#allocation10 + $0xd8] sm:$0xf]
        %v2666 = vld [vmem:[#allocation10 + $0xdc] sm:$0xf]
        %v2667 = vld [vmem:[#allocation10 + $0xe0] sm:$0xf]
        %v2668 = vld [vmem:[#allocation10 + $0xe4] sm:$0xf]
        %v2669 = vld [vmem:[#allocation10 + $0xe8] sm:$0xf]
        %v2670 = vld [vmem:[#allocation10 + $0xec] sm:$0xf]
        %v2671 = vld [vmem:[#allocation10 + $0xf0] sm:$0xf]
        %v2672 = vld [vmem:[#allocation10 + $0xf4] sm:$0xf]
        %v2673 = vld [vmem:[#allocation10 + $0xf8] sm:$0xf]
        %v2674 = vld [vmem:[#allocation10 + $0xfc] sm:$0xf]
        %v2675 = vld [vmem:[%s8] sm:$0x1]
        %v2677 = vlaneseq
        %v2678 = vshrl.u32 %v2677, 7
        %v2679 = vsub.s32 0, %v2678
        %v2680 = vrot.slane %v2675, %v2679
        %v2746 = vunpack.c.l.b16 %v2611
        %v2747 = vunpack.c.l.b16 %v2612
        %v2748 = vunpack.c.l.b16 %v2613
        %v2749 = vunpack.c.l.b16 %v2614
        %v2750 = vunpack.c.l.b16 %v2615
        %v2751 = vunpack.c.l.b16 %v2616
        %v2752 = vunpack.c.l.b16 %v2617
        %v2753 = vunpack.c.l.b16 %v2618
        %v2754 = vunpack.c.l.b16 %v2619
        %v2755 = vunpack.c.l.b16 %v2620
        %v2756 = vunpack.c.l.b16 %v2621
        %v2757 = vunpack.c.l.b16 %v2622
        %v2758 = vunpack.c.l.b16 %v2623
        %v2759 = vunpack.c.l.b16 %v2624
        %v2760 = vunpack.c.l.b16 %v2625
        %v2761 = vunpack.c.l.b16 %v2626
        %v2762 = vunpack.c.l.b16 %v2627
        %v2763 = vunpack.c.l.b16 %v2628
        %v2764 = vunpack.c.l.b16 %v2629
        %v2765 = vunpack.c.l.b16 %v2630
        %v2766 = vunpack.c.l.b16 %v2631
        %v2767 = vunpack.c.l.b16 %v2632
        %v2768 = vunpack.c.l.b16 %v2633
        %v2769 = vunpack.c.l.b16 %v2634
        %v2770 = vunpack.c.l.b16 %v2635
        %v2771 = vunpack.c.l.b16 %v2636
        %v2772 = vunpack.c.l.b16 %v2637
        %v2773 = vunpack.c.l.b16 %v2638
        %v2774 = vunpack.c.l.b16 %v2639
        %v2775 = vunpack.c.l.b16 %v2640
        %v2776 = vunpack.c.l.b16 %v2641
        %v2777 = vunpack.c.l.b16 %v2642
        %v2778 = vunpack.c.l.b16 %v2643
        %v2779 = vunpack.c.l.b16 %v2644
        %v2780 = vunpack.c.l.b16 %v2645
        %v2781 = vunpack.c.l.b16 %v2646
        %v2782 = vunpack.c.l.b16 %v2647
        %v2783 = vunpack.c.l.b16 %v2648
        %v2784 = vunpack.c.l.b16 %v2649
        %v2785 = vunpack.c.l.b16 %v2650
        %v2786 = vunpack.c.l.b16 %v2651
        %v2787 = vunpack.c.l.b16 %v2652
        %v2788 = vunpack.c.l.b16 %v2653
        %v2789 = vunpack.c.l.b16 %v2654
        %v2790 = vunpack.c.l.b16 %v2655
        %v2791 = vunpack.c.l.b16 %v2656
        %v2792 = vunpack.c.l.b16 %v2657
        %v2793 = vunpack.c.l.b16 %v2658
        %v2794 = vunpack.c.l.b16 %v2659
        %v2795 = vunpack.c.l.b16 %v2660
        %v2796 = vunpack.c.l.b16 %v2661
        %v2797 = vunpack.c.l.b16 %v2662
        %v2798 = vunpack.c.l.b16 %v2663
        %v2799 = vunpack.c.l.b16 %v2664
        %v2800 = vunpack.c.l.b16 %v2665
        %v2801 = vunpack.c.l.b16 %v2666
        %v2802 = vunpack.c.l.b16 %v2667
        %v2803 = vunpack.c.l.b16 %v2668
        %v2804 = vunpack.c.l.b16 %v2669
        %v2805 = vunpack.c.l.b16 %v2670
        %v2806 = vunpack.c.l.b16 %v2671
        %v2807 = vunpack.c.l.b16 %v2672
        %v2808 = vunpack.c.l.b16 %v2673
        %v2809 = vunpack.c.l.b16 %v2674
        %v2810 = vpack.c.b16 %v2747, %v2746
        %v2811 = vpack.c.b16 %v2749, %v2748
        %v2812 = vpack.c.b16 %v2751, %v2750
        %v2813 = vpack.c.b16 %v2753, %v2752
        %v2814 = vpack.c.b16 %v2755, %v2754
        %v2815 = vpack.c.b16 %v2757, %v2756
        %v2816 = vpack.c.b16 %v2759, %v2758
        %v2817 = vpack.c.b16 %v2761, %v2760
        %v2818 = vpack.c.b16 %v2763, %v2762
        %v2819 = vpack.c.b16 %v2765, %v2764
        %v2820 = vpack.c.b16 %v2767, %v2766
        %v2821 = vpack.c.b16 %v2769, %v2768
        %v2822 = vpack.c.b16 %v2771, %v2770
        %v2823 = vpack.c.b16 %v2773, %v2772
        %v2824 = vpack.c.b16 %v2775, %v2774
        %v2825 = vpack.c.b16 %v2777, %v2776
        %v2826 = vpack.c.b16 %v2779, %v2778
        %v2827 = vpack.c.b16 %v2781, %v2780
        %v2828 = vpack.c.b16 %v2783, %v2782
        %v2829 = vpack.c.b16 %v2785, %v2784
        %v2830 = vpack.c.b16 %v2787, %v2786
        %v2831 = vpack.c.b16 %v2789, %v2788
        %v2832 = vpack.c.b16 %v2791, %v2790
        %v2833 = vpack.c.b16 %v2793, %v2792
        %v2834 = vpack.c.b16 %v2795, %v2794
        %v2835 = vpack.c.b16 %v2797, %v2796
        %v2836 = vpack.c.b16 %v2799, %v2798
        %v2837 = vpack.c.b16 %v2801, %v2800
        %v2838 = vpack.c.b16 %v2803, %v2802
        %v2839 = vpack.c.b16 %v2805, %v2804
        %v2840 = vpack.c.b16 %v2807, %v2806
        %v2841 = vpack.c.b16 %v2809, %v2808
        %2874 = vmatprep.subr.bf16.mxu0 0
        %2875 = vmatpush1.bf16.msra.mxu0 %v2810
        %2876 = vmatprep.subr.bf16.mxu0 0
        %2877 = vmatpush1.bf16.msra.mxu0 %v2811
        %2878 = vmatprep.subr.bf16.mxu0 0
        %2879 = vmatpush1.bf16.msra.mxu0 %v2812
        %2880 = vmatprep.subr.bf16.mxu0 0
        %2881 = vmatpush1.bf16.msra.mxu0 %v2813
        %2882 = vmatprep.subr.bf16.mxu0 0
        %2883 = vmatpush1.bf16.msra.mxu0 %v2814
        %2884 = vmatprep.subr.bf16.mxu0 0
        %2885 = vmatpush1.bf16.msra.mxu0 %v2815
        %2886 = vmatprep.subr.bf16.mxu0 0
        %2887 = vmatpush1.bf16.msra.mxu0 %v2816
        %2888 = vmatprep.subr.bf16.mxu0 0
        %2889 = vmatpush1.bf16.msra.mxu0 %v2817
        %2890 = vmatprep.subr.bf16.mxu0 0
        %2891 = vmatpush1.bf16.msra.mxu0 %v2818
        %2892 = vmatprep.subr.bf16.mxu0 0
        %2893 = vmatpush1.bf16.msra.mxu0 %v2819
        %2894 = vmatprep.subr.bf16.mxu0 0
        %2895 = vmatpush1.bf16.msra.mxu0 %v2820
        %2896 = vmatprep.subr.bf16.mxu0 0
        %2897 = vmatpush1.bf16.msra.mxu0 %v2821
        %2898 = vmatprep.subr.bf16.mxu0 0
        %2899 = vmatpush1.bf16.msra.mxu0 %v2822
        %2900 = vmatprep.subr.bf16.mxu0 0
        %2901 = vmatpush1.bf16.msra.mxu0 %v2823
        %2902 = vmatprep.subr.bf16.mxu0 0
        %2903 = vmatpush1.bf16.msra.mxu0 %v2824
        %2904 = vmatprep.subr.bf16.mxu0 0
        %2905 = vmatpush1.bf16.msra.mxu0 %v2825
        %2906 = vmatprep.mubr.bf16.mxu0 %v2580
        %2907 = vmatmul.mubr.bf16.gmra.mrb[0].mxu0 %v2579
        %v2908 = vpop.f32.mrb[0].mxu0
        %v2909 = vadd.f32 %v2680, %v2908
        %v2910 = vpop.f32.mrb[0].mxu0
        %v2911 = vpop.f32.mrb[0].mxu0
        %v2912 = vadd.f32 %v2680, %v2911
        %v2913 = vpop.f32.mrb[0].mxu0
        %2914 = vmatprep.mubr.bf16.mxu0 %v2584
        %2915 = vmatmul.mubr.bf16.gmra.mrb[0].mxu0 %v2583
        %v2916 = vpop.f32.mrb[0].mxu0
        %v2917 = vadd.f32 %v2680, %v2916
        %v2918 = vpop.f32.mrb[0].mxu0
        %v2919 = vpop.f32.mrb[0].mxu0
        %v2920 = vadd.f32 %v2680, %v2919
        %v2921 = vpop.f32.mrb[0].mxu0
        %2922 = vmatprep.mubr.bf16.mxu0 %v2588
        %2923 = vmatmul.mubr.bf16.gmra.mrb[0].mxu0 %v2587
        %v2924 = vpop.f32.mrb[0].mxu0
        %v2925 = vadd.f32 %v2680, %v2924
        %v2926 = vpop.f32.mrb[0].mxu0
        %v2927 = vpop.f32.mrb[0].mxu0
        %v2928 = vadd.f32 %v2680, %v2927
        %v2929 = vpop.f32.mrb[0].mxu0
        %2930 = vmatprep.mubr.bf16.mxu0 %v2592
        %2931 = vmatmul.mubr.bf16.gmra.mrb[0].mxu0 %v2591
        %v2932 = vpop.f32.mrb[0].mxu0
        %v2933 = vadd.f32 %v2680, %v2932
        %v2934 = vpop.f32.mrb[0].mxu0
        %v2935 = vpop.f32.mrb[0].mxu0
        %v2936 = vadd.f32 %v2680, %v2935
        %v2937 = vpop.f32.mrb[0].mxu0
        %2938 = vmatprep.mubr.bf16.mxu0 %v2596
        %2939 = vmatmul.mubr.bf16.gmra.mrb[0].mxu0 %v2595
        %v2940 = vpop.f32.mrb[0].mxu0
        %v2941 = vadd.f32 %v2680, %v2940
        %v2942 = vpop.f32.mrb[0].mxu0
        %v2943 = vpop.f32.mrb[0].mxu0
        %v2944 = vadd.f32 %v2680, %v2943
        %v2945 = vpop.f32.mrb[0].mxu0
        %2946 = vmatprep.mubr.bf16.mxu0 %v2600
        %2947 = vmatmul.mubr.bf16.gmra.mrb[0].mxu0 %v2599
        %v2948 = vpop.f32.mrb[0].mxu0
        %v2949 = vadd.f32 %v2680, %v2948
        %v2950 = vpop.f32.mrb[0].mxu0
        %v2951 = vpop.f32.mrb[0].mxu0
        %v2952 = vadd.f32 %v2680, %v2951
        %v2953 = vpop.f32.mrb[0].mxu0
        %2954 = vmatprep.mubr.bf16.mxu0 %v2604
        %2955 = vmatmul.mubr.bf16.gmra.mrb[0].mxu0 %v2603
        %v2956 = vpop.f32.mrb[0].mxu0
        %v2957 = vadd.f32 %v2680, %v2956
        %v2958 = vpop.f32.mrb[0].mxu0
        %v2959 = vpop.f32.mrb[0].mxu0
        %v2960 = vadd.f32 %v2680, %v2959
        %v2961 = vpop.f32.mrb[0].mxu0
        %2962 = vmatprep.mubr.bf16.mxu0 %v2608
        %2963 = vmatmul.mubr.bf16.gmra.mrb[0].mxu0 %v2607
        %v2964 = vpop.f32.mrb[0].mxu0
        %v2965 = vadd.f32 %v2680, %v2964
        %v2966 = vpop.f32.mrb[0].mxu0
        %v2967 = vpop.f32.mrb[0].mxu0
        %v2968 = vadd.f32 %v2680, %v2967
        %v2969 = vpop.f32.mrb[0].mxu0
        %2970 = vdwg.mxu0
        %2971 = vmatprep.subr.bf16.mxu0 0
        %2972 = vmatpush1.bf16.msra.mxu0 %v2826
        %2973 = vmatprep.subr.bf16.mxu0 0
        %2974 = vmatpush1.bf16.msra.mxu0 %v2827
        %2975 = vmatprep.subr.bf16.mxu0 0
        %2976 = vmatpush1.bf16.msra.mxu0 %v2828
        %2977 = vmatprep.subr.bf16.mxu0 0
        %2978 = vmatpush1.bf16.msra.mxu0 %v2829
        %2979 = vmatprep.subr.bf16.mxu0 0
        %2980 = vmatpush1.bf16.msra.mxu0 %v2830
        %2981 = vmatprep.subr.bf16.mxu0 0
        %2982 = vmatpush1.bf16.msra.mxu0 %v2831
        %2983 = vmatprep.subr.bf16.mxu0 0
        %2984 = vmatpush1.bf16.msra.mxu0 %v2832
        %2985 = vmatprep.subr.bf16.mxu0 0
        %2986 = vmatpush1.bf16.msra.mxu0 %v2833
        %2987 = vmatprep.subr.bf16.mxu0 0
        %2988 = vmatpush1.bf16.msra.mxu0 %v2834
        %2989 = vmatprep.subr.bf16.mxu0 0
        %2990 = vmatpush1.bf16.msra.mxu0 %v2835
        %2991 = vmatprep.subr.bf16.mxu0 0
        %2992 = vmatpush1.bf16.msra.mxu0 %v2836
        %2993 = vmatprep.subr.bf16.mxu0 0
        %2994 = vmatpush1.bf16.msra.mxu0 %v2837
        %2995 = vmatprep.subr.bf16.mxu0 0
        %2996 = vmatpush1.bf16.msra.mxu0 %v2838
        %2997 = vmatprep.subr.bf16.mxu0 0
        %2998 = vmatpush1.bf16.msra.mxu0 %v2839
        %2999 = vmatprep.subr.bf16.mxu0 0
        %3000 = vmatpush1.bf16.msra.mxu0 %v2840
        %3001 = vmatprep.subr.bf16.mxu0 0
        %3002 = vmatpush1.bf16.msra.mxu0 %v2841
        %3003 = vmatprep.mubr.bf16.mxu0 %v2582
        %3004 = vmatmul.mubr.bf16.gmra.mrb[0].mxu0 %v2581
        %v3005 = vpop.f32.mrb[0].mxu0
        %v3006 = vadd.f32 %v2909, %v3005
        %v3007 = vpop.f32.mrb[0].mxu0
        %v3008 = vpop.f32.mrb[0].mxu0
        %v3009 = vadd.f32 %v2912, %v3008
        %v3010 = vpop.f32.mrb[0].mxu0
        %3011 = vmatprep.mubr.bf16.mxu0 %v2586
        %3012 = vmatmul.mubr.bf16.gmra.mrb[0].mxu0 %v2585
        %v3013 = vpop.f32.mrb[0].mxu0
        %v3014 = vadd.f32 %v2917, %v3013
        %v3015 = vpop.f32.mrb[0].mxu0
        %v3016 = vpop.f32.mrb[0].mxu0
        %v3017 = vadd.f32 %v2920, %v3016
        %v3018 = vpop.f32.mrb[0].mxu0
        %3019 = vmatprep.mubr.bf16.mxu0 %v2590
        %3020 = vmatmul.mubr.bf16.gmra.mrb[0].mxu0 %v2589
        %v3021 = vpop.f32.mrb[0].mxu0
        %v3022 = vadd.f32 %v2925, %v3021
        %v3023 = vpop.f32.mrb[0].mxu0
        %v3024 = vpop.f32.mrb[0].mxu0
        %v3025 = vadd.f32 %v2928, %v3024
        %v3026 = vpop.f32.mrb[0].mxu0
        %3027 = vmatprep.mubr.bf16.mxu0 %v2594
        %3028 = vmatmul.mubr.bf16.gmra.mrb[0].mxu0 %v2593
        %v3029 = vpop.f32.mrb[0].mxu0
        %v3030 = vadd.f32 %v2933, %v3029
        %v3031 = vpop.f32.mrb[0].mxu0
        %v3032 = vpop.f32.mrb[0].mxu0
        %v3033 = vadd.f32 %v2936, %v3032
        %v3034 = vpop.f32.mrb[0].mxu0
        %3035 = vmatprep.mubr.bf16.mxu0 %v2598
        %3036 = vmatmul.mubr.bf16.gmra.mrb[0].mxu0 %v2597
        %v3037 = vpop.f32.mrb[0].mxu0
        %v3038 = vadd.f32 %v2941, %v3037
        %v3039 = vpop.f32.mrb[0].mxu0
        %v3040 = vpop.f32.mrb[0].mxu0
        %v3041 = vadd.f32 %v2944, %v3040
        %v3042 = vpop.f32.mrb[0].mxu0
        %3043 = vmatprep.mubr.bf16.mxu0 %v2602
        %3044 = vmatmul.mubr.bf16.gmra.mrb[0].mxu0 %v2601
        %v3045 = vpop.f32.mrb[0].mxu0
        %v3046 = vadd.f32 %v2949, %v3045
        %v3047 = vpop.f32.mrb[0].mxu0
        %v3048 = vpop.f32.mrb[0].mxu0
        %v3049 = vadd.f32 %v2952, %v3048
        %v3050 = vpop.f32.mrb[0].mxu0
        %3051 = vmatprep.mubr.bf16.mxu0 %v2606
        %3052 = vmatmul.mubr.bf16.gmra.mrb[0].mxu0 %v2605
        %v3053 = vpop.f32.mrb[0].mxu0
        %v3054 = vadd.f32 %v2957, %v3053
        %v3055 = vpop.f32.mrb[0].mxu0
        %v3056 = vpop.f32.mrb[0].mxu0
        %v3057 = vadd.f32 %v2960, %v3056
        %v3058 = vpop.f32.mrb[0].mxu0
        %3059 = vmatprep.mubr.bf16.mxu0 %v2610
        %3060 = vmatmul.mubr.bf16.gmra.mrb[0].mxu0 %v2609
        %v3061 = vpop.f32.mrb[0].mxu0
        %v3062 = vadd.f32 %v2965, %v3061
        %v3063 = vpop.f32.mrb[0].mxu0
        %v3064 = vpop.f32.mrb[0].mxu0
        %v3065 = vadd.f32 %v2968, %v3064
        %v3066 = vpop.f32.mrb[0].mxu0
        %3067 = vdwg.mxu0
        %v3068 = vmax.f32 %v3006, 0.0
        %v3069 = vmax.f32 %v3009, 0.0
        %v3070 = vmax.f32 %v3014, 0.0
        %v3071 = vmax.f32 %v3017, 0.0
        %v3072 = vmax.f32 %v3022, 0.0
        %v3073 = vmax.f32 %v3025, 0.0
        %v3074 = vmax.f32 %v3030, 0.0
        %v3075 = vmax.f32 %v3033, 0.0
        %v3076 = vmax.f32 %v3038, 0.0
        %v3077 = vmax.f32 %v3041, 0.0
        %v3078 = vmax.f32 %v3046, 0.0
        %v3079 = vmax.f32 %v3049, 0.0
        %v3080 = vmax.f32 %v3054, 0.0
        %v3081 = vmax.f32 %v3057, 0.0
        %v3082 = vmax.f32 %v3062, 0.0
        %v3083 = vmax.f32 %v3065, 0.0
        %v3084 = vpack.c.bf16 %v3069, %v3068
        %v3085 = vpack.c.bf16 %v3071, %v3070
        %v3086 = vpack.c.bf16 %v3073, %v3072
        %v3087 = vpack.c.bf16 %v3075, %v3074
        %v3088 = vpack.c.bf16 %v3077, %v3076
        %v3089 = vpack.c.bf16 %v3079, %v3078
        %v3090 = vpack.c.bf16 %v3081, %v3080
        %v3091 = vpack.c.bf16 %v3083, %v3082
        %v3092 = vld [vmem:[#allocation11] sm:$0xf]
        %v3093 = vld [vmem:[#allocation11 + $0x4] sm:$0xf]
        %v3094 = vld [vmem:[#allocation11 + $0x8] sm:$0xf]
        %v3095 = vld [vmem:[#allocation11 + $0xc] sm:$0xf]
        %v3096 = vld [vmem:[#allocation11 + $0x10] sm:$0xf]
        %v3097 = vld [vmem:[#allocation11 + $0x14] sm:$0xf]
        %v3098 = vld [vmem:[#allocation11 + $0x18] sm:$0xf]
        %v3099 = vld [vmem:[#allocation11 + $0x1c] sm:$0xf]
        %v3100 = vld [vmem:[#allocation11 + $0x20] sm:$0xf]
        %v3101 = vld [vmem:[#allocation11 + $0x24] sm:$0xf]
        %v3102 = vld [vmem:[#allocation11 + $0x28] sm:$0xf]
        %v3103 = vld [vmem:[#allocation11 + $0x2c] sm:$0xf]
        %v3104 = vld [vmem:[#allocation11 + $0x30] sm:$0xf]
        %v3105 = vld [vmem:[#allocation11 + $0x34] sm:$0xf]
        %v3106 = vld [vmem:[#allocation11 + $0x38] sm:$0xf]
        %v3107 = vld [vmem:[#allocation11 + $0x3c] sm:$0xf]
        %v3108 = vld [vmem:[%s10] sm:$0x1]
        %v3110 = vlaneseq
        %v3111 = vshrl.u32 %v3110, 7
        %v3112 = vsub.s32 0, %v3111
        %v3113 = vrot.slane %v3108, %v3112
        %v3131 = vunpack.c.l.b16 %v3092
        %v3132 = vunpack.c.l.b16 %v3093
        %v3133 = vunpack.c.l.b16 %v3094
        %v3134 = vunpack.c.l.b16 %v3095
        %v3135 = vunpack.c.l.b16 %v3096
        %v3136 = vunpack.c.l.b16 %v3097
        %v3137 = vunpack.c.l.b16 %v3098
        %v3138 = vunpack.c.l.b16 %v3099
        %v3139 = vunpack.c.l.b16 %v3100
        %v3140 = vunpack.c.l.b16 %v3101
        %v3141 = vunpack.c.l.b16 %v3102
        %v3142 = vunpack.c.l.b16 %v3103
        %v3143 = vunpack.c.l.b16 %v3104
        %v3144 = vunpack.c.l.b16 %v3105
        %v3145 = vunpack.c.l.b16 %v3106
        %v3146 = vunpack.c.l.b16 %v3107
        %v3147 = vpack.c.b16 %v3132, %v3131
        %v3148 = vpack.c.b16 %v3134, %v3133
        %v3149 = vpack.c.b16 %v3136, %v3135
        %v3150 = vpack.c.b16 %v3138, %v3137
        %v3151 = vpack.c.b16 %v3140, %v3139
        %v3152 = vpack.c.b16 %v3142, %v3141
        %v3153 = vpack.c.b16 %v3144, %v3143
        %v3154 = vpack.c.b16 %v3146, %v3145
        %3163 = vmatprep.subr.bf16.mxu0 0
        %3164 = vmatpush1.bf16.msra.mxu0 %v3147
        %3165 = vmatprep.subr.bf16.mxu0 0
        %3166 = vmatpush1.bf16.msra.mxu0 %v3148
        %3167 = vmatprep.subr.bf16.mxu0 0
        %3168 = vmatpush1.bf16.msra.mxu0 %v3149
        %3169 = vmatprep.subr.bf16.mxu0 0
        %3170 = vmatpush1.bf16.msra.mxu0 %v3150
        %3171 = vmatprep.subr.bf16.mxu0 0
        %3172 = vmatpush1.bf16.msra.mxu0 %v3151
        %3173 = vmatprep.subr.bf16.mxu0 0
        %3174 = vmatpush1.bf16.msra.mxu0 %v3152
        %3175 = vmatprep.subr.bf16.mxu0 0
        %3176 = vmatpush1.bf16.msra.mxu0 %v3153
        %3177 = vmatprep.subr.bf16.mxu0 0
        %3178 = vmatpush1.bf16.msra.mxu0 %v3154
        %3179 = vmatprep.subr.bf16.mxu0 0
        %3180 = vmatpush1.bf16.msra.mxu0 0
        %3181 = vmatprep.subr.bf16.mxu0 0
        %3182 = vmatpush1.bf16.msra.mxu0 0
        %3183 = vmatprep.subr.bf16.mxu0 0
        %3184 = vmatpush1.bf16.msra.mxu0 0
        %3185 = vmatprep.subr.bf16.mxu0 0
        %3186 = vmatpush1.bf16.msra.mxu0 0
        %3187 = vmatprep.subr.bf16.mxu0 0
        %3188 = vmatpush1.bf16.msra.mxu0 0
        %3189 = vmatprep.subr.bf16.mxu0 0
        %3190 = vmatpush1.bf16.msra.mxu0 0
        %3191 = vmatprep.subr.bf16.mxu0 0
        %3192 = vmatpush1.bf16.msra.mxu0 0
        %3193 = vmatprep.subr.bf16.mxu0 0
        %3194 = vmatpush1.bf16.msra.mxu0 0
        %3195 = vmatprep.mubr.bf16.mxu0 0
        %3196 = vmatmul.mubr.bf16.gmra.mrb[0].mxu0 %v3084
        %v3197 = vpop.f32.mrb[0].mxu0
        %v3198 = vadd.f32 %v3113, %v3197
        %v3199 = vpop.f32.mrb[0].mxu0
        %v3200 = vpop.f32.mrb[0].mxu0
        %v3201 = vadd.f32 %v3113, %v3200
        %v3202 = vpop.f32.mrb[0].mxu0
        %3203 = vmatprep.mubr.bf16.mxu0 0
        %3204 = vmatmul.mubr.bf16.gmra.mrb[0].mxu0 %v3085
        %v3205 = vpop.f32.mrb[0].mxu0
        %v3206 = vadd.f32 %v3113, %v3205
        %v3207 = vpop.f32.mrb[0].mxu0
        %v3208 = vpop.f32.mrb[0].mxu0
        %v3209 = vadd.f32 %v3113, %v3208
        %v3210 = vpop.f32.mrb[0].mxu0
        %3211 = vmatprep.mubr.bf16.mxu0 0
        %3212 = vmatmul.mubr.bf16.gmra.mrb[0].mxu0 %v3086
        %v3213 = vpop.f32.mrb[0].mxu0
        %v3214 = vadd.f32 %v3113, %v3213
        %v3215 = vpop.f32.mrb[0].mxu0
        %v3216 = vpop.f32.mrb[0].mxu0
        %v3217 = vadd.f32 %v3113, %v3216
        %v3218 = vpop.f32.mrb[0].mxu0
        %3219 = vmatprep.mubr.bf16.mxu0 0
        %3220 = vmatmul.mubr.bf16.gmra.mrb[0].mxu0 %v3087
        %v3221 = vpop.f32.mrb[0].mxu0
        %v3222 = vadd.f32 %v3113, %v3221
        %v3223 = vpop.f32.mrb[0].mxu0
        %v3224 = vpop.f32.mrb[0].mxu0
        %v3225 = vadd.f32 %v3113, %v3224
        %v3226 = vpop.f32.mrb[0].mxu0
        %3227 = vmatprep.mubr.bf16.mxu0 0
        %3228 = vmatmul.mubr.bf16.gmra.mrb[0].mxu0 %v3088
        %v3229 = vpop.f32.mrb[0].mxu0
        %v3230 = vadd.f32 %v3113, %v3229
        %v3231 = vpop.f32.mrb[0].mxu0
        %v3232 = vpop.f32.mrb[0].mxu0
        %v3233 = vadd.f32 %v3113, %v3232
        %v3234 = vpop.f32.mrb[0].mxu0
        %3235 = vmatprep.mubr.bf16.mxu0 0
        %3236 = vmatmul.mubr.bf16.gmra.mrb[0].mxu0 %v3089
        %v3237 = vpop.f32.mrb[0].mxu0
        %v3238 = vadd.f32 %v3113, %v3237
        %v3239 = vpop.f32.mrb[0].mxu0
        %v3240 = vpop.f32.mrb[0].mxu0
        %v3241 = vadd.f32 %v3113, %v3240
        %v3242 = vpop.f32.mrb[0].mxu0
        %3243 = vmatprep.mubr.bf16.mxu0 0
        %3244 = vmatmul.mubr.bf16.gmra.mrb[0].mxu0 %v3090
        %v3245 = vpop.f32.mrb[0].mxu0
        %v3246 = vadd.f32 %v3113, %v3245
        %v3247 = vpop.f32.mrb[0].mxu0
        %v3248 = vpop.f32.mrb[0].mxu0
        %v3249 = vadd.f32 %v3113, %v3248
        %v3250 = vpop.f32.mrb[0].mxu0
        %3251 = vmatprep.mubr.bf16.mxu0 0
        %3252 = vmatmul.mubr.bf16.gmra.mrb[0].mxu0 %v3091
        %v3253 = vpop.f32.mrb[0].mxu0
        %v3254 = vadd.f32 %v3113, %v3253
        %v3255 = vpop.f32.mrb[0].mxu0
        %v3256 = vpop.f32.mrb[0].mxu0
        %v3257 = vadd.f32 %v3113, %v3256
        %v3258 = vpop.f32.mrb[0].mxu0
        %3259 = vdwg.mxu0
        %3260 = vst [vmem:[%s485] sm:$0xff] %v3198
        %3261 = vst [vmem:[%s485 + $0x8] sm:$0xff] %v3201
        %3262 = vst [vmem:[%s485 + $0x10] sm:$0xff] %v3206
        %3263 = vst [vmem:[%s485 + $0x18] sm:$0xff] %v3209
        %3264 = vst [vmem:[%s485 + $0x20] sm:$0xff] %v3214
        %3265 = vst [vmem:[%s485 + $0x28] sm:$0xff] %v3217
        %3266 = vst [vmem:[%s485 + $0x30] sm:$0xff] %v3222
        %3267 = vst [vmem:[%s485 + $0x38] sm:$0xff] %v3225
        %3268 = vst [vmem:[%s485 + $0x40] sm:$0xff] %v3230
        %3269 = vst [vmem:[%s485 + $0x48] sm:$0xff] %v3233
        %3270 = vst [vmem:[%s485 + $0x50] sm:$0xff] %v3238
        %3271 = vst [vmem:[%s485 + $0x58] sm:$0xff] %v3241
        %3272 = vst [vmem:[%s485 + $0x60] sm:$0xff] %v3246
        %3273 = vst [vmem:[%s485 + $0x68] sm:$0xff] %v3249
        %3274 = vst [vmem:[%s485 + $0x70] sm:$0xff] %v3254
        %3275 = vst [vmem:[%s485 + $0x78] sm:$0xff] %v3257
        %s3276 = sand.u32 %s275, 1
        %s3277 = scalar_lea.sflag [#allocation4], %s3276
        %s3278 = sand.u32 %s275, 1
        %s3279 = smul.addr %s3278, 128
        %s3280 = scalar_lea.vmem [#allocation13], %s3279
        // Predicated region
        $region89: #{tpu_custom_call.1} parent=63 // pred_check
          %p3281 = pneg %p285
        $region90: #{tpu_custom_call.1} parent=63 // pred_check_branch
          %3283 = sbr.rel (%p3281) target = $region92
        $region91: #{tpu_custom_call.1} parent=63 // pred_region
          %s3284 = smul.u32 16, %s31
          %s3285 = ssub.s32 25, %s3284
          %p3286 = scmp.lt.s32.totalorder %s3285, 16
          %s3287 = scalar_select %p3286, %s3285, 16
          %s3288 = smul.u32 128, %s3287
          %s3290 = ssub.s32 2048, %s3288
          %3291 = vsyncadd %s3277, %s3290
          %p3292 = scmp.ne.s32.totalorder 0, %s3288
          %s3293 = smul.addr %s3284, 128
          %s3294 = scalar_lea.hbm %s11, %s3293
          %s3295 = smul.u32 8, %s3287
          %s3296 = sshll.u32 %s3280, 4
          %s3297 = int_to_ptr.vmem [resolvable:$true] %s3296
          %s3298 = sshll.u32 %s3295, 4
          %3302 = dma.vmem_to_hbm [thread:$0]  (%p3292), %s3297, %s3298, %s3294, %s3277, 128, 128, 8
        $region92: #{tpu_custom_call.1} parent=63 // pred_fallthru
          _
      $region64: #{tpu_custom_call.1} parent=5 // pred_fallthru
        _
      %p3303 = scmp.le.s32.totalorder 2, %s26
      // Predicated region
      $region93: #{tpu_custom_call.1} parent=5 // pred_check
        %p3304 = pneg %p3303
      $region94: #{tpu_custom_call.1} parent=5 // pred_check_branch
        %3306 = sbr.rel (%p3304) target = $region96
      $region95: #{tpu_custom_call.1} parent=5 // pred_region
        %s3307 = ssub.s32 %s26, 2
        // Predicated region
        $region97: #{tpu_custom_call.1} parent=95 // pred_check
          %p3308 = pneg %p291
        $region98: #{tpu_custom_call.1} parent=95 // pred_check_branch
          %3310 = sbr.rel (%p3308) target = $region100
        $region99: #{tpu_custom_call.1} parent=95 // pred_region
          %s3311 = sand.u32 %s276, 1
          %s3312 = scalar_lea.sflag [#allocation4], %s3311
          %s3313 = sand.u32 %s276, 1
          %s3314 = smul.addr %s3313, 128
          %s3315 = scalar_lea.vmem [#allocation13], %s3314
          %3316 = dma.done %s3312, 2048
        $region100: #{tpu_custom_call.1} parent=95 // pred_fallthru
          _
      $region96: #{tpu_custom_call.1} parent=5 // pred_fallthru
        _
    $region6: #{tpu_custom_call.1} parent=1 // loop_footer
      %s30 = sadd.s32 1, %s26
    $region7: #{tpu_custom_call.1} parent=1 // loop_footer_branch
      %25 = sbr.rel target = $region3
    $region8: #{tpu_custom_call.1} parent=1 // loop_exit
      _
    %3317 = vsyncpa [#allocation3], 1
    %s3318 = scalar_lea.sflag [#allocation3], 1
    %3319 = vsyncpa %s3318, 1
    %3320 = vsyncpa [#allocation6], 1
    %3321 = vsyncpa [#allocation9], 1
    %3322 = vsyncpa [#allocation12], 1
    %3323 = vsyncpa [#allocation4], 1
    %s3324 = scalar_lea.sflag [#allocation4], 1
    %3325 = vsyncpa %s3324, 1

</llo_original>
